<compile_context>
chip_gen: v7x
topology: tpu7x:2x2x1
jax: 0.10.0
libtpu: 0.0.40
codegen_flags: <defaults>
</compile_context>

<pallas_src>
import jax
import jax.numpy as jnp
import numpy as np
from jax.experimental import pallas as pl
from jax.experimental.pallas import tpu as pltpu

EPS = 1e-5  # PyTorch LayerNorm default eps


def _gelu_tanh(x):
    c = jnp.sqrt(2.0 / jnp.pi).astype(x.dtype)
    return 0.5 * x * (1.0 + jnp.tanh(c * (x + 0.044715 * x * x * x)))


def _layer_norm(x, w, b):
    mu = jnp.mean(x, axis=-1, keepdims=True)
    var = jnp.mean((x - mu) ** 2, axis=-1, keepdims=True)
    return (x - mu) * jax.lax.rsqrt(var + EPS) * w + b


def gmlp_kernel(x_ref, emb_w_ref, emb_b_ref,
                ln1_w_ref, ln1_b_ref, w1_ref, b1_ref,
                ln2_w_ref, ln2_b_ref, spb_w_ref, spb_b_ref,
                w2_ref, b2_ref,
                reg_ln_w_ref, reg_ln_b_ref, reg_w_ref, reg_b_ref,
                out_ref):
    TB, P, F = x_ref.shape
    D = emb_w_ref.shape[1]
    M = TB * P
    n_layers = w1_ref.shape[0]

    # ---- embedding: Linear(F -> D); K = F is tiny -> unrolled f32 VPU FMA ----
    xe = x_ref[...].reshape(M, F)                 # layout-free reshape
    ew = emb_w_ref[...]                           # (F, D) f32
    h = xe[:, 0:1] * ew[0][None, :] + emb_b_ref[...]
    for f in range(1, F):                         # F is small & static
        h = h + xe[:, f:f + 1] * ew[f][None, :]
    # h: (M, D) f32 running activation

    # ---- L gMLP layers; all layer weights are VMEM-resident ----
    def layer_body(l, h):
        y = _layer_norm(h, ln1_w_ref[l], ln1_b_ref[l])
        # fused Dense(D -> 2D): one full-width MXU matmul, bf16 / f32 acc
        uv = jnp.dot(y.astype(jnp.bfloat16), w1_ref[l],
                     preferred_element_type=jnp.float32) + b1_ref[l]
        # spatial gating unit -- v branch first (keeps u's live range short)
        v = _gelu_tanh(uv[:, D:])                 # lane-aligned slice
        v = _layer_norm(v, ln2_w_ref[l], ln2_b_ref[l])
        # spatial mix as ONE block-diagonal (M, M) @ (M, D) MXU matmul
        sv = jnp.dot(spb_w_ref[l], v.astype(jnp.bfloat16),
                     preferred_element_type=jnp.float32) + spb_b_ref[l]
        u = _gelu_tanh(uv[:, :D])
        g = u * sv                                # f32 gate
        # channel projection 2: Dense(D -> D) + residual
        y2 = jnp.dot(g.astype(jnp.bfloat16), w2_ref[l],
                     preferred_element_type=jnp.float32) + b2_ref[l]
        return h + y2

    h = jax.lax.fori_loop(0, n_layers, layer_body, h)

    # ---- regressor: LayerNorm(D) -> Linear(D -> 1) on the VPU ----
    hn = _layer_norm(h, reg_ln_w_ref[...], reg_ln_b_ref[...])
    out = jnp.sum(hn.reshape(TB, P, D) * reg_w_ref[...], axis=-1) + reg_b_ref[...]
    out_ref[...] = out


def gmlp_forward(x, params, *, batch_tile=None):
    B, P, F = x.shape
    D = params["emb_w"].shape[1]
    L = params["w1"].shape[0]

    if batch_tile is None:
        # Aim for M = TB*P >= 256 (MXU height on v6e/v7x) while keeping nb >= 1;
        # callers on v7x should ensure nb >= 2 so both TensorCores are used.
        batch_tile = B
        for cand in range(1, B + 1):
            if B % cand == 0 and cand * P >= 256 and (cand == B or cand % 8 == 0):
                batch_tile = cand
                break
    TB = batch_tile
    assert B % TB == 0, "batch must be divisible by batch_tile"
    assert TB == B or TB % 8 == 0, "batch_tile must be a sublane multiple"
    M = TB * P
    nb = B // TB

    # Pre-expand the (P, P) spatial weight to a block-diagonal (M, M) bf16
    # matrix (kron with I_TB) so the SGU is one lane-dense MXU matmul on the
    # flat (M, D) activations; tile the (P, 1) spatial bias to (M, 1).
    eye = jnp.eye(TB, dtype=jnp.float32)
    spb_w = jnp.einsum("ij,lpq->lipjq", eye, params["sp_w"]
                       ).reshape(L, M, M).astype(jnp.bfloat16)
    spb_b = jnp.tile(params["sp_b"], (1, TB, 1))          # (L, M, 1) f32

    def const(a):
        nd = a.ndim
        return pl.BlockSpec(a.shape, lambda b, _nd=nd: (0,) * _nd)

    in_specs = [
        pl.BlockSpec((TB, P, F), lambda b: (b, 0, 0)),     # x
        const(params["emb_w"]), const(params["emb_b"]),
        const(params["ln1_w"]), const(params["ln1_b"]),
        const(params["w1"]), const(params["b1"]),
        const(params["ln2_w"]), const(params["ln2_b"]),
        const(spb_w), const(spb_b),
        const(params["w2"]), const(params["b2"]),
        const(params["reg_ln_w"]), const(params["reg_ln_b"]),
        const(params["reg_w"]), const(params["reg_b"]),
    ]

    args = (x,
            params["emb_w"], params["emb_b"],
            params["ln1_w"], params["ln1_b"],
            params["w1"], params["b1"],
            params["ln2_w"], params["ln2_b"],
            spb_w, spb_b,
            params["w2"], params["b2"],
            params["reg_ln_w"], params["reg_ln_b"],
            params["reg_w"], params["reg_b"])

    out = pl.pallas_call(
        gmlp_kernel,
        out_shape=jax.ShapeDtypeStruct((B, P), jnp.float32),
        grid_spec=pltpu.PrefetchScalarGridSpec(
            num_scalar_prefetch=0,
            grid=(nb,),
            in_specs=in_specs,
            out_specs=pl.BlockSpec((TB, P), lambda b: (b, 0)),
        ),
        compiler_params=pltpu.CompilerParams(
            dimension_semantics=("parallel",),
            vmem_limit_bytes=32 * 1024 * 1024),
    )(*args)
    return out.reshape(B, P, 1)   # match the PyTorch module's output shape


def init_params(key, F, P, D, L):
    ks = jax.random.split(key, 8)

    def w(k, shape, fan_in, dtype=jnp.bfloat16):
        return (jax.random.normal(k, shape, jnp.float32)
                / np.sqrt(fan_in)).astype(dtype)

    return {
        # embedding stays f32 (VPU FMA path in the kernel)
        "emb_w": jax.random.normal(ks[0], (F, D), jnp.float32) / np.sqrt(F),
        "emb_b": jax.random.normal(ks[5], (1, D), jnp.float32) * 0.02,
        "ln1_w": jnp.ones((L, 1, D), jnp.float32),
        "ln1_b": jnp.zeros((L, 1, D), jnp.float32),
        # fused Dense(D -> 2D), stored pre-transposed (in, out), bf16 operands
        "w1": w(ks[1], (L, D, 2 * D), D),
        "b1": jnp.zeros((L, 1, 2 * D), jnp.float32),
        "ln2_w": jnp.ones((L, 1, D), jnp.float32),
        "ln2_b": jnp.zeros((L, 1, D), jnp.float32),
        "sp_w": jax.random.normal(ks[3], (L, P, P), jnp.float32) * 0.01,
        "sp_b": jnp.ones((L, P, 1), jnp.float32),   # gMLP: spatial bias init 1
        "w2": w(ks[4], (L, D, D), D),
        "b2": jax.random.normal(ks[6], (L, 1, D), jnp.float32) * 0.02,
        # regressor runs on the VPU in f32
        "reg_ln_w": jnp.ones((1, D), jnp.float32),
        "reg_ln_b": jnp.zeros((1, D), jnp.float32),
        "reg_w": jax.random.normal(ks[7], (1, D), jnp.float32) / np.sqrt(D),
        "reg_b": jnp.zeros((1, 1), jnp.float32),
    }


def gmlp_reference(x, params):
    """Plain-JAX reference mirroring the kernel math (eval mode, bf16 matmuls)."""
    L = params["w1"].shape[0]
    D = params["emb_w"].shape[1]
    h = jnp.einsum("bpf,fd->bpd", x, params["emb_w"],
                   precision=jax.lax.Precision.HIGHEST) + params["emb_b"]
    for l in range(L):
        res = h
        y = _layer_norm(h, params["ln1_w"][l], params["ln1_b"][l])
        uv = jnp.einsum("bpd,de->bpe", y.astype(jnp.bfloat16), params["w1"][l],
                        preferred_element_type=jnp.float32) + params["b1"][l]
        v = _gelu_tanh(uv[..., D:])
        v = _layer_norm(v, params["ln2_w"][l], params["ln2_b"][l])
        sv = jnp.einsum("pq,bqd->bpd", params["sp_w"][l].astype(jnp.bfloat16),
                        v.astype(jnp.bfloat16),
                        preferred_element_type=jnp.float32) + params["sp_b"][l]
        u = _gelu_tanh(uv[..., :D])
        g = u * sv
        y2 = jnp.einsum("bpd,de->bpe", g.astype(jnp.bfloat16), params["w2"][l],
                        preferred_element_type=jnp.float32) + params["b2"][l]
        h = res + y2
    hn = _layer_norm(h, params["reg_ln_w"], params["reg_ln_b"])
    return (jnp.sum(hn * params["reg_w"], axis=-1, keepdims=True)
            + params["reg_b"])


if __name__ == "__main__":
    # batch, num_patches, input_features, embedding_dim, num_layers
    B, P, F, D, L = 64, 8, 4, 128, 2
    TB = 32                     # M = TB*P = 256 rows per matmul; nb = 2
    key = jax.random.PRNGKey(0)
    kx, kp = jax.random.split(key)
    x = jax.random.normal(kx, (B, P, F), jnp.float32)
    params = init_params(kp, F, P, D, L)

    out = gmlp_forward(x, params, batch_tile=TB)
    jax.block_until_ready(out)

    ref = gmlp_reference(x, params)
    np.testing.assert_allclose(np.asarray(out), np.asarray(ref),
                               rtol=1e-2, atol=2e-3)
    assert out.shape == (B, P, 1)
    print("KERNEL_OK")
</pallas_src>

<mosaic_0001>
module attributes {stable_mosaic.version = 11 : i64} {
  func.func @gmlp_kernel(%arg0: i32, %arg1: memref<32x8x4xf32, #tpu.memory_space<vmem>>, %arg2: memref<4x128xf32, #tpu.memory_space<vmem>>, %arg3: memref<1x128xf32, #tpu.memory_space<vmem>>, %arg4: memref<2x1x128xf32, #tpu.memory_space<vmem>>, %arg5: memref<2x1x128xf32, #tpu.memory_space<vmem>>, %arg6: memref<2x128x256xbf16, #tpu.memory_space<vmem>>, %arg7: memref<2x1x256xf32, #tpu.memory_space<vmem>>, %arg8: memref<2x1x128xf32, #tpu.memory_space<vmem>>, %arg9: memref<2x1x128xf32, #tpu.memory_space<vmem>>, %arg10: memref<2x256x256xbf16, #tpu.memory_space<vmem>>, %arg11: memref<2x256x1xf32, #tpu.memory_space<vmem>>, %arg12: memref<2x128x128xbf16, #tpu.memory_space<vmem>>, %arg13: memref<2x1x128xf32, #tpu.memory_space<vmem>>, %arg14: memref<1x128xf32, #tpu.memory_space<vmem>>, %arg15: memref<1x128xf32, #tpu.memory_space<vmem>>, %arg16: memref<1x128xf32, #tpu.memory_space<vmem>>, %arg17: memref<1x1xf32, #tpu.memory_space<vmem>>, %arg18: memref<32x8xf32, #tpu.memory_space<vmem>>) attributes {dimension_semantics = [#tpu.dimension_semantics<parallel>], iteration_bounds = array<i64: 2>, scalar_prefetch = 0 : i64, scratch_operands = 0 : i64, tpu.core_type = #tpu.core_type<tc>, window_params = [{transform_indices = @transform_0, window_bounds = array<i64: 32, 8, 4>}, {pipeline_mode = #tpu.pipeline_mode<synchronous>, transform_indices = @transform_1, window_bounds = array<i64: 4, 128>}, {pipeline_mode = #tpu.pipeline_mode<synchronous>, transform_indices = @transform_2, window_bounds = array<i64: 1, 128>}, {pipeline_mode = #tpu.pipeline_mode<synchronous>, transform_indices = @transform_3, window_bounds = array<i64: 2, 1, 128>}, {pipeline_mode = #tpu.pipeline_mode<synchronous>, transform_indices = @transform_4, window_bounds = array<i64: 2, 1, 128>}, {pipeline_mode = #tpu.pipeline_mode<synchronous>, transform_indices = @transform_5, window_bounds = array<i64: 2, 128, 256>}, {pipeline_mode = #tpu.pipeline_mode<synchronous>, transform_indices = @transform_6, window_bounds = array<i64: 2, 1, 256>}, {pipeline_mode = #tpu.pipeline_mode<synchronous>, transform_indices = @transform_7, window_bounds = array<i64: 2, 1, 128>}, {pipeline_mode = #tpu.pipeline_mode<synchronous>, transform_indices = @transform_8, window_bounds = array<i64: 2, 1, 128>}, {pipeline_mode = #tpu.pipeline_mode<synchronous>, transform_indices = @transform_9, window_bounds = array<i64: 2, 256, 256>}, {pipeline_mode = #tpu.pipeline_mode<synchronous>, transform_indices = @transform_10, window_bounds = array<i64: 2, 256, 1>}, {pipeline_mode = #tpu.pipeline_mode<synchronous>, transform_indices = @transform_11, window_bounds = array<i64: 2, 128, 128>}, {pipeline_mode = #tpu.pipeline_mode<synchronous>, transform_indices = @transform_12, window_bounds = array<i64: 2, 1, 128>}, {pipeline_mode = #tpu.pipeline_mode<synchronous>, transform_indices = @transform_13, window_bounds = array<i64: 1, 128>}, {pipeline_mode = #tpu.pipeline_mode<synchronous>, transform_indices = @transform_14, window_bounds = array<i64: 1, 128>}, {pipeline_mode = #tpu.pipeline_mode<synchronous>, transform_indices = @transform_15, window_bounds = array<i64: 1, 128>}, {pipeline_mode = #tpu.pipeline_mode<synchronous>, transform_indices = @transform_16, window_bounds = array<i64: 1, 1>}, {transform_indices = @transform_17, window_bounds = array<i64: 32, 8>}]} {
    %c0 = arith.constant 0 : index
    %c0_0 = arith.constant 0 : index
    %c0_1 = arith.constant 0 : index
    %0 = vector.load %arg1[%c0, %c0_0, %c0_1] : memref<32x8x4xf32, #tpu.memory_space<vmem>>, vector<32x8x4xf32>
    %1 = vector.shape_cast %0 : vector<32x8x4xf32> to vector<256x4xf32>
    %c0_2 = arith.constant 0 : index
    %c0_3 = arith.constant 0 : index
    %2 = vector.load %arg2[%c0_2, %c0_3] : memref<4x128xf32, #tpu.memory_space<vmem>>, vector<4x128xf32>
    %3 = vector.extract_strided_slice %1 {offsets = [0, 0], sizes = [256, 1], strides = [1, 1]} : vector<256x4xf32> to vector<256x1xf32>
    %4 = vector.extract_strided_slice %2 {offsets = [0, 0], sizes = [1, 128], strides = [1, 1]} : vector<4x128xf32> to vector<1x128xf32>
    %5 = vector.shape_cast %4 : vector<1x128xf32> to vector<128xf32>
    %6 = vector.shape_cast %5 : vector<128xf32> to vector<1x128xf32>
    %7 = vector.broadcast %3 : vector<256x1xf32> to vector<256x128xf32>
    %8 = vector.broadcast %6 : vector<1x128xf32> to vector<256x128xf32>
    %9 = arith.mulf %7, %8 : vector<256x128xf32>
    %c0_4 = arith.constant 0 : index
    %c0_5 = arith.constant 0 : index
    %10 = vector.load %arg3[%c0_4, %c0_5] : memref<1x128xf32, #tpu.memory_space<vmem>>, vector<1x128xf32>
    %11 = vector.broadcast %10 : vector<1x128xf32> to vector<256x128xf32>
    %12 = arith.addf %9, %11 : vector<256x128xf32>
    %13 = vector.extract_strided_slice %1 {offsets = [0, 1], sizes = [256, 1], strides = [1, 1]} : vector<256x4xf32> to vector<256x1xf32>
    %14 = vector.extract_strided_slice %2 {offsets = [1, 0], sizes = [1, 128], strides = [1, 1]} : vector<4x128xf32> to vector<1x128xf32>
    %15 = vector.shape_cast %14 : vector<1x128xf32> to vector<128xf32>
    %16 = vector.shape_cast %15 : vector<128xf32> to vector<1x128xf32>
    %17 = vector.broadcast %13 : vector<256x1xf32> to vector<256x128xf32>
    %18 = vector.broadcast %16 : vector<1x128xf32> to vector<256x128xf32>
    %19 = arith.mulf %17, %18 : vector<256x128xf32>
    %20 = arith.addf %12, %19 : vector<256x128xf32>
    %21 = vector.extract_strided_slice %1 {offsets = [0, 2], sizes = [256, 1], strides = [1, 1]} : vector<256x4xf32> to vector<256x1xf32>
    %22 = vector.extract_strided_slice %2 {offsets = [2, 0], sizes = [1, 128], strides = [1, 1]} : vector<4x128xf32> to vector<1x128xf32>
    %23 = vector.shape_cast %22 : vector<1x128xf32> to vector<128xf32>
    %24 = vector.shape_cast %23 : vector<128xf32> to vector<1x128xf32>
    %25 = vector.broadcast %21 : vector<256x1xf32> to vector<256x128xf32>
    %26 = vector.broadcast %24 : vector<1x128xf32> to vector<256x128xf32>
    %27 = arith.mulf %25, %26 : vector<256x128xf32>
    %28 = arith.addf %20, %27 : vector<256x128xf32>
    %29 = vector.extract_strided_slice %1 {offsets = [0, 3], sizes = [256, 1], strides = [1, 1]} : vector<256x4xf32> to vector<256x1xf32>
    %30 = vector.extract_strided_slice %2 {offsets = [3, 0], sizes = [1, 128], strides = [1, 1]} : vector<4x128xf32> to vector<1x128xf32>
    %31 = vector.shape_cast %30 : vector<1x128xf32> to vector<128xf32>
    %32 = vector.shape_cast %31 : vector<128xf32> to vector<1x128xf32>
    %33 = vector.broadcast %29 : vector<256x1xf32> to vector<256x128xf32>
    %34 = vector.broadcast %32 : vector<1x128xf32> to vector<256x128xf32>
    %35 = arith.mulf %33, %34 : vector<256x128xf32>
    %36 = arith.addf %28, %35 : vector<256x128xf32>
    %c0_i32 = arith.constant 0 : i32
    %c2_i32 = arith.constant 2 : i32
    %37 = arith.addi %c0_i32, %c2_i32 : i32
    %c1_i32 = arith.constant 1 : i32
    %38 = scf.for %arg19 = %c0_i32 to %37 step %c1_i32 iter_args(%arg20 = %36) -> (vector<256x128xf32>)  : i32 {
      %73 = arith.index_cast %arg19 : i32 to index
      %c0_22 = arith.constant 0 : index
      %c0_23 = arith.constant 0 : index
      %74 = vector.load %arg4[%73, %c0_22, %c0_23] : memref<2x1x128xf32, #tpu.memory_space<vmem>>, vector<1x1x128xf32>
      %75 = vector.shape_cast %74 : vector<1x1x128xf32> to vector<1x128xf32>
      %76 = arith.index_cast %arg19 : i32 to index
      %c0_24 = arith.constant 0 : index
      %c0_25 = arith.constant 0 : index
      %77 = vector.load %arg5[%76, %c0_24, %c0_25] : memref<2x1x128xf32, #tpu.memory_space<vmem>>, vector<1x1x128xf32>
      %78 = vector.shape_cast %77 : vector<1x1x128xf32> to vector<1x128xf32>
      %cst_26 = arith.constant dense<0.000000e+00> : vector<256xf32>
      %79 = vector.multi_reduction <add>, %arg20, %cst_26 [1] : vector<256x128xf32> to vector<256xf32>
      %80 = vector.shape_cast %79 : vector<256xf32> to vector<256x1xf32>
      %cst_27 = arith.constant 1.280000e+02 : f32
      %81 = vector.broadcast %cst_27 : f32 to vector<256x1xf32>
      %82 = arith.divf %80, %81 : vector<256x1xf32>
      %83 = vector.broadcast %82 : vector<256x1xf32> to vector<256x128xf32>
      %84 = arith.subf %arg20, %83 : vector<256x128xf32>
      %85 = arith.mulf %84, %84 : vector<256x128xf32>
      %cst_28 = arith.constant dense<0.000000e+00> : vector<256xf32>
      %86 = vector.multi_reduction <add>, %85, %cst_28 [1] : vector<256x128xf32> to vector<256xf32>
      %87 = vector.shape_cast %86 : vector<256xf32> to vector<256x1xf32>
      %cst_29 = arith.constant 1.280000e+02 : f32
      %88 = vector.broadcast %cst_29 : f32 to vector<256x1xf32>
      %89 = arith.divf %87, %88 : vector<256x1xf32>
      %90 = vector.broadcast %82 : vector<256x1xf32> to vector<256x128xf32>
      %91 = arith.subf %arg20, %90 : vector<256x128xf32>
      %cst_30 = arith.constant 9.99999974E-6 : f32
      %92 = vector.broadcast %cst_30 : f32 to vector<256x1xf32>
      %93 = arith.addf %89, %92 : vector<256x1xf32>
      %94 = math.rsqrt %93 : vector<256x1xf32>
      %95 = vector.broadcast %94 : vector<256x1xf32> to vector<256x128xf32>
      %96 = arith.mulf %91, %95 : vector<256x128xf32>
      %97 = vector.broadcast %75 : vector<1x128xf32> to vector<256x128xf32>
      %98 = arith.mulf %96, %97 : vector<256x128xf32>
      %99 = vector.broadcast %78 : vector<1x128xf32> to vector<256x128xf32>
      %100 = arith.addf %98, %99 : vector<256x128xf32>
      %101 = arith.truncf %100 : vector<256x128xf32> to vector<256x128xbf16>
      %102 = arith.index_cast %arg19 : i32 to index
      %c0_31 = arith.constant 0 : index
      %c0_32 = arith.constant 0 : index
      %103 = vector.load %arg6[%102, %c0_31, %c0_32] : memref<2x128x256xbf16, #tpu.memory_space<vmem>>, vector<1x128x256xbf16>
      %104 = vector.shape_cast %103 : vector<1x128x256xbf16> to vector<128x256xbf16>
      %cst_33 = arith.constant dense<0.000000e+00> : vector<256x256xf32>
      %105 = tpu.matmul %101, %104, %cst_33 {dimension_numbers = #tpu.dot_dimension_numbers<[1], [0], [0], [1], [0, 0, 1, 1], [], []>} : vector<256x128xbf16>, vector<128x256xbf16>, vector<256x256xf32> -> vector<256x256xf32>
      %106 = arith.index_cast %arg19 : i32 to index
      %c0_34 = arith.constant 0 : index
      %c0_35 = arith.constant 0 : index
      %107 = vector.load %arg7[%106, %c0_34, %c0_35] : memref<2x1x256xf32, #tpu.memory_space<vmem>>, vector<1x1x256xf32>
      %108 = vector.shape_cast %107 : vector<1x1x256xf32> to vector<1x256xf32>
      %109 = vector.broadcast %108 : vector<1x256xf32> to vector<256x256xf32>
      %110 = arith.addf %105, %109 : vector<256x256xf32>
      %111 = vector.extract_strided_slice %110 {offsets = [0, 128], sizes = [256, 128], strides = [1, 1]} : vector<256x256xf32> to vector<256x128xf32>
      %cst_36 = arith.constant 0.636619746 : f32
      %112 = math.sqrt %cst_36 : f32
      %cst_37 = arith.constant 5.000000e-01 : f32
      %113 = vector.broadcast %cst_37 : f32 to vector<256x128xf32>
      %114 = arith.mulf %113, %111 : vector<256x128xf32>
      %cst_38 = arith.constant 4.471500e-02 : f32
      %115 = vector.broadcast %cst_38 : f32 to vector<256x128xf32>
      %116 = arith.mulf %115, %111 : vector<256x128xf32>
      %117 = arith.mulf %116, %111 : vector<256x128xf32>
      %118 = arith.mulf %117, %111 : vector<256x128xf32>
      %119 = arith.addf %111, %118 : vector<256x128xf32>
      %120 = vector.broadcast %112 : f32 to vector<256x128xf32>
      %121 = arith.mulf %120, %119 : vector<256x128xf32>
      %122 = math.tanh %121 : vector<256x128xf32>
      %cst_39 = arith.constant 1.000000e+00 : f32
      %123 = vector.broadcast %cst_39 : f32 to vector<256x128xf32>
      %124 = arith.addf %123, %122 : vector<256x128xf32>
      %125 = arith.mulf %114, %124 : vector<256x128xf32>
      %126 = arith.index_cast %arg19 : i32 to index
      %c0_40 = arith.constant 0 : index
      %c0_41 = arith.constant 0 : index
      %127 = vector.load %arg8[%126, %c0_40, %c0_41] : memref<2x1x128xf32, #tpu.memory_space<vmem>>, vector<1x1x128xf32>
      %128 = vector.shape_cast %127 : vector<1x1x128xf32> to vector<1x128xf32>
      %129 = arith.index_cast %arg19 : i32 to index
      %c0_42 = arith.constant 0 : index
      %c0_43 = arith.constant 0 : index
      %130 = vector.load %arg9[%129, %c0_42, %c0_43] : memref<2x1x128xf32, #tpu.memory_space<vmem>>, vector<1x1x128xf32>
      %131 = vector.shape_cast %130 : vector<1x1x128xf32> to vector<1x128xf32>
      %cst_44 = arith.constant dense<0.000000e+00> : vector<256xf32>
      %132 = vector.multi_reduction <add>, %125, %cst_44 [1] : vector<256x128xf32> to vector<256xf32>
      %133 = vector.shape_cast %132 : vector<256xf32> to vector<256x1xf32>
      %cst_45 = arith.constant 1.280000e+02 : f32
      %134 = vector.broadcast %cst_45 : f32 to vector<256x1xf32>
      %135 = arith.divf %133, %134 : vector<256x1xf32>
      %136 = vector.broadcast %135 : vector<256x1xf32> to vector<256x128xf32>
      %137 = arith.subf %125, %136 : vector<256x128xf32>
      %138 = arith.mulf %137, %137 : vector<256x128xf32>
      %cst_46 = arith.constant dense<0.000000e+00> : vector<256xf32>
      %139 = vector.multi_reduction <add>, %138, %cst_46 [1] : vector<256x128xf32> to vector<256xf32>
      %140 = vector.shape_cast %139 : vector<256xf32> to vector<256x1xf32>
      %cst_47 = arith.constant 1.280000e+02 : f32
      %141 = vector.broadcast %cst_47 : f32 to vector<256x1xf32>
      %142 = arith.divf %140, %141 : vector<256x1xf32>
      %143 = vector.broadcast %135 : vector<256x1xf32> to vector<256x128xf32>
      %144 = arith.subf %125, %143 : vector<256x128xf32>
      %cst_48 = arith.constant 9.99999974E-6 : f32
      %145 = vector.broadcast %cst_48 : f32 to vector<256x1xf32>
      %146 = arith.addf %142, %145 : vector<256x1xf32>
      %147 = math.rsqrt %146 : vector<256x1xf32>
      %148 = vector.broadcast %147 : vector<256x1xf32> to vector<256x128xf32>
      %149 = arith.mulf %144, %148 : vector<256x128xf32>
      %150 = vector.broadcast %128 : vector<1x128xf32> to vector<256x128xf32>
      %151 = arith.mulf %149, %150 : vector<256x128xf32>
      %152 = vector.broadcast %131 : vector<1x128xf32> to vector<256x128xf32>
      %153 = arith.addf %151, %152 : vector<256x128xf32>
      %154 = arith.index_cast %arg19 : i32 to index
      %c0_49 = arith.constant 0 : index
      %c0_50 = arith.constant 0 : index
      %155 = vector.load %arg10[%154, %c0_49, %c0_50] : memref<2x256x256xbf16, #tpu.memory_space<vmem>>, vector<1x256x256xbf16>
      %156 = vector.shape_cast %155 : vector<1x256x256xbf16> to vector<256x256xbf16>
      %157 = arith.truncf %153 : vector<256x128xf32> to vector<256x128xbf16>
      %cst_51 = arith.constant dense<0.000000e+00> : vector<256x128xf32>
      %158 = tpu.matmul %156, %157, %cst_51 {dimension_numbers = #tpu.dot_dimension_numbers<[1], [0], [0], [1], [0, 0, 1, 1], [], []>} : vector<256x256xbf16>, vector<256x128xbf16>, vector<256x128xf32> -> vector<256x128xf32>
      %159 = arith.index_cast %arg19 : i32 to index
      %c0_52 = arith.constant 0 : index
      %c0_53 = arith.constant 0 : index
      %160 = vector.load %arg11[%159, %c0_52, %c0_53] : memref<2x256x1xf32, #tpu.memory_space<vmem>>, vector<1x256x1xf32>
      %161 = vector.shape_cast %160 : vector<1x256x1xf32> to vector<256x1xf32>
      %162 = vector.broadcast %161 : vector<256x1xf32> to vector<256x128xf32>
      %163 = arith.addf %158, %162 : vector<256x128xf32>
      %164 = vector.extract_strided_slice %110 {offsets = [0, 0], sizes = [256, 128], strides = [1, 1]} : vector<256x256xf32> to vector<256x128xf32>
      %cst_54 = arith.constant 0.636619746 : f32
      %165 = math.sqrt %cst_54 : f32
      %cst_55 = arith.constant 5.000000e-01 : f32
      %166 = vector.broadcast %cst_55 : f32 to vector<256x128xf32>
      %167 = arith.mulf %166, %164 : vector<256x128xf32>
      %cst_56 = arith.constant 4.471500e-02 : f32
      %168 = vector.broadcast %cst_56 : f32 to vector<256x128xf32>
      %169 = arith.mulf %168, %164 : vector<256x128xf32>
      %170 = arith.mulf %169, %164 : vector<256x128xf32>
      %171 = arith.mulf %170, %164 : vector<256x128xf32>
      %172 = arith.addf %164, %171 : vector<256x128xf32>
      %173 = vector.broadcast %165 : f32 to vector<256x128xf32>
      %174 = arith.mulf %173, %172 : vector<256x128xf32>
      %175 = math.tanh %174 : vector<256x128xf32>
      %cst_57 = arith.constant 1.000000e+00 : f32
      %176 = vector.broadcast %cst_57 : f32 to vector<256x128xf32>
      %177 = arith.addf %176, %175 : vector<256x128xf32>
      %178 = arith.mulf %167, %177 : vector<256x128xf32>
      %179 = arith.mulf %178, %163 : vector<256x128xf32>
      %180 = arith.truncf %179 : vector<256x128xf32> to vector<256x128xbf16>
      %181 = arith.index_cast %arg19 : i32 to index
      %c0_58 = arith.constant 0 : index
      %c0_59 = arith.constant 0 : index
      %182 = vector.load %arg12[%181, %c0_58, %c0_59] : memref<2x128x128xbf16, #tpu.memory_space<vmem>>, vector<1x128x128xbf16>
      %183 = vector.shape_cast %182 : vector<1x128x128xbf16> to vector<128x128xbf16>
      %cst_60 = arith.constant dense<0.000000e+00> : vector<256x128xf32>
      %184 = tpu.matmul %180, %183, %cst_60 {dimension_numbers = #tpu.dot_dimension_numbers<[1], [0], [0], [1], [0, 0, 1, 1], [], []>} : vector<256x128xbf16>, vector<128x128xbf16>, vector<256x128xf32> -> vector<256x128xf32>
      %185 = arith.index_cast %arg19 : i32 to index
      %c0_61 = arith.constant 0 : index
      %c0_62 = arith.constant 0 : index
      %186 = vector.load %arg13[%185, %c0_61, %c0_62] : memref<2x1x128xf32, #tpu.memory_space<vmem>>, vector<1x1x128xf32>
      %187 = vector.shape_cast %186 : vector<1x1x128xf32> to vector<1x128xf32>
      %188 = vector.broadcast %187 : vector<1x128xf32> to vector<256x128xf32>
      %189 = arith.addf %184, %188 : vector<256x128xf32>
      %190 = arith.addf %arg20, %189 : vector<256x128xf32>
      scf.yield %190 : vector<256x128xf32>
    }
    %c2_i32_6 = arith.constant 2 : i32
    %c0_7 = arith.constant 0 : index
    %c0_8 = arith.constant 0 : index
    %39 = vector.load %arg14[%c0_7, %c0_8] : memref<1x128xf32, #tpu.memory_space<vmem>>, vector<1x128xf32>
    %c0_9 = arith.constant 0 : index
    %c0_10 = arith.constant 0 : index
    %40 = vector.load %arg15[%c0_9, %c0_10] : memref<1x128xf32, #tpu.memory_space<vmem>>, vector<1x128xf32>
    %cst = arith.constant dense<0.000000e+00> : vector<256xf32>
    %41 = vector.multi_reduction <add>, %38, %cst [1] : vector<256x128xf32> to vector<256xf32>
    %42 = vector.shape_cast %41 : vector<256xf32> to vector<256x1xf32>
    %cst_11 = arith.constant 1.280000e+02 : f32
    %43 = vector.broadcast %cst_11 : f32 to vector<256x1xf32>
    %44 = arith.divf %42, %43 : vector<256x1xf32>
    %45 = vector.broadcast %44 : vector<256x1xf32> to vector<256x128xf32>
    %46 = arith.subf %38, %45 : vector<256x128xf32>
    %47 = arith.mulf %46, %46 : vector<256x128xf32>
    %cst_12 = arith.constant dense<0.000000e+00> : vector<256xf32>
    %48 = vector.multi_reduction <add>, %47, %cst_12 [1] : vector<256x128xf32> to vector<256xf32>
    %49 = vector.shape_cast %48 : vector<256xf32> to vector<256x1xf32>
    %cst_13 = arith.constant 1.280000e+02 : f32
    %50 = vector.broadcast %cst_13 : f32 to vector<256x1xf32>
    %51 = arith.divf %49, %50 : vector<256x1xf32>
    %52 = vector.broadcast %44 : vector<256x1xf32> to vector<256x128xf32>
    %53 = arith.subf %38, %52 : vector<256x128xf32>
    %cst_14 = arith.constant 9.99999974E-6 : f32
    %54 = vector.broadcast %cst_14 : f32 to vector<256x1xf32>
    %55 = arith.addf %51, %54 : vector<256x1xf32>
    %56 = math.rsqrt %55 : vector<256x1xf32>
    %57 = vector.broadcast %56 : vector<256x1xf32> to vector<256x128xf32>
    %58 = arith.mulf %53, %57 : vector<256x128xf32>
    %59 = vector.broadcast %39 : vector<1x128xf32> to vector<256x128xf32>
    %60 = arith.mulf %58, %59 : vector<256x128xf32>
    %61 = vector.broadcast %40 : vector<1x128xf32> to vector<256x128xf32>
    %62 = arith.addf %60, %61 : vector<256x128xf32>
    %63 = vector.shape_cast %62 : vector<256x128xf32> to vector<32x8x128xf32>
    %c0_15 = arith.constant 0 : index
    %c0_16 = arith.constant 0 : index
    %64 = vector.load %arg16[%c0_15, %c0_16] : memref<1x128xf32, #tpu.memory_space<vmem>>, vector<1x128xf32>
    %65 = vector.shape_cast %64 : vector<1x128xf32> to vector<1x1x128xf32>
    %66 = vector.broadcast %65 : vector<1x1x128xf32> to vector<32x8x128xf32>
    %67 = arith.mulf %63, %66 : vector<32x8x128xf32>
    %cst_17 = arith.constant dense<0.000000e+00> : vector<32x8xf32>
    %68 = vector.multi_reduction <add>, %67, %cst_17 [2] : vector<32x8x128xf32> to vector<32x8xf32>
    %c0_18 = arith.constant 0 : index
    %c0_19 = arith.constant 0 : index
    %69 = vector.load %arg17[%c0_18, %c0_19] : memref<1x1xf32, #tpu.memory_space<vmem>>, vector<1x1xf32>
    %70 = vector.broadcast %69 : vector<1x1xf32> to vector<32x8xf32>
    %71 = arith.addf %68, %70 : vector<32x8xf32>
    %c0_20 = arith.constant 0 : index
    %c0_21 = arith.constant 0 : index
    %72 = vector.load %arg18[%c0_20, %c0_21] : memref<32x8xf32, #tpu.memory_space<vmem>>, vector<32x8xf32>
    tpu.vector_store %arg18[%c0_20, %c0_21], %71 {strides = array<i32>} : memref<32x8xf32, #tpu.memory_space<vmem>>, vector<32x8xf32>,
    return
  }
  func.func @transform_0(%arg0: i32) -> (i32, i32, i32) {
    %c0_i32 = arith.constant 0 : i32
    %c0_i32_0 = arith.constant 0 : i32
    %c0_i32_1 = arith.constant 0 : i32
    return %arg0, %c0_i32, %c0_i32_0 : i32, i32, i32
  }
  func.func @transform_1(%arg0: i32) -> (i32, i32) {
    %c0_i32 = arith.constant 0 : i32
    %c0_i32_0 = arith.constant 0 : i32
    %c0_i32_1 = arith.constant 0 : i32
    return %c0_i32, %c0_i32_0 : i32, i32
  }
  func.func @transform_2(%arg0: i32) -> (i32, i32) {
    %c0_i32 = arith.constant 0 : i32
    %c0_i32_0 = arith.constant 0 : i32
    %c0_i32_1 = arith.constant 0 : i32
    return %c0_i32, %c0_i32_0 : i32, i32
  }
  func.func @transform_3(%arg0: i32) -> (i32, i32, i32) {
    %c0_i32 = arith.constant 0 : i32
    %c0_i32_0 = arith.constant 0 : i32
    %c0_i32_1 = arith.constant 0 : i32
    %c0_i32_2 = arith.constant 0 : i32
    return %c0_i32, %c0_i32_0, %c0_i32_1 : i32, i32, i32
  }
  func.func @transform_4(%arg0: i32) -> (i32, i32, i32) {
    %c0_i32 = arith.constant 0 : i32
    %c0_i32_0 = arith.constant 0 : i32
    %c0_i32_1 = arith.constant 0 : i32
    %c0_i32_2 = arith.constant 0 : i32
    return %c0_i32, %c0_i32_0, %c0_i32_1 : i32, i32, i32
  }
  func.func @transform_5(%arg0: i32) -> (i32, i32, i32) {
    %c0_i32 = arith.constant 0 : i32
    %c0_i32_0 = arith.constant 0 : i32
    %c0_i32_1 = arith.constant 0 : i32
    %c0_i32_2 = arith.constant 0 : i32
    return %c0_i32, %c0_i32_0, %c0_i32_1 : i32, i32, i32
  }
  func.func @transform_6(%arg0: i32) -> (i32, i32, i32) {
    %c0_i32 = arith.constant 0 : i32
    %c0_i32_0 = arith.constant 0 : i32
    %c0_i32_1 = arith.constant 0 : i32
    %c0_i32_2 = arith.constant 0 : i32
    return %c0_i32, %c0_i32_0, %c0_i32_1 : i32, i32, i32
  }
  func.func @transform_7(%arg0: i32) -> (i32, i32, i32) {
    %c0_i32 = arith.constant 0 : i32
    %c0_i32_0 = arith.constant 0 : i32
    %c0_i32_1 = arith.constant 0 : i32
    %c0_i32_2 = arith.constant 0 : i32
    return %c0_i32, %c0_i32_0, %c0_i32_1 : i32, i32, i32
  }
  func.func @transform_8(%arg0: i32) -> (i32, i32, i32) {
    %c0_i32 = arith.constant 0 : i32
    %c0_i32_0 = arith.constant 0 : i32
    %c0_i32_1 = arith.constant 0 : i32
    %c0_i32_2 = arith.constant 0 : i32
    return %c0_i32, %c0_i32_0, %c0_i32_1 : i32, i32, i32
  }
  func.func @transform_9(%arg0: i32) -> (i32, i32, i32) {
    %c0_i32 = arith.constant 0 : i32
    %c0_i32_0 = arith.constant 0 : i32
    %c0_i32_1 = arith.constant 0 : i32
    %c0_i32_2 = arith.constant 0 : i32
    return %c0_i32, %c0_i32_0, %c0_i32_1 : i32, i32, i32
  }
  func.func @transform_10(%arg0: i32) -> (i32, i32, i32) {
    %c0_i32 = arith.constant 0 : i32
    %c0_i32_0 = arith.constant 0 : i32
    %c0_i32_1 = arith.constant 0 : i32
    %c0_i32_2 = arith.constant 0 : i32
    return %c0_i32, %c0_i32_0, %c0_i32_1 : i32, i32, i32
  }
  func.func @transform_11(%arg0: i32) -> (i32, i32, i32) {
    %c0_i32 = arith.constant 0 : i32
    %c0_i32_0 = arith.constant 0 : i32
    %c0_i32_1 = arith.constant 0 : i32
    %c0_i32_2 = arith.constant 0 : i32
    return %c0_i32, %c0_i32_0, %c0_i32_1 : i32, i32, i32
  }
  func.func @transform_12(%arg0: i32) -> (i32, i32, i32) {
    %c0_i32 = arith.constant 0 : i32
    %c0_i32_0 = arith.constant 0 : i32
    %c0_i32_1 = arith.constant 0 : i32
    %c0_i32_2 = arith.constant 0 : i32
    return %c0_i32, %c0_i32_0, %c0_i32_1 : i32, i32, i32
  }
  func.func @transform_13(%arg0: i32) -> (i32, i32) {
    %c0_i32 = arith.constant 0 : i32
    %c0_i32_0 = arith.constant 0 : i32
    %c0_i32_1 = arith.constant 0 : i32
    return %c0_i32, %c0_i32_0 : i32, i32
  }
  func.func @transform_14(%arg0: i32) -> (i32, i32) {
    %c0_i32 = arith.constant 0 : i32
    %c0_i32_0 = arith.constant 0 : i32
    %c0_i32_1 = arith.constant 0 : i32
    return %c0_i32, %c0_i32_0 : i32, i32
  }
  func.func @transform_15(%arg0: i32) -> (i32, i32) {
    %c0_i32 = arith.constant 0 : i32
    %c0_i32_0 = arith.constant 0 : i32
    %c0_i32_1 = arith.constant 0 : i32
    return %c0_i32, %c0_i32_0 : i32, i32
  }
  func.func @transform_16(%arg0: i32) -> (i32, i32) {
    %c0_i32 = arith.constant 0 : i32
    %c0_i32_0 = arith.constant 0 : i32
    %c0_i32_1 = arith.constant 0 : i32
    return %c0_i32, %c0_i32_0 : i32, i32
  }
  func.func @transform_17(%arg0: i32) -> (i32, i32) {
    %c0_i32 = arith.constant 0 : i32
    %c0_i32_0 = arith.constant 0 : i32
    return %arg0, %c0_i32 : i32, i32
  }
}

</mosaic_0001>

<llo_original>
// kernel: tpu_custom_call.1
$region0: #{tpu_custom_call.1}
  #allocation0 [shape = 'u32[]', space=smem, size = 0x4, offset = 0x4, fixed_abs, tag = 'smem constant byte address 0x4 - core index']
  #allocation1 [shape = 'u32[144,128]{1,0:T(1,128)}', space=vmem, size = 0x12000, scoped, tag = 'internal scratch']
  #allocation2 [shape = 'f32[1,1]{1,0:T(1,128)S(1)}', space=vmem, size = 0x200, scoped, tag = 'scoped memory for tpu_custom_call.1']
  %s0 = inlined_call_operand.vmem [shape: f32[64,8,4], index: 0, kind: input, shape index: {}]
  %s1 = inlined_call_operand.vmem [shape: f32[4,128], index: 1, kind: input, shape index: {}]
  %s2 = inlined_call_operand.vmem [shape: f32[1,128], index: 2, kind: input, shape index: {}]
  %s3 = inlined_call_operand.vmem [shape: f32[2,1,128], index: 3, kind: input, shape index: {}]
  %s4 = inlined_call_operand.vmem [shape: f32[2,1,128], index: 4, kind: input, shape index: {}]
  %s5 = inlined_call_operand.vmem [shape: bf16[2,128,256], index: 5, kind: input, shape index: {}]
  %s6 = inlined_call_operand.vmem [shape: f32[2,1,256], index: 6, kind: input, shape index: {}]
  %s7 = inlined_call_operand.vmem [shape: f32[2,1,128], index: 7, kind: input, shape index: {}]
  %s8 = inlined_call_operand.vmem [shape: f32[2,1,128], index: 8, kind: input, shape index: {}]
  %s9 = inlined_call_operand.vmem [shape: bf16[2,256,256], index: 9, kind: input, shape index: {}]
  %s10 = inlined_call_operand.vmem [shape: f32[2,256,1], index: 10, kind: input, shape index: {}]
  %s11 = inlined_call_operand.vmem [shape: bf16[2,128,128], index: 11, kind: input, shape index: {}]
  %s12 = inlined_call_operand.vmem [shape: f32[2,1,128], index: 12, kind: input, shape index: {}]
  %s13 = inlined_call_operand.vmem [shape: f32[1,128], index: 13, kind: input, shape index: {}]
  %s14 = inlined_call_operand.vmem [shape: f32[1,128], index: 14, kind: input, shape index: {}]
  %s15 = inlined_call_operand.vmem [shape: f32[1,128], index: 15, kind: input, shape index: {}]
  %s16 = inlined_call_operand.<no memory space> [shape: f32[1,1], index: 16, kind: input, shape index: {}]
  %s17 = inlined_call_operand.vmem [shape: f32[64,8], index: 17, kind: output, shape index: {}]
  %s18 = sld [smem:[#allocation0]]
  $region108: #{tpu_custom_call.1} parent=0
    _
  %s20 = ssub.s32 1, %s18
  %s21 = scalar_select 0, %s20, %s18
  %v22 = vstv %s16
  %23 = vst [vmem:[#allocation2] sm:$0x1] %v22
  loop: start=0, step=1, limit=4
  $region2: #{tpu_custom_call.1} parent=0 // loop_pre_header
    _
  $region3: #{tpu_custom_call.1} parent=0 // loop_header
    %s25 = sphi 0, %s29
    %p26 = scmp.ge.s32.totalorder %s25, 4
    %s35 = sphi 0, %s37
    %s38 = sphi 0, %s35
    %s39 = sphi 0, %s38
    %s55 = sphi 0, %s39
    %s59 = sphi 0, %s59
    %s61 = sphi 0, %s59
    %s62 = sphi 0, %s61
    %s76 = sphi 0, %s62
    %s80 = sphi 0, %s80
    %s82 = sphi 0, %s80
    %s83 = sphi 0, %s82
    %s97 = sphi 0, %s83
    %s101 = sphi 0, %s101
    %s103 = sphi 0, %s101
    %s104 = sphi 0, %s103
    %s118 = sphi 0, %s104
    %s122 = sphi 0, %s122
    %s124 = sphi 0, %s122
    %s125 = sphi 0, %s124
    %s139 = sphi 0, %s125
    %s143 = sphi 0, %s143
    %s145 = sphi 0, %s143
    %s146 = sphi 0, %s145
    %s160 = sphi 0, %s146
    %s164 = sphi 0, %s164
    %s166 = sphi 0, %s164
    %s167 = sphi 0, %s166
    %s181 = sphi 0, %s167
    %s185 = sphi 0, %s185
    %s187 = sphi 0, %s185
    %s188 = sphi 0, %s187
    %s202 = sphi 0, %s188
    %s206 = sphi 0, %s206
    %s208 = sphi 0, %s206
    %s209 = sphi 0, %s208
    %s223 = sphi 0, %s209
    %s227 = sphi 0, %s227
    %s229 = sphi 0, %s227
    %s230 = sphi 0, %s229
    %s244 = sphi 0, %s230
    %s248 = sphi 0, %s248
    %s250 = sphi 0, %s248
    %s251 = sphi 0, %s250
    %s265 = sphi 0, %s251
    %s269 = sphi 0, %s269
    %s271 = sphi 0, %s269
    %s272 = sphi 0, %s271
    %s286 = sphi 0, %s272
    %s290 = sphi 0, %s290
    %s292 = sphi 0, %s290
    %s293 = sphi 0, %s292
    %s307 = sphi 0, %s293
    %s311 = sphi 0, %s311
    %s313 = sphi 0, %s311
    %s314 = sphi 0, %s313
    %s328 = sphi 0, %s314
    %s332 = sphi 0, %s332
    %s334 = sphi 0, %s332
    %s335 = sphi 0, %s334
    %s349 = sphi 0, %s335
    %s353 = sphi 0, %s353
    %s355 = sphi 0, %s353
    %s356 = sphi 0, %s355
    %s370 = sphi 0, %s356
    %s374 = sphi 0, %s374
    %s376 = sphi 0, %s374
    %s377 = sphi 0, %s376
    %s391 = sphi 0, %s377
    %s397 = sphi 0, %s399
    %s400 = sphi 0, %s397
    %s401 = sphi 0, %s400
    %s417 = sphi 0, %s401
  $region4: #{tpu_custom_call.1} parent=0 // loop_header_branch
    %28 = sbr.rel (%p26) target = $region8
  $region5: #{tpu_custom_call.1} parent=0 // loop_body
    %s30 = ssub.s32 %s25, 1
    %s31 = ssub.s32 %s25, 2
    %s32 = sadd.s32 %s25, 1
    %s33 = ssub.s32 %s25, %s32
    %p34 = scmp.eq.s32.totalorder %s33, 0
    %s36 = sadd.s32 %s35, 1
    %s37 = scalar_select %p34, %s35, %s36
    %p40 = pneg %p34
    %p41 = scmp.eq.s32.totalorder %s25, 1
    %p42 = por %p40, %p41
    %p43 = scmp.ne.s32.totalorder %s35, %s38
    %p44 = scmp.eq.s32.totalorder %s25, 0
    %p45 = por %p43, %p44
    %p46 = scmp.ne.s32.totalorder %s35, %s38
    %p47 = scmp.eq.s32.totalorder %s30, 1
    %p48 = por %p46, %p47
    %p49 = scmp.ne.s32.totalorder %s38, %s39
    %p50 = scmp.eq.s32.totalorder %s30, 0
    %p51 = por %p49, %p50
    %p52 = scmp.ne.s32.totalorder %s38, %s39
    %p53 = scmp.eq.s32.totalorder %s31, 1
    %p54 = por %p52, %p53
    %p56 = scmp.ne.s32.totalorder %s39, %s55
    %p57 = scmp.eq.s32.totalorder %s31, 0
    %p58 = por %p56, %p57
    %s60 = sadd.s32 %s59, 1
    %p63 = scmp.eq.s32.totalorder %s25, 1
    %p64 = scmp.ne.s32.totalorder %s59, %s61
    %p65 = scmp.eq.s32.totalorder %s25, 0
    %p66 = por %p64, %p65
    %p67 = scmp.ne.s32.totalorder %s59, %s61
    %p68 = scmp.eq.s32.totalorder %s30, 1
    %p69 = por %p67, %p68
    %p70 = scmp.ne.s32.totalorder %s61, %s62
    %p71 = scmp.eq.s32.totalorder %s30, 0
    %p72 = por %p70, %p71
    %p73 = scmp.ne.s32.totalorder %s61, %s62
    %p74 = scmp.eq.s32.totalorder %s31, 1
    %p75 = por %p73, %p74
    %p77 = scmp.ne.s32.totalorder %s62, %s76
    %p78 = scmp.eq.s32.totalorder %s31, 0
    %p79 = por %p77, %p78
    %s81 = sadd.s32 %s80, 1
    %p84 = scmp.eq.s32.totalorder %s25, 1
    %p85 = scmp.ne.s32.totalorder %s80, %s82
    %p86 = scmp.eq.s32.totalorder %s25, 0
    %p87 = por %p85, %p86
    %p88 = scmp.ne.s32.totalorder %s80, %s82
    %p89 = scmp.eq.s32.totalorder %s30, 1
    %p90 = por %p88, %p89
    %p91 = scmp.ne.s32.totalorder %s82, %s83
    %p92 = scmp.eq.s32.totalorder %s30, 0
    %p93 = por %p91, %p92
    %p94 = scmp.ne.s32.totalorder %s82, %s83
    %p95 = scmp.eq.s32.totalorder %s31, 1
    %p96 = por %p94, %p95
    %p98 = scmp.ne.s32.totalorder %s83, %s97
    %p99 = scmp.eq.s32.totalorder %s31, 0
    %p100 = por %p98, %p99
    %s102 = sadd.s32 %s101, 1
    %p105 = scmp.eq.s32.totalorder %s25, 1
    %p106 = scmp.ne.s32.totalorder %s101, %s103
    %p107 = scmp.eq.s32.totalorder %s25, 0
    %p108 = por %p106, %p107
    %p109 = scmp.ne.s32.totalorder %s101, %s103
    %p110 = scmp.eq.s32.totalorder %s30, 1
    %p111 = por %p109, %p110
    %p112 = scmp.ne.s32.totalorder %s103, %s104
    %p113 = scmp.eq.s32.totalorder %s30, 0
    %p114 = por %p112, %p113
    %p115 = scmp.ne.s32.totalorder %s103, %s104
    %p116 = scmp.eq.s32.totalorder %s31, 1
    %p117 = por %p115, %p116
    %p119 = scmp.ne.s32.totalorder %s104, %s118
    %p120 = scmp.eq.s32.totalorder %s31, 0
    %p121 = por %p119, %p120
    %s123 = sadd.s32 %s122, 1
    %p126 = scmp.eq.s32.totalorder %s25, 1
    %p127 = scmp.ne.s32.totalorder %s122, %s124
    %p128 = scmp.eq.s32.totalorder %s25, 0
    %p129 = por %p127, %p128
    %p130 = scmp.ne.s32.totalorder %s122, %s124
    %p131 = scmp.eq.s32.totalorder %s30, 1
    %p132 = por %p130, %p131
    %p133 = scmp.ne.s32.totalorder %s124, %s125
    %p134 = scmp.eq.s32.totalorder %s30, 0
    %p135 = por %p133, %p134
    %p136 = scmp.ne.s32.totalorder %s124, %s125
    %p137 = scmp.eq.s32.totalorder %s31, 1
    %p138 = por %p136, %p137
    %p140 = scmp.ne.s32.totalorder %s125, %s139
    %p141 = scmp.eq.s32.totalorder %s31, 0
    %p142 = por %p140, %p141
    %s144 = sadd.s32 %s143, 1
    %p147 = scmp.eq.s32.totalorder %s25, 1
    %p148 = scmp.ne.s32.totalorder %s143, %s145
    %p149 = scmp.eq.s32.totalorder %s25, 0
    %p150 = por %p148, %p149
    %p151 = scmp.ne.s32.totalorder %s143, %s145
    %p152 = scmp.eq.s32.totalorder %s30, 1
    %p153 = por %p151, %p152
    %p154 = scmp.ne.s32.totalorder %s145, %s146
    %p155 = scmp.eq.s32.totalorder %s30, 0
    %p156 = por %p154, %p155
    %p157 = scmp.ne.s32.totalorder %s145, %s146
    %p158 = scmp.eq.s32.totalorder %s31, 1
    %p159 = por %p157, %p158
    %p161 = scmp.ne.s32.totalorder %s146, %s160
    %p162 = scmp.eq.s32.totalorder %s31, 0
    %p163 = por %p161, %p162
    %s165 = sadd.s32 %s164, 1
    %p168 = scmp.eq.s32.totalorder %s25, 1
    %p169 = scmp.ne.s32.totalorder %s164, %s166
    %p170 = scmp.eq.s32.totalorder %s25, 0
    %p171 = por %p169, %p170
    %p172 = scmp.ne.s32.totalorder %s164, %s166
    %p173 = scmp.eq.s32.totalorder %s30, 1
    %p174 = por %p172, %p173
    %p175 = scmp.ne.s32.totalorder %s166, %s167
    %p176 = scmp.eq.s32.totalorder %s30, 0
    %p177 = por %p175, %p176
    %p178 = scmp.ne.s32.totalorder %s166, %s167
    %p179 = scmp.eq.s32.totalorder %s31, 1
    %p180 = por %p178, %p179
    %p182 = scmp.ne.s32.totalorder %s167, %s181
    %p183 = scmp.eq.s32.totalorder %s31, 0
    %p184 = por %p182, %p183
    %s186 = sadd.s32 %s185, 1
    %p189 = scmp.eq.s32.totalorder %s25, 1
    %p190 = scmp.ne.s32.totalorder %s185, %s187
    %p191 = scmp.eq.s32.totalorder %s25, 0
    %p192 = por %p190, %p191
    %p193 = scmp.ne.s32.totalorder %s185, %s187
    %p194 = scmp.eq.s32.totalorder %s30, 1
    %p195 = por %p193, %p194
    %p196 = scmp.ne.s32.totalorder %s187, %s188
    %p197 = scmp.eq.s32.totalorder %s30, 0
    %p198 = por %p196, %p197
    %p199 = scmp.ne.s32.totalorder %s187, %s188
    %p200 = scmp.eq.s32.totalorder %s31, 1
    %p201 = por %p199, %p200
    %p203 = scmp.ne.s32.totalorder %s188, %s202
    %p204 = scmp.eq.s32.totalorder %s31, 0
    %p205 = por %p203, %p204
    %s207 = sadd.s32 %s206, 1
    %p210 = scmp.eq.s32.totalorder %s25, 1
    %p211 = scmp.ne.s32.totalorder %s206, %s208
    %p212 = scmp.eq.s32.totalorder %s25, 0
    %p213 = por %p211, %p212
    %p214 = scmp.ne.s32.totalorder %s206, %s208
    %p215 = scmp.eq.s32.totalorder %s30, 1
    %p216 = por %p214, %p215
    %p217 = scmp.ne.s32.totalorder %s208, %s209
    %p218 = scmp.eq.s32.totalorder %s30, 0
    %p219 = por %p217, %p218
    %p220 = scmp.ne.s32.totalorder %s208, %s209
    %p221 = scmp.eq.s32.totalorder %s31, 1
    %p222 = por %p220, %p221
    %p224 = scmp.ne.s32.totalorder %s209, %s223
    %p225 = scmp.eq.s32.totalorder %s31, 0
    %p226 = por %p224, %p225
    %s228 = sadd.s32 %s227, 1
    %p231 = scmp.eq.s32.totalorder %s25, 1
    %p232 = scmp.ne.s32.totalorder %s227, %s229
    %p233 = scmp.eq.s32.totalorder %s25, 0
    %p234 = por %p232, %p233
    %p235 = scmp.ne.s32.totalorder %s227, %s229
    %p236 = scmp.eq.s32.totalorder %s30, 1
    %p237 = por %p235, %p236
    %p238 = scmp.ne.s32.totalorder %s229, %s230
    %p239 = scmp.eq.s32.totalorder %s30, 0
    %p240 = por %p238, %p239
    %p241 = scmp.ne.s32.totalorder %s229, %s230
    %p242 = scmp.eq.s32.totalorder %s31, 1
    %p243 = por %p241, %p242
    %p245 = scmp.ne.s32.totalorder %s230, %s244
    %p246 = scmp.eq.s32.totalorder %s31, 0
    %p247 = por %p245, %p246
    %s249 = sadd.s32 %s248, 1
    %p252 = scmp.eq.s32.totalorder %s25, 1
    %p253 = scmp.ne.s32.totalorder %s248, %s250
    %p254 = scmp.eq.s32.totalorder %s25, 0
    %p255 = por %p253, %p254
    %p256 = scmp.ne.s32.totalorder %s248, %s250
    %p257 = scmp.eq.s32.totalorder %s30, 1
    %p258 = por %p256, %p257
    %p259 = scmp.ne.s32.totalorder %s250, %s251
    %p260 = scmp.eq.s32.totalorder %s30, 0
    %p261 = por %p259, %p260
    %p262 = scmp.ne.s32.totalorder %s250, %s251
    %p263 = scmp.eq.s32.totalorder %s31, 1
    %p264 = por %p262, %p263
    %p266 = scmp.ne.s32.totalorder %s251, %s265
    %p267 = scmp.eq.s32.totalorder %s31, 0
    %p268 = por %p266, %p267
    %s270 = sadd.s32 %s269, 1
    %p273 = scmp.eq.s32.totalorder %s25, 1
    %p274 = scmp.ne.s32.totalorder %s269, %s271
    %p275 = scmp.eq.s32.totalorder %s25, 0
    %p276 = por %p274, %p275
    %p277 = scmp.ne.s32.totalorder %s269, %s271
    %p278 = scmp.eq.s32.totalorder %s30, 1
    %p279 = por %p277, %p278
    %p280 = scmp.ne.s32.totalorder %s271, %s272
    %p281 = scmp.eq.s32.totalorder %s30, 0
    %p282 = por %p280, %p281
    %p283 = scmp.ne.s32.totalorder %s271, %s272
    %p284 = scmp.eq.s32.totalorder %s31, 1
    %p285 = por %p283, %p284
    %p287 = scmp.ne.s32.totalorder %s272, %s286
    %p288 = scmp.eq.s32.totalorder %s31, 0
    %p289 = por %p287, %p288
    %s291 = sadd.s32 %s290, 1
    %p294 = scmp.eq.s32.totalorder %s25, 1
    %p295 = scmp.ne.s32.totalorder %s290, %s292
    %p296 = scmp.eq.s32.totalorder %s25, 0
    %p297 = por %p295, %p296
    %p298 = scmp.ne.s32.totalorder %s290, %s292
    %p299 = scmp.eq.s32.totalorder %s30, 1
    %p300 = por %p298, %p299
    %p301 = scmp.ne.s32.totalorder %s292, %s293
    %p302 = scmp.eq.s32.totalorder %s30, 0
    %p303 = por %p301, %p302
    %p304 = scmp.ne.s32.totalorder %s292, %s293
    %p305 = scmp.eq.s32.totalorder %s31, 1
    %p306 = por %p304, %p305
    %p308 = scmp.ne.s32.totalorder %s293, %s307
    %p309 = scmp.eq.s32.totalorder %s31, 0
    %p310 = por %p308, %p309
    %s312 = sadd.s32 %s311, 1
    %p315 = scmp.eq.s32.totalorder %s25, 1
    %p316 = scmp.ne.s32.totalorder %s311, %s313
    %p317 = scmp.eq.s32.totalorder %s25, 0
    %p318 = por %p316, %p317
    %p319 = scmp.ne.s32.totalorder %s311, %s313
    %p320 = scmp.eq.s32.totalorder %s30, 1
    %p321 = por %p319, %p320
    %p322 = scmp.ne.s32.totalorder %s313, %s314
    %p323 = scmp.eq.s32.totalorder %s30, 0
    %p324 = por %p322, %p323
    %p325 = scmp.ne.s32.totalorder %s313, %s314
    %p326 = scmp.eq.s32.totalorder %s31, 1
    %p327 = por %p325, %p326
    %p329 = scmp.ne.s32.totalorder %s314, %s328
    %p330 = scmp.eq.s32.totalorder %s31, 0
    %p331 = por %p329, %p330
    %s333 = sadd.s32 %s332, 1
    %p336 = scmp.eq.s32.totalorder %s25, 1
    %p337 = scmp.ne.s32.totalorder %s332, %s334
    %p338 = scmp.eq.s32.totalorder %s25, 0
    %p339 = por %p337, %p338
    %p340 = scmp.ne.s32.totalorder %s332, %s334
    %p341 = scmp.eq.s32.totalorder %s30, 1
    %p342 = por %p340, %p341
    %p343 = scmp.ne.s32.totalorder %s334, %s335
    %p344 = scmp.eq.s32.totalorder %s30, 0
    %p345 = por %p343, %p344
    %p346 = scmp.ne.s32.totalorder %s334, %s335
    %p347 = scmp.eq.s32.totalorder %s31, 1
    %p348 = por %p346, %p347
    %p350 = scmp.ne.s32.totalorder %s335, %s349
    %p351 = scmp.eq.s32.totalorder %s31, 0
    %p352 = por %p350, %p351
    %s354 = sadd.s32 %s353, 1
    %p357 = scmp.eq.s32.totalorder %s25, 1
    %p358 = scmp.ne.s32.totalorder %s353, %s355
    %p359 = scmp.eq.s32.totalorder %s25, 0
    %p360 = por %p358, %p359
    %p361 = scmp.ne.s32.totalorder %s353, %s355
    %p362 = scmp.eq.s32.totalorder %s30, 1
    %p363 = por %p361, %p362
    %p364 = scmp.ne.s32.totalorder %s355, %s356
    %p365 = scmp.eq.s32.totalorder %s30, 0
    %p366 = por %p364, %p365
    %p367 = scmp.ne.s32.totalorder %s355, %s356
    %p368 = scmp.eq.s32.totalorder %s31, 1
    %p369 = por %p367, %p368
    %p371 = scmp.ne.s32.totalorder %s356, %s370
    %p372 = scmp.eq.s32.totalorder %s31, 0
    %p373 = por %p371, %p372
    %s375 = sadd.s32 %s374, 1
    %p378 = scmp.eq.s32.totalorder %s25, 1
    %p379 = scmp.ne.s32.totalorder %s374, %s376
    %p380 = scmp.eq.s32.totalorder %s25, 0
    %p381 = por %p379, %p380
    %p382 = scmp.ne.s32.totalorder %s374, %s376
    %p383 = scmp.eq.s32.totalorder %s30, 1
    %p384 = por %p382, %p383
    %p385 = scmp.ne.s32.totalorder %s376, %s377
    %p386 = scmp.eq.s32.totalorder %s30, 0
    %p387 = por %p385, %p386
    %p388 = scmp.ne.s32.totalorder %s376, %s377
    %p389 = scmp.eq.s32.totalorder %s31, 1
    %p390 = por %p388, %p389
    %p392 = scmp.ne.s32.totalorder %s377, %s391
    %p393 = scmp.eq.s32.totalorder %s31, 0
    %p394 = por %p392, %p393
    %s395 = ssub.s32 %s25, %s32
    %p396 = scmp.eq.s32.totalorder %s395, 0
    %s398 = sadd.s32 %s397, 1
    %s399 = scalar_select %p396, %s397, %s398
    %p402 = pneg %p396
    %p403 = scmp.eq.s32.totalorder %s25, 1
    %p404 = por %p402, %p403
    %p405 = scmp.ne.s32.totalorder %s397, %s400
    %p406 = scmp.eq.s32.totalorder %s25, 0
    %p407 = por %p405, %p406
    %p408 = scmp.ne.s32.totalorder %s397, %s400
    %p409 = scmp.eq.s32.totalorder %s30, 1
    %p410 = por %p408, %p409
    %p411 = scmp.ne.s32.totalorder %s400, %s401
    %p412 = scmp.eq.s32.totalorder %s30, 0
    %p413 = por %p411, %p412
    %p414 = scmp.ne.s32.totalorder %s400, %s401
    %p415 = scmp.eq.s32.totalorder %s31, 1
    %p416 = por %p414, %p415
    %p418 = scmp.ne.s32.totalorder %s401, %s417
    %p419 = scmp.eq.s32.totalorder %s31, 0
    %p420 = por %p418, %p419
    %p421 = scmp.le.s32.totalorder 1, %s25
    %p422 = scmp.lt.s32.totalorder %s25, 3
    %p423 = pnand %p421, %p422
    %p424 = pneg %p423
    // Predicated region
    $region9: #{tpu_custom_call.1} parent=5 // pred_check
      _
    $region10: #{tpu_custom_call.1} parent=5 // pred_check_branch
      %426 = sbr.rel (%p423) target = $region12
    $region11: #{tpu_custom_call.1} parent=5 // pred_region
      %s427 = ssub.s32 %s25, 1
      // Predicated region
      $region13: #{tpu_custom_call.1} parent=11 // pred_check
        %p428 = pneg %p72
      $region14: #{tpu_custom_call.1} parent=11 // pred_check_branch
        %430 = sbr.rel (%p428) target = $region16
      $region15: #{tpu_custom_call.1} parent=11 // pred_region
        _
      $region16: #{tpu_custom_call.1} parent=11 // pred_fallthru
        _
      // Predicated region
      $region17: #{tpu_custom_call.1} parent=11 // pred_check
        %p431 = pneg %p93
      $region18: #{tpu_custom_call.1} parent=11 // pred_check_branch
        %433 = sbr.rel (%p431) target = $region20
      $region19: #{tpu_custom_call.1} parent=11 // pred_region
        _
      $region20: #{tpu_custom_call.1} parent=11 // pred_fallthru
        _
      // Predicated region
      $region21: #{tpu_custom_call.1} parent=11 // pred_check
        %p434 = pneg %p114
      $region22: #{tpu_custom_call.1} parent=11 // pred_check_branch
        %436 = sbr.rel (%p434) target = $region24
      $region23: #{tpu_custom_call.1} parent=11 // pred_region
        _
      $region24: #{tpu_custom_call.1} parent=11 // pred_fallthru
        _
      // Predicated region
      $region25: #{tpu_custom_call.1} parent=11 // pred_check
        %p437 = pneg %p135
      $region26: #{tpu_custom_call.1} parent=11 // pred_check_branch
        %439 = sbr.rel (%p437) target = $region28
      $region27: #{tpu_custom_call.1} parent=11 // pred_region
        _
      $region28: #{tpu_custom_call.1} parent=11 // pred_fallthru
        _
      // Predicated region
      $region29: #{tpu_custom_call.1} parent=11 // pred_check
        %p440 = pneg %p156
      $region30: #{tpu_custom_call.1} parent=11 // pred_check_branch
        %442 = sbr.rel (%p440) target = $region32
      $region31: #{tpu_custom_call.1} parent=11 // pred_region
        _
      $region32: #{tpu_custom_call.1} parent=11 // pred_fallthru
        _
      // Predicated region
      $region33: #{tpu_custom_call.1} parent=11 // pred_check
        %p443 = pneg %p177
      $region34: #{tpu_custom_call.1} parent=11 // pred_check_branch
        %445 = sbr.rel (%p443) target = $region36
      $region35: #{tpu_custom_call.1} parent=11 // pred_region
        _
      $region36: #{tpu_custom_call.1} parent=11 // pred_fallthru
        _
      // Predicated region
      $region37: #{tpu_custom_call.1} parent=11 // pred_check
        %p446 = pneg %p198
      $region38: #{tpu_custom_call.1} parent=11 // pred_check_branch
        %448 = sbr.rel (%p446) target = $region40
      $region39: #{tpu_custom_call.1} parent=11 // pred_region
        _
      $region40: #{tpu_custom_call.1} parent=11 // pred_fallthru
        _
      // Predicated region
      $region41: #{tpu_custom_call.1} parent=11 // pred_check
        %p449 = pneg %p219
      $region42: #{tpu_custom_call.1} parent=11 // pred_check_branch
        %451 = sbr.rel (%p449) target = $region44
      $region43: #{tpu_custom_call.1} parent=11 // pred_region
        _
      $region44: #{tpu_custom_call.1} parent=11 // pred_fallthru
        _
      // Predicated region
      $region45: #{tpu_custom_call.1} parent=11 // pred_check
        %p452 = pneg %p240
      $region46: #{tpu_custom_call.1} parent=11 // pred_check_branch
        %454 = sbr.rel (%p452) target = $region48
      $region47: #{tpu_custom_call.1} parent=11 // pred_region
        _
      $region48: #{tpu_custom_call.1} parent=11 // pred_fallthru
        _
      // Predicated region
      $region49: #{tpu_custom_call.1} parent=11 // pred_check
        %p455 = pneg %p261
      $region50: #{tpu_custom_call.1} parent=11 // pred_check_branch
        %457 = sbr.rel (%p455) target = $region52
      $region51: #{tpu_custom_call.1} parent=11 // pred_region
        _
      $region52: #{tpu_custom_call.1} parent=11 // pred_fallthru
        _
      // Predicated region
      $region53: #{tpu_custom_call.1} parent=11 // pred_check
        %p458 = pneg %p282
      $region54: #{tpu_custom_call.1} parent=11 // pred_check_branch
        %460 = sbr.rel (%p458) target = $region56
      $region55: #{tpu_custom_call.1} parent=11 // pred_region
        _
      $region56: #{tpu_custom_call.1} parent=11 // pred_fallthru
        _
      // Predicated region
      $region57: #{tpu_custom_call.1} parent=11 // pred_check
        %p461 = pneg %p303
      $region58: #{tpu_custom_call.1} parent=11 // pred_check_branch
        %463 = sbr.rel (%p461) target = $region60
      $region59: #{tpu_custom_call.1} parent=11 // pred_region
        _
      $region60: #{tpu_custom_call.1} parent=11 // pred_fallthru
        _
      // Predicated region
      $region61: #{tpu_custom_call.1} parent=11 // pred_check
        %p464 = pneg %p324
      $region62: #{tpu_custom_call.1} parent=11 // pred_check_branch
        %466 = sbr.rel (%p464) target = $region64
      $region63: #{tpu_custom_call.1} parent=11 // pred_region
        _
      $region64: #{tpu_custom_call.1} parent=11 // pred_fallthru
        _
      // Predicated region
      $region65: #{tpu_custom_call.1} parent=11 // pred_check
        %p467 = pneg %p345
      $region66: #{tpu_custom_call.1} parent=11 // pred_check_branch
        %469 = sbr.rel (%p467) target = $region68
      $region67: #{tpu_custom_call.1} parent=11 // pred_region
        _
      $region68: #{tpu_custom_call.1} parent=11 // pred_fallthru
        _
      // Predicated region
      $region69: #{tpu_custom_call.1} parent=11 // pred_check
        %p470 = pneg %p366
      $region70: #{tpu_custom_call.1} parent=11 // pred_check_branch
        %472 = sbr.rel (%p470) target = $region72
      $region71: #{tpu_custom_call.1} parent=11 // pred_region
        _
      $region72: #{tpu_custom_call.1} parent=11 // pred_fallthru
        _
      // Predicated region
      $region73: #{tpu_custom_call.1} parent=11 // pred_check
        %p473 = pneg %p387
      $region74: #{tpu_custom_call.1} parent=11 // pred_check_branch
        %475 = sbr.rel (%p473) target = $region76
      $region75: #{tpu_custom_call.1} parent=11 // pred_region
        _
      $region76: #{tpu_custom_call.1} parent=11 // pred_fallthru
        _
    $region12: #{tpu_custom_call.1} parent=5 // pred_fallthru
      _
    %p476 = scmp.lt.s32.totalorder %s25, 2
    // Predicated region
    $region77: #{tpu_custom_call.1} parent=5 // pred_check
      %p477 = pneg %p476
    $region78: #{tpu_custom_call.1} parent=5 // pred_check_branch
      %479 = sbr.rel (%p477) target = $region80
    $region79: #{tpu_custom_call.1} parent=5 // pred_region
      // Predicated region
      $region81: #{tpu_custom_call.1} parent=79 // pred_check
        %p480 = pneg %p45
      $region82: #{tpu_custom_call.1} parent=79 // pred_check_branch
        %482 = sbr.rel (%p480) target = $region84
      $region83: #{tpu_custom_call.1} parent=79 // pred_region
        %s483 = smul.u32 32, %s25
        %p484 = scmp.lt.s32.totalorder %s483, 63
        %s485 = scalar_select %p484, %s483, 63
        %s486 = smul.addr %s485, 8
        %s487 = scalar_lea.vmem %s0, %s486
        %s488 = smul.u32 32, %s25
      $region84: #{tpu_custom_call.1} parent=79 // pred_fallthru
        _
    $region80: #{tpu_custom_call.1} parent=5 // pred_fallthru
      _
    %p489 = scmp.le.s32.totalorder 1, %s25
    %p490 = scmp.lt.s32.totalorder %s25, 3
    %p491 = pnand %p489, %p490
    %p492 = pneg %p491
    // Predicated region
    $region85: #{tpu_custom_call.1} parent=5 // pred_check
      _
    $region86: #{tpu_custom_call.1} parent=5 // pred_check_branch
      %494 = sbr.rel (%p491) target = $region88
    $region87: #{tpu_custom_call.1} parent=5 // pred_region
      %s495 = ssub.s32 %s25, 1
      %s496 = smul.u32 32, %s30
      %p497 = scmp.lt.s32.totalorder %s496, 63
      %s498 = scalar_select %p497, %s496, 63
      %s499 = smul.addr %s498, 8
      %s500 = scalar_lea.vmem %s0, %s499
      %p501 = pneg %p51
      %p502 = pneg %p48
      %p503 = pneg %p72
      %p504 = pneg %p69
      %p505 = pneg %p93
      %p506 = pneg %p90
      %p507 = pneg %p114
      %p508 = pneg %p111
      %p509 = pneg %p135
      %p510 = pneg %p132
      %p511 = pneg %p156
      %p512 = pneg %p153
      %p513 = pneg %p177
      %p514 = pneg %p174
      %p515 = pneg %p198
      %p516 = pneg %p195
      %p517 = pneg %p219
      %p518 = pneg %p216
      %p519 = pneg %p240
      %p520 = pneg %p237
      %p521 = pneg %p261
      %p522 = pneg %p258
      %p523 = pneg %p282
      %p524 = pneg %p279
      %p525 = pneg %p303
      %p526 = pneg %p300
      %p527 = pneg %p324
      %p528 = pneg %p321
      %p529 = pneg %p345
      %p530 = pneg %p342
      %p531 = pneg %p366
      %p532 = pneg %p363
      %p533 = pneg %p387
      %p534 = pneg %p384
      %p535 = pneg %p413
      %p536 = pneg %p410
      %s537 = smul.u32 4, %s30
      %p538 = scmp.lt.s32.totalorder %s537, 7
      %s539 = scalar_select %p538, %s537, 7
      %s540 = smul.addr %s539, 8
      %s541 = scalar_lea.vmem %s17, %s540
      %s542 = smul.u32 32, %s30
      %p543 = scmp.lt.s32.totalorder %s542, 63
      %s544 = scalar_select %p543, %s542, 63
      %s545 = smul.addr %s544, 8
      %s546 = scalar_lea.vmem %s0, %s545
      %s547 = smul.u32 32, %s30
      %s548 = smul.u32 4, %s30
      %p549 = scmp.lt.s32.totalorder %s548, 7
      %s550 = scalar_select %p549, %s548, 7
      %s551 = smul.addr %s550, 8
      %s552 = scalar_lea.vmem %s17, %s551
      %s553 = smul.u32 4, %s30
      %v555 = vld [vmem:[%s546] sm:$0xff]
      %v556 = vld [vmem:[%s546 + $0x8] sm:$0xff]
      %v557 = vld [vmem:[%s546 + $0x10] sm:$0xff]
      %v558 = vld [vmem:[%s546 + $0x18] sm:$0xff]
      %v559 = vld [vmem:[%s546 + $0x20] sm:$0xff]
      %v560 = vld [vmem:[%s546 + $0x28] sm:$0xff]
      %v561 = vld [vmem:[%s546 + $0x30] sm:$0xff]
      %v562 = vld [vmem:[%s546 + $0x38] sm:$0xff]
      %v563 = vld [vmem:[%s546 + $0x40] sm:$0xff]
      %v564 = vld [vmem:[%s546 + $0x48] sm:$0xff]
      %v565 = vld [vmem:[%s546 + $0x50] sm:$0xff]
      %v566 = vld [vmem:[%s546 + $0x58] sm:$0xff]
      %v567 = vld [vmem:[%s546 + $0x60] sm:$0xff]
      %v568 = vld [vmem:[%s546 + $0x68] sm:$0xff]
      %v569 = vld [vmem:[%s546 + $0x70] sm:$0xff]
      %v570 = vld [vmem:[%s546 + $0x78] sm:$0xff]
      %v571 = vld [vmem:[%s546 + $0x80] sm:$0xff]
      %v572 = vld [vmem:[%s546 + $0x88] sm:$0xff]
      %v573 = vld [vmem:[%s546 + $0x90] sm:$0xff]
      %v574 = vld [vmem:[%s546 + $0x98] sm:$0xff]
      %v575 = vld [vmem:[%s546 + $0xa0] sm:$0xff]
      %v576 = vld [vmem:[%s546 + $0xa8] sm:$0xff]
      %v577 = vld [vmem:[%s546 + $0xb0] sm:$0xff]
      %v578 = vld [vmem:[%s546 + $0xb8] sm:$0xff]
      %v579 = vld [vmem:[%s546 + $0xc0] sm:$0xff]
      %v580 = vld [vmem:[%s546 + $0xc8] sm:$0xff]
      %v581 = vld [vmem:[%s546 + $0xd0] sm:$0xff]
      %v582 = vld [vmem:[%s546 + $0xd8] sm:$0xff]
      %v583 = vld [vmem:[%s546 + $0xe0] sm:$0xff]
      %v584 = vld [vmem:[%s546 + $0xe8] sm:$0xff]
      %v585 = vld [vmem:[%s546 + $0xf0] sm:$0xff]
      %v586 = vld [vmem:[%s546 + $0xf8] sm:$0xff]
      %v587 = vld [vmem:[%s1] sm:$0xf]
      %589 = vset.pattern.permute.xlu0 0
      %590 = vperm.xlu0 %589, %v555
      %v591 = vpop.permute.xlu0 %590
      %594 = vset.pattern.permute.xlu0 0
      %595 = vperm.xlu0 %594, %v556
      %v596 = vpop.permute.xlu0 %595
      %599 = vset.pattern.permute.xlu0 0
      %600 = vperm.xlu0 %599, %v557
      %v601 = vpop.permute.xlu0 %600
      %604 = vset.pattern.permute.xlu0 0
      %605 = vperm.xlu0 %604, %v558
      %v606 = vpop.permute.xlu0 %605
      %609 = vset.pattern.permute.xlu0 0
      %610 = vperm.xlu0 %609, %v559
      %v611 = vpop.permute.xlu0 %610
      %614 = vset.pattern.permute.xlu0 0
      %615 = vperm.xlu0 %614, %v560
      %v616 = vpop.permute.xlu0 %615
      %619 = vset.pattern.permute.xlu0 0
      %620 = vperm.xlu0 %619, %v561
      %v621 = vpop.permute.xlu0 %620
      %624 = vset.pattern.permute.xlu0 0
      %625 = vperm.xlu0 %624, %v562
      %v626 = vpop.permute.xlu0 %625
      %629 = vset.pattern.permute.xlu0 0
      %630 = vperm.xlu0 %629, %v563
      %v631 = vpop.permute.xlu0 %630
      %634 = vset.pattern.permute.xlu0 0
      %635 = vperm.xlu0 %634, %v564
      %v636 = vpop.permute.xlu0 %635
      %639 = vset.pattern.permute.xlu0 0
      %640 = vperm.xlu0 %639, %v565
      %v641 = vpop.permute.xlu0 %640
      %644 = vset.pattern.permute.xlu0 0
      %645 = vperm.xlu0 %644, %v566
      %v646 = vpop.permute.xlu0 %645
      %649 = vset.pattern.permute.xlu0 0
      %650 = vperm.xlu0 %649, %v567
      %v651 = vpop.permute.xlu0 %650
      %654 = vset.pattern.permute.xlu0 0
      %655 = vperm.xlu0 %654, %v568
      %v656 = vpop.permute.xlu0 %655
      %659 = vset.pattern.permute.xlu0 0
      %660 = vperm.xlu0 %659, %v569
      %v661 = vpop.permute.xlu0 %660
      %664 = vset.pattern.permute.xlu0 0
      %665 = vperm.xlu0 %664, %v570
      %v666 = vpop.permute.xlu0 %665
      %669 = vset.pattern.permute.xlu0 0
      %670 = vperm.xlu0 %669, %v571
      %v671 = vpop.permute.xlu0 %670
      %674 = vset.pattern.permute.xlu0 0
      %675 = vperm.xlu0 %674, %v572
      %v676 = vpop.permute.xlu0 %675
      %679 = vset.pattern.permute.xlu0 0
      %680 = vperm.xlu0 %679, %v573
      %v681 = vpop.permute.xlu0 %680
      %684 = vset.pattern.permute.xlu0 0
      %685 = vperm.xlu0 %684, %v574
      %v686 = vpop.permute.xlu0 %685
      %689 = vset.pattern.permute.xlu0 0
      %690 = vperm.xlu0 %689, %v575
      %v691 = vpop.permute.xlu0 %690
      %694 = vset.pattern.permute.xlu0 0
      %695 = vperm.xlu0 %694, %v576
      %v696 = vpop.permute.xlu0 %695
      %699 = vset.pattern.permute.xlu0 0
      %700 = vperm.xlu0 %699, %v577
      %v701 = vpop.permute.xlu0 %700
      %704 = vset.pattern.permute.xlu0 0
      %705 = vperm.xlu0 %704, %v578
      %v706 = vpop.permute.xlu0 %705
      %709 = vset.pattern.permute.xlu0 0
      %710 = vperm.xlu0 %709, %v579
      %v711 = vpop.permute.xlu0 %710
      %714 = vset.pattern.permute.xlu0 0
      %715 = vperm.xlu0 %714, %v580
      %v716 = vpop.permute.xlu0 %715
      %719 = vset.pattern.permute.xlu0 0
      %720 = vperm.xlu0 %719, %v581
      %v721 = vpop.permute.xlu0 %720
      %724 = vset.pattern.permute.xlu0 0
      %725 = vperm.xlu0 %724, %v582
      %v726 = vpop.permute.xlu0 %725
      %729 = vset.pattern.permute.xlu0 0
      %730 = vperm.xlu0 %729, %v583
      %v731 = vpop.permute.xlu0 %730
      %734 = vset.pattern.permute.xlu0 0
      %735 = vperm.xlu0 %734, %v584
      %v736 = vpop.permute.xlu0 %735
      %739 = vset.pattern.permute.xlu0 0
      %740 = vperm.xlu0 %739, %v585
      %v741 = vpop.permute.xlu0 %740
      %744 = vset.pattern.permute.xlu0 0
      %745 = vperm.xlu0 %744, %v586
      %v746 = vpop.permute.xlu0 %745
      %v748 = vlaneseq
      %v749 = vshrl.u32 %v748, 7
      %v750 = vsub.s32 0, %v749
      %v751 = vrot.slane %v587, %v750
      %v752 = vmul.f32 %v591, %v751
      %v753 = vmul.f32 %v596, %v751
      %v754 = vmul.f32 %v601, %v751
      %v755 = vmul.f32 %v606, %v751
      %v756 = vmul.f32 %v611, %v751
      %v757 = vmul.f32 %v616, %v751
      %v758 = vmul.f32 %v621, %v751
      %v759 = vmul.f32 %v626, %v751
      %v760 = vmul.f32 %v631, %v751
      %v761 = vmul.f32 %v636, %v751
      %v762 = vmul.f32 %v641, %v751
      %v763 = vmul.f32 %v646, %v751
      %v764 = vmul.f32 %v651, %v751
      %v765 = vmul.f32 %v656, %v751
      %v766 = vmul.f32 %v661, %v751
      %v767 = vmul.f32 %v666, %v751
      %v768 = vmul.f32 %v671, %v751
      %v769 = vmul.f32 %v676, %v751
      %v770 = vmul.f32 %v681, %v751
      %v771 = vmul.f32 %v686, %v751
      %v772 = vmul.f32 %v691, %v751
      %v773 = vmul.f32 %v696, %v751
      %v774 = vmul.f32 %v701, %v751
      %v775 = vmul.f32 %v706, %v751
      %v776 = vmul.f32 %v711, %v751
      %v777 = vmul.f32 %v716, %v751
      %v778 = vmul.f32 %v721, %v751
      %v779 = vmul.f32 %v726, %v751
      %v780 = vmul.f32 %v731, %v751
      %v781 = vmul.f32 %v736, %v751
      %v782 = vmul.f32 %v741, %v751
      %v783 = vmul.f32 %v746, %v751
      %v784 = vld [vmem:[%s2] sm:$0x1]
      %v786 = vlaneseq
      %v787 = vshrl.u32 %v786, 7
      %v788 = vsub.s32 0, %v787
      %v789 = vrot.slane %v784, %v788
      %v791 = vadd.f32 %v752, %v789
      %v792 = vadd.f32 %v753, %v789
      %v793 = vadd.f32 %v754, %v789
      %v794 = vadd.f32 %v755, %v789
      %v795 = vadd.f32 %v756, %v789
      %v796 = vadd.f32 %v757, %v789
      %v797 = vadd.f32 %v758, %v789
      %v798 = vadd.f32 %v759, %v789
      %v799 = vadd.f32 %v760, %v789
      %v800 = vadd.f32 %v761, %v789
      %v801 = vadd.f32 %v762, %v789
      %v802 = vadd.f32 %v763, %v789
      %v803 = vadd.f32 %v764, %v789
      %v804 = vadd.f32 %v765, %v789
      %v805 = vadd.f32 %v766, %v789
      %v806 = vadd.f32 %v767, %v789
      %v807 = vadd.f32 %v768, %v789
      %v808 = vadd.f32 %v769, %v789
      %v809 = vadd.f32 %v770, %v789
      %v810 = vadd.f32 %v771, %v789
      %v811 = vadd.f32 %v772, %v789
      %v812 = vadd.f32 %v773, %v789
      %v813 = vadd.f32 %v774, %v789
      %v814 = vadd.f32 %v775, %v789
      %v815 = vadd.f32 %v776, %v789
      %v816 = vadd.f32 %v777, %v789
      %v817 = vadd.f32 %v778, %v789
      %v818 = vadd.f32 %v779, %v789
      %v819 = vadd.f32 %v780, %v789
      %v820 = vadd.f32 %v781, %v789
      %v821 = vadd.f32 %v782, %v789
      %v822 = vadd.f32 %v783, %v789
      %823 = vset.pattern.permute.xlu0 1
      %824 = vperm.xlu0 %823, %v555
      %v825 = vpop.permute.xlu0 %824
      %827 = vset.pattern.permute.xlu0 1
      %828 = vperm.xlu0 %827, %v556
      %v829 = vpop.permute.xlu0 %828
      %831 = vset.pattern.permute.xlu0 1
      %832 = vperm.xlu0 %831, %v557
      %v833 = vpop.permute.xlu0 %832
      %835 = vset.pattern.permute.xlu0 1
      %836 = vperm.xlu0 %835, %v558
      %v837 = vpop.permute.xlu0 %836
      %839 = vset.pattern.permute.xlu0 1
      %840 = vperm.xlu0 %839, %v559
      %v841 = vpop.permute.xlu0 %840
      %843 = vset.pattern.permute.xlu0 1
      %844 = vperm.xlu0 %843, %v560
      %v845 = vpop.permute.xlu0 %844
      %847 = vset.pattern.permute.xlu0 1
      %848 = vperm.xlu0 %847, %v561
      %v849 = vpop.permute.xlu0 %848
      %851 = vset.pattern.permute.xlu0 1
      %852 = vperm.xlu0 %851, %v562
      %v853 = vpop.permute.xlu0 %852
      %855 = vset.pattern.permute.xlu0 1
      %856 = vperm.xlu0 %855, %v563
      %v857 = vpop.permute.xlu0 %856
      %859 = vset.pattern.permute.xlu0 1
      %860 = vperm.xlu0 %859, %v564
      %v861 = vpop.permute.xlu0 %860
      %863 = vset.pattern.permute.xlu0 1
      %864 = vperm.xlu0 %863, %v565
      %v865 = vpop.permute.xlu0 %864
      %867 = vset.pattern.permute.xlu0 1
      %868 = vperm.xlu0 %867, %v566
      %v869 = vpop.permute.xlu0 %868
      %871 = vset.pattern.permute.xlu0 1
      %872 = vperm.xlu0 %871, %v567
      %v873 = vpop.permute.xlu0 %872
      %875 = vset.pattern.permute.xlu0 1
      %876 = vperm.xlu0 %875, %v568
      %v877 = vpop.permute.xlu0 %876
      %879 = vset.pattern.permute.xlu0 1
      %880 = vperm.xlu0 %879, %v569
      %v881 = vpop.permute.xlu0 %880
      %883 = vset.pattern.permute.xlu0 1
      %884 = vperm.xlu0 %883, %v570
      %v885 = vpop.permute.xlu0 %884
      %887 = vset.pattern.permute.xlu0 1
      %888 = vperm.xlu0 %887, %v571
      %v889 = vpop.permute.xlu0 %888
      %891 = vset.pattern.permute.xlu0 1
      %892 = vperm.xlu0 %891, %v572
      %v893 = vpop.permute.xlu0 %892
      %895 = vset.pattern.permute.xlu0 1
      %896 = vperm.xlu0 %895, %v573
      %v897 = vpop.permute.xlu0 %896
      %899 = vset.pattern.permute.xlu0 1
      %900 = vperm.xlu0 %899, %v574
      %v901 = vpop.permute.xlu0 %900
      %903 = vset.pattern.permute.xlu0 1
      %904 = vperm.xlu0 %903, %v575
      %v905 = vpop.permute.xlu0 %904
      %907 = vset.pattern.permute.xlu0 1
      %908 = vperm.xlu0 %907, %v576
      %v909 = vpop.permute.xlu0 %908
      %911 = vset.pattern.permute.xlu0 1
      %912 = vperm.xlu0 %911, %v577
      %v913 = vpop.permute.xlu0 %912
      %915 = vset.pattern.permute.xlu0 1
      %916 = vperm.xlu0 %915, %v578
      %v917 = vpop.permute.xlu0 %916
      %919 = vset.pattern.permute.xlu0 1
      %920 = vperm.xlu0 %919, %v579
      %v921 = vpop.permute.xlu0 %920
      %923 = vset.pattern.permute.xlu0 1
      %924 = vperm.xlu0 %923, %v580
      %v925 = vpop.permute.xlu0 %924
      %927 = vset.pattern.permute.xlu0 1
      %928 = vperm.xlu0 %927, %v581
      %v929 = vpop.permute.xlu0 %928
      %931 = vset.pattern.permute.xlu0 1
      %932 = vperm.xlu0 %931, %v582
      %v933 = vpop.permute.xlu0 %932
      %935 = vset.pattern.permute.xlu0 1
      %936 = vperm.xlu0 %935, %v583
      %v937 = vpop.permute.xlu0 %936
      %939 = vset.pattern.permute.xlu0 1
      %940 = vperm.xlu0 %939, %v584
      %v941 = vpop.permute.xlu0 %940
      %943 = vset.pattern.permute.xlu0 1
      %944 = vperm.xlu0 %943, %v585
      %v945 = vpop.permute.xlu0 %944
      %947 = vset.pattern.permute.xlu0 1
      %948 = vperm.xlu0 %947, %v586
      %v949 = vpop.permute.xlu0 %948
      %v951 = vlaneseq
      %v952 = vshrl.u32 %v951, 7
      %v953 = vsub.s32 1, %v952
      %v954 = vrot.slane %v587, %v953
      %v955 = vmul.f32 %v825, %v954
      %v956 = vmul.f32 %v829, %v954
      %v957 = vmul.f32 %v833, %v954
      %v958 = vmul.f32 %v837, %v954
      %v959 = vmul.f32 %v841, %v954
      %v960 = vmul.f32 %v845, %v954
      %v961 = vmul.f32 %v849, %v954
      %v962 = vmul.f32 %v853, %v954
      %v963 = vmul.f32 %v857, %v954
      %v964 = vmul.f32 %v861, %v954
      %v965 = vmul.f32 %v865, %v954
      %v966 = vmul.f32 %v869, %v954
      %v967 = vmul.f32 %v873, %v954
      %v968 = vmul.f32 %v877, %v954
      %v969 = vmul.f32 %v881, %v954
      %v970 = vmul.f32 %v885, %v954
      %v971 = vmul.f32 %v889, %v954
      %v972 = vmul.f32 %v893, %v954
      %v973 = vmul.f32 %v897, %v954
      %v974 = vmul.f32 %v901, %v954
      %v975 = vmul.f32 %v905, %v954
      %v976 = vmul.f32 %v909, %v954
      %v977 = vmul.f32 %v913, %v954
      %v978 = vmul.f32 %v917, %v954
      %v979 = vmul.f32 %v921, %v954
      %v980 = vmul.f32 %v925, %v954
      %v981 = vmul.f32 %v929, %v954
      %v982 = vmul.f32 %v933, %v954
      %v983 = vmul.f32 %v937, %v954
      %v984 = vmul.f32 %v941, %v954
      %v985 = vmul.f32 %v945, %v954
      %v986 = vmul.f32 %v949, %v954
      %v987 = vadd.f32 %v791, %v955
      %v988 = vadd.f32 %v792, %v956
      %v989 = vadd.f32 %v793, %v957
      %v990 = vadd.f32 %v794, %v958
      %v991 = vadd.f32 %v795, %v959
      %v992 = vadd.f32 %v796, %v960
      %v993 = vadd.f32 %v797, %v961
      %v994 = vadd.f32 %v798, %v962
      %v995 = vadd.f32 %v799, %v963
      %v996 = vadd.f32 %v800, %v964
      %v997 = vadd.f32 %v801, %v965
      %v998 = vadd.f32 %v802, %v966
      %v999 = vadd.f32 %v803, %v967
      %v1000 = vadd.f32 %v804, %v968
      %v1001 = vadd.f32 %v805, %v969
      %v1002 = vadd.f32 %v806, %v970
      %v1003 = vadd.f32 %v807, %v971
      %v1004 = vadd.f32 %v808, %v972
      %v1005 = vadd.f32 %v809, %v973
      %v1006 = vadd.f32 %v810, %v974
      %v1007 = vadd.f32 %v811, %v975
      %v1008 = vadd.f32 %v812, %v976
      %v1009 = vadd.f32 %v813, %v977
      %v1010 = vadd.f32 %v814, %v978
      %v1011 = vadd.f32 %v815, %v979
      %v1012 = vadd.f32 %v816, %v980
      %v1013 = vadd.f32 %v817, %v981
      %v1014 = vadd.f32 %v818, %v982
      %v1015 = vadd.f32 %v819, %v983
      %v1016 = vadd.f32 %v820, %v984
      %v1017 = vadd.f32 %v821, %v985
      %v1018 = vadd.f32 %v822, %v986
      %1019 = vset.pattern.permute.xlu0 2
      %1020 = vperm.xlu0 %1019, %v555
      %v1021 = vpop.permute.xlu0 %1020
      %1023 = vset.pattern.permute.xlu0 2
      %1024 = vperm.xlu0 %1023, %v556
      %v1025 = vpop.permute.xlu0 %1024
      %1027 = vset.pattern.permute.xlu0 2
      %1028 = vperm.xlu0 %1027, %v557
      %v1029 = vpop.permute.xlu0 %1028
      %1031 = vset.pattern.permute.xlu0 2
      %1032 = vperm.xlu0 %1031, %v558
      %v1033 = vpop.permute.xlu0 %1032
      %1035 = vset.pattern.permute.xlu0 2
      %1036 = vperm.xlu0 %1035, %v559
      %v1037 = vpop.permute.xlu0 %1036
      %1039 = vset.pattern.permute.xlu0 2
      %1040 = vperm.xlu0 %1039, %v560
      %v1041 = vpop.permute.xlu0 %1040
      %1043 = vset.pattern.permute.xlu0 2
      %1044 = vperm.xlu0 %1043, %v561
      %v1045 = vpop.permute.xlu0 %1044
      %1047 = vset.pattern.permute.xlu0 2
      %1048 = vperm.xlu0 %1047, %v562
      %v1049 = vpop.permute.xlu0 %1048
      %1051 = vset.pattern.permute.xlu0 2
      %1052 = vperm.xlu0 %1051, %v563
      %v1053 = vpop.permute.xlu0 %1052
      %1055 = vset.pattern.permute.xlu0 2
      %1056 = vperm.xlu0 %1055, %v564
      %v1057 = vpop.permute.xlu0 %1056
      %1059 = vset.pattern.permute.xlu0 2
      %1060 = vperm.xlu0 %1059, %v565
      %v1061 = vpop.permute.xlu0 %1060
      %1063 = vset.pattern.permute.xlu0 2
      %1064 = vperm.xlu0 %1063, %v566
      %v1065 = vpop.permute.xlu0 %1064
      %1067 = vset.pattern.permute.xlu0 2
      %1068 = vperm.xlu0 %1067, %v567
      %v1069 = vpop.permute.xlu0 %1068
      %1071 = vset.pattern.permute.xlu0 2
      %1072 = vperm.xlu0 %1071, %v568
      %v1073 = vpop.permute.xlu0 %1072
      %1075 = vset.pattern.permute.xlu0 2
      %1076 = vperm.xlu0 %1075, %v569
      %v1077 = vpop.permute.xlu0 %1076
      %1079 = vset.pattern.permute.xlu0 2
      %1080 = vperm.xlu0 %1079, %v570
      %v1081 = vpop.permute.xlu0 %1080
      %1083 = vset.pattern.permute.xlu0 2
      %1084 = vperm.xlu0 %1083, %v571
      %v1085 = vpop.permute.xlu0 %1084
      %1087 = vset.pattern.permute.xlu0 2
      %1088 = vperm.xlu0 %1087, %v572
      %v1089 = vpop.permute.xlu0 %1088
      %1091 = vset.pattern.permute.xlu0 2
      %1092 = vperm.xlu0 %1091, %v573
      %v1093 = vpop.permute.xlu0 %1092
      %1095 = vset.pattern.permute.xlu0 2
      %1096 = vperm.xlu0 %1095, %v574
      %v1097 = vpop.permute.xlu0 %1096
      %1099 = vset.pattern.permute.xlu0 2
      %1100 = vperm.xlu0 %1099, %v575
      %v1101 = vpop.permute.xlu0 %1100
      %1103 = vset.pattern.permute.xlu0 2
      %1104 = vperm.xlu0 %1103, %v576
      %v1105 = vpop.permute.xlu0 %1104
      %1107 = vset.pattern.permute.xlu0 2
      %1108 = vperm.xlu0 %1107, %v577
      %v1109 = vpop.permute.xlu0 %1108
      %1111 = vset.pattern.permute.xlu0 2
      %1112 = vperm.xlu0 %1111, %v578
      %v1113 = vpop.permute.xlu0 %1112
      %1115 = vset.pattern.permute.xlu0 2
      %1116 = vperm.xlu0 %1115, %v579
      %v1117 = vpop.permute.xlu0 %1116
      %1119 = vset.pattern.permute.xlu0 2
      %1120 = vperm.xlu0 %1119, %v580
      %v1121 = vpop.permute.xlu0 %1120
      %1123 = vset.pattern.permute.xlu0 2
      %1124 = vperm.xlu0 %1123, %v581
      %v1125 = vpop.permute.xlu0 %1124
      %1127 = vset.pattern.permute.xlu0 2
      %1128 = vperm.xlu0 %1127, %v582
      %v1129 = vpop.permute.xlu0 %1128
      %1131 = vset.pattern.permute.xlu0 2
      %1132 = vperm.xlu0 %1131, %v583
      %v1133 = vpop.permute.xlu0 %1132
      %1135 = vset.pattern.permute.xlu0 2
      %1136 = vperm.xlu0 %1135, %v584
      %v1137 = vpop.permute.xlu0 %1136
      %1139 = vset.pattern.permute.xlu0 2
      %1140 = vperm.xlu0 %1139, %v585
      %v1141 = vpop.permute.xlu0 %1140
      %1143 = vset.pattern.permute.xlu0 2
      %1144 = vperm.xlu0 %1143, %v586
      %v1145 = vpop.permute.xlu0 %1144
      %v1147 = vlaneseq
      %v1148 = vshrl.u32 %v1147, 7
      %v1149 = vsub.s32 2, %v1148
      %v1150 = vrot.slane %v587, %v1149
      %v1151 = vmul.f32 %v1021, %v1150
      %v1152 = vmul.f32 %v1025, %v1150
      %v1153 = vmul.f32 %v1029, %v1150
      %v1154 = vmul.f32 %v1033, %v1150
      %v1155 = vmul.f32 %v1037, %v1150
      %v1156 = vmul.f32 %v1041, %v1150
      %v1157 = vmul.f32 %v1045, %v1150
      %v1158 = vmul.f32 %v1049, %v1150
      %v1159 = vmul.f32 %v1053, %v1150
      %v1160 = vmul.f32 %v1057, %v1150
      %v1161 = vmul.f32 %v1061, %v1150
      %v1162 = vmul.f32 %v1065, %v1150
      %v1163 = vmul.f32 %v1069, %v1150
      %v1164 = vmul.f32 %v1073, %v1150
      %v1165 = vmul.f32 %v1077, %v1150
      %v1166 = vmul.f32 %v1081, %v1150
      %v1167 = vmul.f32 %v1085, %v1150
      %v1168 = vmul.f32 %v1089, %v1150
      %v1169 = vmul.f32 %v1093, %v1150
      %v1170 = vmul.f32 %v1097, %v1150
      %v1171 = vmul.f32 %v1101, %v1150
      %v1172 = vmul.f32 %v1105, %v1150
      %v1173 = vmul.f32 %v1109, %v1150
      %v1174 = vmul.f32 %v1113, %v1150
      %v1175 = vmul.f32 %v1117, %v1150
      %v1176 = vmul.f32 %v1121, %v1150
      %v1177 = vmul.f32 %v1125, %v1150
      %v1178 = vmul.f32 %v1129, %v1150
      %v1179 = vmul.f32 %v1133, %v1150
      %v1180 = vmul.f32 %v1137, %v1150
      %v1181 = vmul.f32 %v1141, %v1150
      %v1182 = vmul.f32 %v1145, %v1150
      %v1183 = vadd.f32 %v987, %v1151
      %v1184 = vadd.f32 %v988, %v1152
      %v1185 = vadd.f32 %v989, %v1153
      %v1186 = vadd.f32 %v990, %v1154
      %v1187 = vadd.f32 %v991, %v1155
      %v1188 = vadd.f32 %v992, %v1156
      %v1189 = vadd.f32 %v993, %v1157
      %v1190 = vadd.f32 %v994, %v1158
      %v1191 = vadd.f32 %v995, %v1159
      %v1192 = vadd.f32 %v996, %v1160
      %v1193 = vadd.f32 %v997, %v1161
      %v1194 = vadd.f32 %v998, %v1162
      %v1195 = vadd.f32 %v999, %v1163
      %v1196 = vadd.f32 %v1000, %v1164
      %v1197 = vadd.f32 %v1001, %v1165
      %v1198 = vadd.f32 %v1002, %v1166
      %v1199 = vadd.f32 %v1003, %v1167
      %v1200 = vadd.f32 %v1004, %v1168
      %v1201 = vadd.f32 %v1005, %v1169
      %v1202 = vadd.f32 %v1006, %v1170
      %v1203 = vadd.f32 %v1007, %v1171
      %v1204 = vadd.f32 %v1008, %v1172
      %v1205 = vadd.f32 %v1009, %v1173
      %v1206 = vadd.f32 %v1010, %v1174
      %v1207 = vadd.f32 %v1011, %v1175
      %v1208 = vadd.f32 %v1012, %v1176
      %v1209 = vadd.f32 %v1013, %v1177
      %v1210 = vadd.f32 %v1014, %v1178
      %v1211 = vadd.f32 %v1015, %v1179
      %v1212 = vadd.f32 %v1016, %v1180
      %v1213 = vadd.f32 %v1017, %v1181
      %v1214 = vadd.f32 %v1018, %v1182
      %1215 = vset.pattern.permute.xlu0 3
      %1216 = vperm.xlu0 %1215, %v555
      %v1217 = vpop.permute.xlu0 %1216
      %1219 = vset.pattern.permute.xlu0 3
      %1220 = vperm.xlu0 %1219, %v556
      %v1221 = vpop.permute.xlu0 %1220
      %1223 = vset.pattern.permute.xlu0 3
      %1224 = vperm.xlu0 %1223, %v557
      %v1225 = vpop.permute.xlu0 %1224
      %1227 = vset.pattern.permute.xlu0 3
      %1228 = vperm.xlu0 %1227, %v558
      %v1229 = vpop.permute.xlu0 %1228
      %1231 = vset.pattern.permute.xlu0 3
      %1232 = vperm.xlu0 %1231, %v559
      %v1233 = vpop.permute.xlu0 %1232
      %1235 = vset.pattern.permute.xlu0 3
      %1236 = vperm.xlu0 %1235, %v560
      %v1237 = vpop.permute.xlu0 %1236
      %1239 = vset.pattern.permute.xlu0 3
      %1240 = vperm.xlu0 %1239, %v561
      %v1241 = vpop.permute.xlu0 %1240
      %1243 = vset.pattern.permute.xlu0 3
      %1244 = vperm.xlu0 %1243, %v562
      %v1245 = vpop.permute.xlu0 %1244
      %1247 = vset.pattern.permute.xlu0 3
      %1248 = vperm.xlu0 %1247, %v563
      %v1249 = vpop.permute.xlu0 %1248
      %1251 = vset.pattern.permute.xlu0 3
      %1252 = vperm.xlu0 %1251, %v564
      %v1253 = vpop.permute.xlu0 %1252
      %1255 = vset.pattern.permute.xlu0 3
      %1256 = vperm.xlu0 %1255, %v565
      %v1257 = vpop.permute.xlu0 %1256
      %1259 = vset.pattern.permute.xlu0 3
      %1260 = vperm.xlu0 %1259, %v566
      %v1261 = vpop.permute.xlu0 %1260
      %1263 = vset.pattern.permute.xlu0 3
      %1264 = vperm.xlu0 %1263, %v567
      %v1265 = vpop.permute.xlu0 %1264
      %1267 = vset.pattern.permute.xlu0 3
      %1268 = vperm.xlu0 %1267, %v568
      %v1269 = vpop.permute.xlu0 %1268
      %1271 = vset.pattern.permute.xlu0 3
      %1272 = vperm.xlu0 %1271, %v569
      %v1273 = vpop.permute.xlu0 %1272
      %1275 = vset.pattern.permute.xlu0 3
      %1276 = vperm.xlu0 %1275, %v570
      %v1277 = vpop.permute.xlu0 %1276
      %1279 = vset.pattern.permute.xlu0 3
      %1280 = vperm.xlu0 %1279, %v571
      %v1281 = vpop.permute.xlu0 %1280
      %1283 = vset.pattern.permute.xlu0 3
      %1284 = vperm.xlu0 %1283, %v572
      %v1285 = vpop.permute.xlu0 %1284
      %1287 = vset.pattern.permute.xlu0 3
      %1288 = vperm.xlu0 %1287, %v573
      %v1289 = vpop.permute.xlu0 %1288
      %1291 = vset.pattern.permute.xlu0 3
      %1292 = vperm.xlu0 %1291, %v574
      %v1293 = vpop.permute.xlu0 %1292
      %1295 = vset.pattern.permute.xlu0 3
      %1296 = vperm.xlu0 %1295, %v575
      %v1297 = vpop.permute.xlu0 %1296
      %1299 = vset.pattern.permute.xlu0 3
      %1300 = vperm.xlu0 %1299, %v576
      %v1301 = vpop.permute.xlu0 %1300
      %1303 = vset.pattern.permute.xlu0 3
      %1304 = vperm.xlu0 %1303, %v577
      %v1305 = vpop.permute.xlu0 %1304
      %1307 = vset.pattern.permute.xlu0 3
      %1308 = vperm.xlu0 %1307, %v578
      %v1309 = vpop.permute.xlu0 %1308
      %1311 = vset.pattern.permute.xlu0 3
      %1312 = vperm.xlu0 %1311, %v579
      %v1313 = vpop.permute.xlu0 %1312
      %1315 = vset.pattern.permute.xlu0 3
      %1316 = vperm.xlu0 %1315, %v580
      %v1317 = vpop.permute.xlu0 %1316
      %1319 = vset.pattern.permute.xlu0 3
      %1320 = vperm.xlu0 %1319, %v581
      %v1321 = vpop.permute.xlu0 %1320
      %1323 = vset.pattern.permute.xlu0 3
      %1324 = vperm.xlu0 %1323, %v582
      %v1325 = vpop.permute.xlu0 %1324
      %1327 = vset.pattern.permute.xlu0 3
      %1328 = vperm.xlu0 %1327, %v583
      %v1329 = vpop.permute.xlu0 %1328
      %1331 = vset.pattern.permute.xlu0 3
      %1332 = vperm.xlu0 %1331, %v584
      %v1333 = vpop.permute.xlu0 %1332
      %1335 = vset.pattern.permute.xlu0 3
      %1336 = vperm.xlu0 %1335, %v585
      %v1337 = vpop.permute.xlu0 %1336
      %1339 = vset.pattern.permute.xlu0 3
      %1340 = vperm.xlu0 %1339, %v586
      %v1341 = vpop.permute.xlu0 %1340
      %v1343 = vlaneseq
      %v1344 = vshrl.u32 %v1343, 7
      %v1345 = vsub.s32 3, %v1344
      %v1346 = vrot.slane %v587, %v1345
      %v1347 = vmul.f32 %v1217, %v1346
      %v1348 = vmul.f32 %v1221, %v1346
      %v1349 = vmul.f32 %v1225, %v1346
      %v1350 = vmul.f32 %v1229, %v1346
      %v1351 = vmul.f32 %v1233, %v1346
      %v1352 = vmul.f32 %v1237, %v1346
      %v1353 = vmul.f32 %v1241, %v1346
      %v1354 = vmul.f32 %v1245, %v1346
      %v1355 = vmul.f32 %v1249, %v1346
      %v1356 = vmul.f32 %v1253, %v1346
      %v1357 = vmul.f32 %v1257, %v1346
      %v1358 = vmul.f32 %v1261, %v1346
      %v1359 = vmul.f32 %v1265, %v1346
      %v1360 = vmul.f32 %v1269, %v1346
      %v1361 = vmul.f32 %v1273, %v1346
      %v1362 = vmul.f32 %v1277, %v1346
      %v1363 = vmul.f32 %v1281, %v1346
      %v1364 = vmul.f32 %v1285, %v1346
      %v1365 = vmul.f32 %v1289, %v1346
      %v1366 = vmul.f32 %v1293, %v1346
      %v1367 = vmul.f32 %v1297, %v1346
      %v1368 = vmul.f32 %v1301, %v1346
      %v1369 = vmul.f32 %v1305, %v1346
      %v1370 = vmul.f32 %v1309, %v1346
      %v1371 = vmul.f32 %v1313, %v1346
      %v1372 = vmul.f32 %v1317, %v1346
      %v1373 = vmul.f32 %v1321, %v1346
      %v1374 = vmul.f32 %v1325, %v1346
      %v1375 = vmul.f32 %v1329, %v1346
      %v1376 = vmul.f32 %v1333, %v1346
      %v1377 = vmul.f32 %v1337, %v1346
      %v1378 = vmul.f32 %v1341, %v1346
      %v1379 = vadd.f32 %v1183, %v1347
      %v1380 = vadd.f32 %v1184, %v1348
      %v1381 = vadd.f32 %v1185, %v1349
      %v1382 = vadd.f32 %v1186, %v1350
      %v1383 = vadd.f32 %v1187, %v1351
      %v1384 = vadd.f32 %v1188, %v1352
      %v1385 = vadd.f32 %v1189, %v1353
      %v1386 = vadd.f32 %v1190, %v1354
      %v1387 = vadd.f32 %v1191, %v1355
      %v1388 = vadd.f32 %v1192, %v1356
      %v1389 = vadd.f32 %v1193, %v1357
      %v1390 = vadd.f32 %v1194, %v1358
      %v1391 = vadd.f32 %v1195, %v1359
      %v1392 = vadd.f32 %v1196, %v1360
      %v1393 = vadd.f32 %v1197, %v1361
      %v1394 = vadd.f32 %v1198, %v1362
      %v1395 = vadd.f32 %v1199, %v1363
      %v1396 = vadd.f32 %v1200, %v1364
      %v1397 = vadd.f32 %v1201, %v1365
      %v1398 = vadd.f32 %v1202, %v1366
      %v1399 = vadd.f32 %v1203, %v1367
      %v1400 = vadd.f32 %v1204, %v1368
      %v1401 = vadd.f32 %v1205, %v1369
      %v1402 = vadd.f32 %v1206, %v1370
      %v1403 = vadd.f32 %v1207, %v1371
      %v1404 = vadd.f32 %v1208, %v1372
      %v1405 = vadd.f32 %v1209, %v1373
      %v1406 = vadd.f32 %v1210, %v1374
      %v1407 = vadd.f32 %v1211, %v1375
      %v1408 = vadd.f32 %v1212, %v1376
      %v1409 = vadd.f32 %v1213, %v1377
      %v1410 = vadd.f32 %v1214, %v1378
      loop: start=0, step=1, limit=2
      $region89: #{tpu_custom_call.1} parent=87 // loop_pre_header
        _
      $region90: #{tpu_custom_call.1} parent=87 // loop_header
        %s1412 = sphi 0, %s1416
        %p1413 = scmp.ge.s32.totalorder %s1412, 2
        %v1417 = vphi %v1379, %v4062
        %v1418 = vphi %v1380, %v4063
        %v1419 = vphi %v1381, %v4064
        %v1420 = vphi %v1382, %v4065
        %v1421 = vphi %v1383, %v4066
        %v1422 = vphi %v1384, %v4067
        %v1423 = vphi %v1385, %v4068
        %v1424 = vphi %v1386, %v4069
        %v1425 = vphi %v1387, %v4070
        %v1426 = vphi %v1388, %v4071
        %v1427 = vphi %v1389, %v4072
        %v1428 = vphi %v1390, %v4073
        %v1429 = vphi %v1391, %v4074
        %v1430 = vphi %v1392, %v4075
        %v1431 = vphi %v1393, %v4076
        %v1432 = vphi %v1394, %v4077
        %v1433 = vphi %v1395, %v4078
        %v1434 = vphi %v1396, %v4079
        %v1435 = vphi %v1397, %v4080
        %v1436 = vphi %v1398, %v4081
        %v1437 = vphi %v1399, %v4082
        %v1438 = vphi %v1400, %v4083
        %v1439 = vphi %v1401, %v4084
        %v1440 = vphi %v1402, %v4085
        %v1441 = vphi %v1403, %v4086
        %v1442 = vphi %v1404, %v4087
        %v1443 = vphi %v1405, %v4088
        %v1444 = vphi %v1406, %v4089
        %v1445 = vphi %v1407, %v4090
        %v1446 = vphi %v1408, %v4091
        %v1447 = vphi %v1409, %v4092
        %v1448 = vphi %v1410, %v4093
      $region91: #{tpu_custom_call.1} parent=87 // loop_header_branch
        %1415 = sbr.rel (%p1413) target = $region95
      $region92: #{tpu_custom_call.1} parent=87 // loop_body
        %s1449 = scalar_lea.vmem %s3, %s1412
        %v1450 = vld [vmem:[%s1449] sm:$0x1]
        %s1451 = scalar_lea.vmem %s4, %s1412
        %v1452 = vld [vmem:[%s1451] sm:$0x1]
        %1453 = vadd.xlane.f32.xlu0 %v1417
        %v1454 = vpop.xlane.xlu0 %1453
        %1455 = vadd.xlane.f32.xlu0 %v1418
        %v1456 = vpop.xlane.xlu0 %1455
        %1457 = vadd.xlane.f32.xlu0 %v1419
        %v1458 = vpop.xlane.xlu0 %1457
        %1459 = vadd.xlane.f32.xlu0 %v1420
        %v1460 = vpop.xlane.xlu0 %1459
        %1461 = vadd.xlane.f32.xlu0 %v1421
        %v1462 = vpop.xlane.xlu0 %1461
        %1463 = vadd.xlane.f32.xlu0 %v1422
        %v1464 = vpop.xlane.xlu0 %1463
        %1465 = vadd.xlane.f32.xlu0 %v1423
        %v1466 = vpop.xlane.xlu0 %1465
        %1467 = vadd.xlane.f32.xlu0 %v1424
        %v1468 = vpop.xlane.xlu0 %1467
        %1469 = vadd.xlane.f32.xlu0 %v1425
        %v1470 = vpop.xlane.xlu0 %1469
        %1471 = vadd.xlane.f32.xlu0 %v1426
        %v1472 = vpop.xlane.xlu0 %1471
        %1473 = vadd.xlane.f32.xlu0 %v1427
        %v1474 = vpop.xlane.xlu0 %1473
        %1475 = vadd.xlane.f32.xlu0 %v1428
        %v1476 = vpop.xlane.xlu0 %1475
        %1477 = vadd.xlane.f32.xlu0 %v1429
        %v1478 = vpop.xlane.xlu0 %1477
        %1479 = vadd.xlane.f32.xlu0 %v1430
        %v1480 = vpop.xlane.xlu0 %1479
        %1481 = vadd.xlane.f32.xlu0 %v1431
        %v1482 = vpop.xlane.xlu0 %1481
        %1483 = vadd.xlane.f32.xlu0 %v1432
        %v1484 = vpop.xlane.xlu0 %1483
        %1485 = vadd.xlane.f32.xlu0 %v1433
        %v1486 = vpop.xlane.xlu0 %1485
        %1487 = vadd.xlane.f32.xlu0 %v1434
        %v1488 = vpop.xlane.xlu0 %1487
        %1489 = vadd.xlane.f32.xlu0 %v1435
        %v1490 = vpop.xlane.xlu0 %1489
        %1491 = vadd.xlane.f32.xlu0 %v1436
        %v1492 = vpop.xlane.xlu0 %1491
        %1493 = vadd.xlane.f32.xlu0 %v1437
        %v1494 = vpop.xlane.xlu0 %1493
        %1495 = vadd.xlane.f32.xlu0 %v1438
        %v1496 = vpop.xlane.xlu0 %1495
        %1497 = vadd.xlane.f32.xlu0 %v1439
        %v1498 = vpop.xlane.xlu0 %1497
        %1499 = vadd.xlane.f32.xlu0 %v1440
        %v1500 = vpop.xlane.xlu0 %1499
        %1501 = vadd.xlane.f32.xlu0 %v1441
        %v1502 = vpop.xlane.xlu0 %1501
        %1503 = vadd.xlane.f32.xlu0 %v1442
        %v1504 = vpop.xlane.xlu0 %1503
        %1505 = vadd.xlane.f32.xlu0 %v1443
        %v1506 = vpop.xlane.xlu0 %1505
        %1507 = vadd.xlane.f32.xlu0 %v1444
        %v1508 = vpop.xlane.xlu0 %1507
        %1509 = vadd.xlane.f32.xlu0 %v1445
        %v1510 = vpop.xlane.xlu0 %1509
        %1511 = vadd.xlane.f32.xlu0 %v1446
        %v1512 = vpop.xlane.xlu0 %1511
        %1513 = vadd.xlane.f32.xlu0 %v1447
        %v1514 = vpop.xlane.xlu0 %1513
        %1515 = vadd.xlane.f32.xlu0 %v1448
        %v1516 = vpop.xlane.xlu0 %1515
        %v1517 = vrcp.pop 128.0
        %v1518 = vmul.f32 %v1454, %v1517
        %v1519 = vmul.f32 %v1456, %v1517
        %v1520 = vmul.f32 %v1458, %v1517
        %v1521 = vmul.f32 %v1460, %v1517
        %v1522 = vmul.f32 %v1462, %v1517
        %v1523 = vmul.f32 %v1464, %v1517
        %v1524 = vmul.f32 %v1466, %v1517
        %v1525 = vmul.f32 %v1468, %v1517
        %v1526 = vmul.f32 %v1470, %v1517
        %v1527 = vmul.f32 %v1472, %v1517
        %v1528 = vmul.f32 %v1474, %v1517
        %v1529 = vmul.f32 %v1476, %v1517
        %v1530 = vmul.f32 %v1478, %v1517
        %v1531 = vmul.f32 %v1480, %v1517
        %v1532 = vmul.f32 %v1482, %v1517
        %v1533 = vmul.f32 %v1484, %v1517
        %v1534 = vmul.f32 %v1486, %v1517
        %v1535 = vmul.f32 %v1488, %v1517
        %v1536 = vmul.f32 %v1490, %v1517
        %v1537 = vmul.f32 %v1492, %v1517
        %v1538 = vmul.f32 %v1494, %v1517
        %v1539 = vmul.f32 %v1496, %v1517
        %v1540 = vmul.f32 %v1498, %v1517
        %v1541 = vmul.f32 %v1500, %v1517
        %v1542 = vmul.f32 %v1502, %v1517
        %v1543 = vmul.f32 %v1504, %v1517
        %v1544 = vmul.f32 %v1506, %v1517
        %v1545 = vmul.f32 %v1508, %v1517
        %v1546 = vmul.f32 %v1510, %v1517
        %v1547 = vmul.f32 %v1512, %v1517
        %v1548 = vmul.f32 %v1514, %v1517
        %v1549 = vmul.f32 %v1516, %v1517
        %v1550 = vsub.f32 %v1417, %v1518
        %v1551 = vsub.f32 %v1418, %v1519
        %v1552 = vsub.f32 %v1419, %v1520
        %v1553 = vsub.f32 %v1420, %v1521
        %v1554 = vsub.f32 %v1421, %v1522
        %v1555 = vsub.f32 %v1422, %v1523
        %v1556 = vsub.f32 %v1423, %v1524
        %v1557 = vsub.f32 %v1424, %v1525
        %v1558 = vsub.f32 %v1425, %v1526
        %v1559 = vsub.f32 %v1426, %v1527
        %v1560 = vsub.f32 %v1427, %v1528
        %v1561 = vsub.f32 %v1428, %v1529
        %v1562 = vsub.f32 %v1429, %v1530
        %v1563 = vsub.f32 %v1430, %v1531
        %v1564 = vsub.f32 %v1431, %v1532
        %v1565 = vsub.f32 %v1432, %v1533
        %v1566 = vsub.f32 %v1433, %v1534
        %v1567 = vsub.f32 %v1434, %v1535
        %v1568 = vsub.f32 %v1435, %v1536
        %v1569 = vsub.f32 %v1436, %v1537
        %v1570 = vsub.f32 %v1437, %v1538
        %v1571 = vsub.f32 %v1438, %v1539
        %v1572 = vsub.f32 %v1439, %v1540
        %v1573 = vsub.f32 %v1440, %v1541
        %v1574 = vsub.f32 %v1441, %v1542
        %v1575 = vsub.f32 %v1442, %v1543
        %v1576 = vsub.f32 %v1443, %v1544
        %v1577 = vsub.f32 %v1444, %v1545
        %v1578 = vsub.f32 %v1445, %v1546
        %v1579 = vsub.f32 %v1446, %v1547
        %v1580 = vsub.f32 %v1447, %v1548
        %v1581 = vsub.f32 %v1448, %v1549
        %v1582 = vmul.f32 %v1550, %v1550
        %v1583 = vmul.f32 %v1551, %v1551
        %v1584 = vmul.f32 %v1552, %v1552
        %v1585 = vmul.f32 %v1553, %v1553
        %v1586 = vmul.f32 %v1554, %v1554
        %v1587 = vmul.f32 %v1555, %v1555
        %v1588 = vmul.f32 %v1556, %v1556
        %v1589 = vmul.f32 %v1557, %v1557
        %v1590 = vmul.f32 %v1558, %v1558
        %v1591 = vmul.f32 %v1559, %v1559
        %v1592 = vmul.f32 %v1560, %v1560
        %v1593 = vmul.f32 %v1561, %v1561
        %v1594 = vmul.f32 %v1562, %v1562
        %v1595 = vmul.f32 %v1563, %v1563
        %v1596 = vmul.f32 %v1564, %v1564
        %v1597 = vmul.f32 %v1565, %v1565
        %v1598 = vmul.f32 %v1566, %v1566
        %v1599 = vmul.f32 %v1567, %v1567
        %v1600 = vmul.f32 %v1568, %v1568
        %v1601 = vmul.f32 %v1569, %v1569
        %v1602 = vmul.f32 %v1570, %v1570
        %v1603 = vmul.f32 %v1571, %v1571
        %v1604 = vmul.f32 %v1572, %v1572
        %v1605 = vmul.f32 %v1573, %v1573
        %v1606 = vmul.f32 %v1574, %v1574
        %v1607 = vmul.f32 %v1575, %v1575
        %v1608 = vmul.f32 %v1576, %v1576
        %v1609 = vmul.f32 %v1577, %v1577
        %v1610 = vmul.f32 %v1578, %v1578
        %v1611 = vmul.f32 %v1579, %v1579
        %v1612 = vmul.f32 %v1580, %v1580
        %v1613 = vmul.f32 %v1581, %v1581
        %1614 = vadd.xlane.f32.xlu0 %v1582
        %v1615 = vpop.xlane.xlu0 %1614
        %1616 = vadd.xlane.f32.xlu0 %v1583
        %v1617 = vpop.xlane.xlu0 %1616
        %1618 = vadd.xlane.f32.xlu0 %v1584
        %v1619 = vpop.xlane.xlu0 %1618
        %1620 = vadd.xlane.f32.xlu0 %v1585
        %v1621 = vpop.xlane.xlu0 %1620
        %1622 = vadd.xlane.f32.xlu0 %v1586
        %v1623 = vpop.xlane.xlu0 %1622
        %1624 = vadd.xlane.f32.xlu0 %v1587
        %v1625 = vpop.xlane.xlu0 %1624
        %1626 = vadd.xlane.f32.xlu0 %v1588
        %v1627 = vpop.xlane.xlu0 %1626
        %1628 = vadd.xlane.f32.xlu0 %v1589
        %v1629 = vpop.xlane.xlu0 %1628
        %1630 = vadd.xlane.f32.xlu0 %v1590
        %v1631 = vpop.xlane.xlu0 %1630
        %1632 = vadd.xlane.f32.xlu0 %v1591
        %v1633 = vpop.xlane.xlu0 %1632
        %1634 = vadd.xlane.f32.xlu0 %v1592
        %v1635 = vpop.xlane.xlu0 %1634
        %1636 = vadd.xlane.f32.xlu0 %v1593
        %v1637 = vpop.xlane.xlu0 %1636
        %1638 = vadd.xlane.f32.xlu0 %v1594
        %v1639 = vpop.xlane.xlu0 %1638
        %1640 = vadd.xlane.f32.xlu0 %v1595
        %v1641 = vpop.xlane.xlu0 %1640
        %1642 = vadd.xlane.f32.xlu0 %v1596
        %v1643 = vpop.xlane.xlu0 %1642
        %1644 = vadd.xlane.f32.xlu0 %v1597
        %v1645 = vpop.xlane.xlu0 %1644
        %1646 = vadd.xlane.f32.xlu0 %v1598
        %v1647 = vpop.xlane.xlu0 %1646
        %1648 = vadd.xlane.f32.xlu0 %v1599
        %v1649 = vpop.xlane.xlu0 %1648
        %1650 = vadd.xlane.f32.xlu0 %v1600
        %v1651 = vpop.xlane.xlu0 %1650
        %1652 = vadd.xlane.f32.xlu0 %v1601
        %v1653 = vpop.xlane.xlu0 %1652
        %1654 = vadd.xlane.f32.xlu0 %v1602
        %v1655 = vpop.xlane.xlu0 %1654
        %1656 = vadd.xlane.f32.xlu0 %v1603
        %v1657 = vpop.xlane.xlu0 %1656
        %1658 = vadd.xlane.f32.xlu0 %v1604
        %v1659 = vpop.xlane.xlu0 %1658
        %1660 = vadd.xlane.f32.xlu0 %v1605
        %v1661 = vpop.xlane.xlu0 %1660
        %1662 = vadd.xlane.f32.xlu0 %v1606
        %v1663 = vpop.xlane.xlu0 %1662
        %1664 = vadd.xlane.f32.xlu0 %v1607
        %v1665 = vpop.xlane.xlu0 %1664
        %1666 = vadd.xlane.f32.xlu0 %v1608
        %v1667 = vpop.xlane.xlu0 %1666
        %1668 = vadd.xlane.f32.xlu0 %v1609
        %v1669 = vpop.xlane.xlu0 %1668
        %1670 = vadd.xlane.f32.xlu0 %v1610
        %v1671 = vpop.xlane.xlu0 %1670
        %1672 = vadd.xlane.f32.xlu0 %v1611
        %v1673 = vpop.xlane.xlu0 %1672
        %1674 = vadd.xlane.f32.xlu0 %v1612
        %v1675 = vpop.xlane.xlu0 %1674
        %1676 = vadd.xlane.f32.xlu0 %v1613
        %v1677 = vpop.xlane.xlu0 %1676
        %v1678 = vmul.f32 %v1615, %v1517
        %v1679 = vmul.f32 %v1617, %v1517
        %v1680 = vmul.f32 %v1619, %v1517
        %v1681 = vmul.f32 %v1621, %v1517
        %v1682 = vmul.f32 %v1623, %v1517
        %v1683 = vmul.f32 %v1625, %v1517
        %v1684 = vmul.f32 %v1627, %v1517
        %v1685 = vmul.f32 %v1629, %v1517
        %v1686 = vmul.f32 %v1631, %v1517
        %v1687 = vmul.f32 %v1633, %v1517
        %v1688 = vmul.f32 %v1635, %v1517
        %v1689 = vmul.f32 %v1637, %v1517
        %v1690 = vmul.f32 %v1639, %v1517
        %v1691 = vmul.f32 %v1641, %v1517
        %v1692 = vmul.f32 %v1643, %v1517
        %v1693 = vmul.f32 %v1645, %v1517
        %v1694 = vmul.f32 %v1647, %v1517
        %v1695 = vmul.f32 %v1649, %v1517
        %v1696 = vmul.f32 %v1651, %v1517
        %v1697 = vmul.f32 %v1653, %v1517
        %v1698 = vmul.f32 %v1655, %v1517
        %v1699 = vmul.f32 %v1657, %v1517
        %v1700 = vmul.f32 %v1659, %v1517
        %v1701 = vmul.f32 %v1661, %v1517
        %v1702 = vmul.f32 %v1663, %v1517
        %v1703 = vmul.f32 %v1665, %v1517
        %v1704 = vmul.f32 %v1667, %v1517
        %v1705 = vmul.f32 %v1669, %v1517
        %v1706 = vmul.f32 %v1671, %v1517
        %v1707 = vmul.f32 %v1673, %v1517
        %v1708 = vmul.f32 %v1675, %v1517
        %v1709 = vmul.f32 %v1677, %v1517
        %v1710 = vadd.f32 %v1678, 1e-05
        %v1711 = vadd.f32 %v1679, 1e-05
        %v1712 = vadd.f32 %v1680, 1e-05
        %v1713 = vadd.f32 %v1681, 1e-05
        %v1714 = vadd.f32 %v1682, 1e-05
        %v1715 = vadd.f32 %v1683, 1e-05
        %v1716 = vadd.f32 %v1684, 1e-05
        %v1717 = vadd.f32 %v1685, 1e-05
        %v1718 = vadd.f32 %v1686, 1e-05
        %v1719 = vadd.f32 %v1687, 1e-05
        %v1720 = vadd.f32 %v1688, 1e-05
        %v1721 = vadd.f32 %v1689, 1e-05
        %v1722 = vadd.f32 %v1690, 1e-05
        %v1723 = vadd.f32 %v1691, 1e-05
        %v1724 = vadd.f32 %v1692, 1e-05
        %v1725 = vadd.f32 %v1693, 1e-05
        %v1726 = vadd.f32 %v1694, 1e-05
        %v1727 = vadd.f32 %v1695, 1e-05
        %v1728 = vadd.f32 %v1696, 1e-05
        %v1729 = vadd.f32 %v1697, 1e-05
        %v1730 = vadd.f32 %v1698, 1e-05
        %v1731 = vadd.f32 %v1699, 1e-05
        %v1732 = vadd.f32 %v1700, 1e-05
        %v1733 = vadd.f32 %v1701, 1e-05
        %v1734 = vadd.f32 %v1702, 1e-05
        %v1735 = vadd.f32 %v1703, 1e-05
        %v1736 = vadd.f32 %v1704, 1e-05
        %v1737 = vadd.f32 %v1705, 1e-05
        %v1738 = vadd.f32 %v1706, 1e-05
        %v1739 = vadd.f32 %v1707, 1e-05
        %v1740 = vadd.f32 %v1708, 1e-05
        %v1741 = vadd.f32 %v1709, 1e-05
        %v1742 = vrsqrt.pop %v1710
        %v1743 = vrsqrt.pop %v1711
        %v1744 = vrsqrt.pop %v1712
        %v1745 = vrsqrt.pop %v1713
        %v1746 = vrsqrt.pop %v1714
        %v1747 = vrsqrt.pop %v1715
        %v1748 = vrsqrt.pop %v1716
        %v1749 = vrsqrt.pop %v1717
        %v1750 = vrsqrt.pop %v1718
        %v1751 = vrsqrt.pop %v1719
        %v1752 = vrsqrt.pop %v1720
        %v1753 = vrsqrt.pop %v1721
        %v1754 = vrsqrt.pop %v1722
        %v1755 = vrsqrt.pop %v1723
        %v1756 = vrsqrt.pop %v1724
        %v1757 = vrsqrt.pop %v1725
        %v1758 = vrsqrt.pop %v1726
        %v1759 = vrsqrt.pop %v1727
        %v1760 = vrsqrt.pop %v1728
        %v1761 = vrsqrt.pop %v1729
        %v1762 = vrsqrt.pop %v1730
        %v1763 = vrsqrt.pop %v1731
        %v1764 = vrsqrt.pop %v1732
        %v1765 = vrsqrt.pop %v1733
        %v1766 = vrsqrt.pop %v1734
        %v1767 = vrsqrt.pop %v1735
        %v1768 = vrsqrt.pop %v1736
        %v1769 = vrsqrt.pop %v1737
        %v1770 = vrsqrt.pop %v1738
        %v1771 = vrsqrt.pop %v1739
        %v1772 = vrsqrt.pop %v1740
        %v1773 = vrsqrt.pop %v1741
        %v1774 = vmul.f32 %v1550, %v1742
        %v1775 = vmul.f32 %v1551, %v1743
        %v1776 = vmul.f32 %v1552, %v1744
        %v1777 = vmul.f32 %v1553, %v1745
        %v1778 = vmul.f32 %v1554, %v1746
        %v1779 = vmul.f32 %v1555, %v1747
        %v1780 = vmul.f32 %v1556, %v1748
        %v1781 = vmul.f32 %v1557, %v1749
        %v1782 = vmul.f32 %v1558, %v1750
        %v1783 = vmul.f32 %v1559, %v1751
        %v1784 = vmul.f32 %v1560, %v1752
        %v1785 = vmul.f32 %v1561, %v1753
        %v1786 = vmul.f32 %v1562, %v1754
        %v1787 = vmul.f32 %v1563, %v1755
        %v1788 = vmul.f32 %v1564, %v1756
        %v1789 = vmul.f32 %v1565, %v1757
        %v1790 = vmul.f32 %v1566, %v1758
        %v1791 = vmul.f32 %v1567, %v1759
        %v1792 = vmul.f32 %v1568, %v1760
        %v1793 = vmul.f32 %v1569, %v1761
        %v1794 = vmul.f32 %v1570, %v1762
        %v1795 = vmul.f32 %v1571, %v1763
        %v1796 = vmul.f32 %v1572, %v1764
        %v1797 = vmul.f32 %v1573, %v1765
        %v1798 = vmul.f32 %v1574, %v1766
        %v1799 = vmul.f32 %v1575, %v1767
        %v1800 = vmul.f32 %v1576, %v1768
        %v1801 = vmul.f32 %v1577, %v1769
        %v1802 = vmul.f32 %v1578, %v1770
        %v1803 = vmul.f32 %v1579, %v1771
        %v1804 = vmul.f32 %v1580, %v1772
        %v1805 = vmul.f32 %v1581, %v1773
        %v1807 = vlaneseq
        %v1808 = vshrl.u32 %v1807, 7
        %v1809 = vsub.s32 0, %v1808
        %v1810 = vrot.slane %v1450, %v1809
        %v1812 = vmul.f32 %v1774, %v1810
        %v1813 = vmul.f32 %v1775, %v1810
        %v1814 = vmul.f32 %v1776, %v1810
        %v1815 = vmul.f32 %v1777, %v1810
        %v1816 = vmul.f32 %v1778, %v1810
        %v1817 = vmul.f32 %v1779, %v1810
        %v1818 = vmul.f32 %v1780, %v1810
        %v1819 = vmul.f32 %v1781, %v1810
        %v1820 = vmul.f32 %v1782, %v1810
        %v1821 = vmul.f32 %v1783, %v1810
        %v1822 = vmul.f32 %v1784, %v1810
        %v1823 = vmul.f32 %v1785, %v1810
        %v1824 = vmul.f32 %v1786, %v1810
        %v1825 = vmul.f32 %v1787, %v1810
        %v1826 = vmul.f32 %v1788, %v1810
        %v1827 = vmul.f32 %v1789, %v1810
        %v1828 = vmul.f32 %v1790, %v1810
        %v1829 = vmul.f32 %v1791, %v1810
        %v1830 = vmul.f32 %v1792, %v1810
        %v1831 = vmul.f32 %v1793, %v1810
        %v1832 = vmul.f32 %v1794, %v1810
        %v1833 = vmul.f32 %v1795, %v1810
        %v1834 = vmul.f32 %v1796, %v1810
        %v1835 = vmul.f32 %v1797, %v1810
        %v1836 = vmul.f32 %v1798, %v1810
        %v1837 = vmul.f32 %v1799, %v1810
        %v1838 = vmul.f32 %v1800, %v1810
        %v1839 = vmul.f32 %v1801, %v1810
        %v1840 = vmul.f32 %v1802, %v1810
        %v1841 = vmul.f32 %v1803, %v1810
        %v1842 = vmul.f32 %v1804, %v1810
        %v1843 = vmul.f32 %v1805, %v1810
        %v1845 = vlaneseq
        %v1846 = vshrl.u32 %v1845, 7
        %v1847 = vsub.s32 0, %v1846
        %v1848 = vrot.slane %v1452, %v1847
        %v1850 = vadd.f32 %v1812, %v1848
        %v1851 = vadd.f32 %v1813, %v1848
        %v1852 = vadd.f32 %v1814, %v1848
        %v1853 = vadd.f32 %v1815, %v1848
        %v1854 = vadd.f32 %v1816, %v1848
        %v1855 = vadd.f32 %v1817, %v1848
        %v1856 = vadd.f32 %v1818, %v1848
        %v1857 = vadd.f32 %v1819, %v1848
        %v1858 = vadd.f32 %v1820, %v1848
        %v1859 = vadd.f32 %v1821, %v1848
        %v1860 = vadd.f32 %v1822, %v1848
        %v1861 = vadd.f32 %v1823, %v1848
        %v1862 = vadd.f32 %v1824, %v1848
        %v1863 = vadd.f32 %v1825, %v1848
        %v1864 = vadd.f32 %v1826, %v1848
        %v1865 = vadd.f32 %v1827, %v1848
        %v1866 = vadd.f32 %v1828, %v1848
        %v1867 = vadd.f32 %v1829, %v1848
        %v1868 = vadd.f32 %v1830, %v1848
        %v1869 = vadd.f32 %v1831, %v1848
        %v1870 = vadd.f32 %v1832, %v1848
        %v1871 = vadd.f32 %v1833, %v1848
        %v1872 = vadd.f32 %v1834, %v1848
        %v1873 = vadd.f32 %v1835, %v1848
        %v1874 = vadd.f32 %v1836, %v1848
        %v1875 = vadd.f32 %v1837, %v1848
        %v1876 = vadd.f32 %v1838, %v1848
        %v1877 = vadd.f32 %v1839, %v1848
        %v1878 = vadd.f32 %v1840, %v1848
        %v1879 = vadd.f32 %v1841, %v1848
        %v1880 = vadd.f32 %v1842, %v1848
        %v1881 = vadd.f32 %v1843, %v1848
        %v1882 = vpack.c.bf16 %v1851, %v1850
        %v1883 = vpack.c.bf16 %v1853, %v1852
        %v1884 = vpack.c.bf16 %v1855, %v1854
        %v1885 = vpack.c.bf16 %v1857, %v1856
        %v1886 = vpack.c.bf16 %v1859, %v1858
        %v1887 = vpack.c.bf16 %v1861, %v1860
        %v1888 = vpack.c.bf16 %v1863, %v1862
        %v1889 = vpack.c.bf16 %v1865, %v1864
        %v1890 = vpack.c.bf16 %v1867, %v1866
        %v1891 = vpack.c.bf16 %v1869, %v1868
        %v1892 = vpack.c.bf16 %v1871, %v1870
        %v1893 = vpack.c.bf16 %v1873, %v1872
        %v1894 = vpack.c.bf16 %v1875, %v1874
        %v1895 = vpack.c.bf16 %v1877, %v1876
        %v1896 = vpack.c.bf16 %v1879, %v1878
        %v1897 = vpack.c.bf16 %v1881, %v1880
        %s1898 = smul.u32 %s1412, 32
        %s1899 = smul.addr %s1898, 4
        %s1900 = scalar_lea.vmem %s5, %s1899
        %v1901 = vld [vmem:[%s1900] sm:$0xff]
        %v1902 = vld [vmem:[%s1900 + $0x8] sm:$0xff]
        %v1903 = vld [vmem:[%s1900 + $0x10] sm:$0xff]
        %v1904 = vld [vmem:[%s1900 + $0x18] sm:$0xff]
        %v1905 = vld [vmem:[%s1900 + $0x20] sm:$0xff]
        %v1906 = vld [vmem:[%s1900 + $0x28] sm:$0xff]
        %v1907 = vld [vmem:[%s1900 + $0x30] sm:$0xff]
        %v1908 = vld [vmem:[%s1900 + $0x38] sm:$0xff]
        %v1909 = vld [vmem:[%s1900 + $0x40] sm:$0xff]
        %v1910 = vld [vmem:[%s1900 + $0x48] sm:$0xff]
        %v1911 = vld [vmem:[%s1900 + $0x50] sm:$0xff]
        %v1912 = vld [vmem:[%s1900 + $0x58] sm:$0xff]
        %v1913 = vld [vmem:[%s1900 + $0x60] sm:$0xff]
        %v1914 = vld [vmem:[%s1900 + $0x68] sm:$0xff]
        %v1915 = vld [vmem:[%s1900 + $0x70] sm:$0xff]
        %v1916 = vld [vmem:[%s1900 + $0x78] sm:$0xff]
        %s1917 = smul.u32 %s1412, 2
        %s1918 = scalar_lea.vmem %s6, %s1917
        %v1919 = vld [vmem:[%s1918] sm:$0x3]
        %v1921 = vlaneseq
        %v1922 = vshrl.u32 %v1921, 7
        %v1923 = vsub.s32 0, %v1922
        %v1924 = vrot.slane %v1919, %v1923
        %v1925 = vlaneseq
        %v1926 = vshrl.u32 %v1925, 7
        %v1927 = vsub.s32 1, %v1926
        %v1928 = vrot.slane %v1919, %v1927
        %v1947 = vunpack.c.l.b16 %v1901
        %v1948 = vunpack.c.h.b16 %v1901
        %v1949 = vunpack.c.l.b16 %v1902
        %v1950 = vunpack.c.h.b16 %v1902
        %v1951 = vunpack.c.l.b16 %v1903
        %v1952 = vunpack.c.h.b16 %v1903
        %v1953 = vunpack.c.l.b16 %v1904
        %v1954 = vunpack.c.h.b16 %v1904
        %v1955 = vunpack.c.l.b16 %v1905
        %v1956 = vunpack.c.h.b16 %v1905
        %v1957 = vunpack.c.l.b16 %v1906
        %v1958 = vunpack.c.h.b16 %v1906
        %v1959 = vunpack.c.l.b16 %v1907
        %v1960 = vunpack.c.h.b16 %v1907
        %v1961 = vunpack.c.l.b16 %v1908
        %v1962 = vunpack.c.h.b16 %v1908
        %v1963 = vunpack.c.l.b16 %v1909
        %v1964 = vunpack.c.h.b16 %v1909
        %v1965 = vunpack.c.l.b16 %v1910
        %v1966 = vunpack.c.h.b16 %v1910
        %v1967 = vunpack.c.l.b16 %v1911
        %v1968 = vunpack.c.h.b16 %v1911
        %v1969 = vunpack.c.l.b16 %v1912
        %v1970 = vunpack.c.h.b16 %v1912
        %v1971 = vunpack.c.l.b16 %v1913
        %v1972 = vunpack.c.h.b16 %v1913
        %v1973 = vunpack.c.l.b16 %v1914
        %v1974 = vunpack.c.h.b16 %v1914
        %v1975 = vunpack.c.l.b16 %v1915
        %v1976 = vunpack.c.h.b16 %v1915
        %v1977 = vunpack.c.l.b16 %v1916
        %v1978 = vunpack.c.h.b16 %v1916
        %v1979 = vpack.c.b16 %v1949, %v1947
        %v1980 = vpack.c.b16 %v1950, %v1948
        %v1981 = vpack.c.b16 %v1953, %v1951
        %v1982 = vpack.c.b16 %v1954, %v1952
        %v1983 = vpack.c.b16 %v1957, %v1955
        %v1984 = vpack.c.b16 %v1958, %v1956
        %v1985 = vpack.c.b16 %v1961, %v1959
        %v1986 = vpack.c.b16 %v1962, %v1960
        %v1987 = vpack.c.b16 %v1965, %v1963
        %v1988 = vpack.c.b16 %v1966, %v1964
        %v1989 = vpack.c.b16 %v1969, %v1967
        %v1990 = vpack.c.b16 %v1970, %v1968
        %v1991 = vpack.c.b16 %v1973, %v1971
        %v1992 = vpack.c.b16 %v1974, %v1972
        %v1993 = vpack.c.b16 %v1977, %v1975
        %v1994 = vpack.c.b16 %v1978, %v1976
        %2011 = vmatprep.subr.bf16.mxu0 %v1980
        %2012 = vmatpush1.bf16.msra.mxu0 %v1979
        %2013 = vmatprep.subr.bf16.mxu0 %v1982
        %2014 = vmatpush1.bf16.msra.mxu0 %v1981
        %2015 = vmatprep.subr.bf16.mxu0 %v1984
        %2016 = vmatpush1.bf16.msra.mxu0 %v1983
        %2017 = vmatprep.subr.bf16.mxu0 %v1986
        %2018 = vmatpush1.bf16.msra.mxu0 %v1985
        %2019 = vmatprep.subr.bf16.mxu0 %v1988
        %2020 = vmatpush1.bf16.msra.mxu0 %v1987
        %2021 = vmatprep.subr.bf16.mxu0 %v1990
        %2022 = vmatpush1.bf16.msra.mxu0 %v1989
        %2023 = vmatprep.subr.bf16.mxu0 %v1992
        %2024 = vmatpush1.bf16.msra.mxu0 %v1991
        %2025 = vmatprep.subr.bf16.mxu0 %v1994
        %2026 = vmatpush1.bf16.msra.mxu0 %v1993
        %2027 = vmatprep.subr.bf16.mxu0 0
        %2028 = vmatpush1.bf16.msra.mxu0 0
        %2029 = vmatprep.subr.bf16.mxu0 0
        %2030 = vmatpush1.bf16.msra.mxu0 0
        %2031 = vmatprep.subr.bf16.mxu0 0
        %2032 = vmatpush1.bf16.msra.mxu0 0
        %2033 = vmatprep.subr.bf16.mxu0 0
        %2034 = vmatpush1.bf16.msra.mxu0 0
        %2035 = vmatprep.subr.bf16.mxu0 0
        %2036 = vmatpush1.bf16.msra.mxu0 0
        %2037 = vmatprep.subr.bf16.mxu0 0
        %2038 = vmatpush1.bf16.msra.mxu0 0
        %2039 = vmatprep.subr.bf16.mxu0 0
        %2040 = vmatpush1.bf16.msra.mxu0 0
        %2041 = vmatprep.subr.bf16.mxu0 0
        %2042 = vmatpush1.bf16.msra.mxu0 0
        %2043 = vmatprep.mubr.bf16.mxu0 0
        %2044 = vmatmul.mubr.bf16.gmra.mrb[0].mxu0 %v1882
        %v2045 = vpop.f32.mrb[0].mxu0
        %v2046 = vadd.f32 %v1924, %v2045
        %v2047 = vpop.f32.mrb[0].mxu0
        %v2048 = vadd.f32 %v1928, %v2047
        %v2049 = vpop.f32.mrb[0].mxu0
        %v2050 = vadd.f32 %v1924, %v2049
        %v2051 = vpop.f32.mrb[0].mxu0
        %v2052 = vadd.f32 %v1928, %v2051
        %2053 = vmatprep.mubr.bf16.mxu0 0
        %2054 = vmatmul.mubr.bf16.gmra.mrb[0].mxu0 %v1883
        %v2055 = vpop.f32.mrb[0].mxu0
        %v2056 = vadd.f32 %v1924, %v2055
        %v2057 = vpop.f32.mrb[0].mxu0
        %v2058 = vadd.f32 %v1928, %v2057
        %v2059 = vpop.f32.mrb[0].mxu0
        %v2060 = vadd.f32 %v1924, %v2059
        %v2061 = vpop.f32.mrb[0].mxu0
        %v2062 = vadd.f32 %v1928, %v2061
        %2063 = vmatprep.mubr.bf16.mxu0 0
        %2064 = vmatmul.mubr.bf16.gmra.mrb[0].mxu0 %v1884
        %v2065 = vpop.f32.mrb[0].mxu0
        %v2066 = vadd.f32 %v1924, %v2065
        %v2067 = vpop.f32.mrb[0].mxu0
        %v2068 = vadd.f32 %v1928, %v2067
        %v2069 = vpop.f32.mrb[0].mxu0
        %v2070 = vadd.f32 %v1924, %v2069
        %v2071 = vpop.f32.mrb[0].mxu0
        %v2072 = vadd.f32 %v1928, %v2071
        %2073 = vmatprep.mubr.bf16.mxu0 0
        %2074 = vmatmul.mubr.bf16.gmra.mrb[0].mxu0 %v1885
        %v2075 = vpop.f32.mrb[0].mxu0
        %v2076 = vadd.f32 %v1924, %v2075
        %v2077 = vpop.f32.mrb[0].mxu0
        %v2078 = vadd.f32 %v1928, %v2077
        %v2079 = vpop.f32.mrb[0].mxu0
        %v2080 = vadd.f32 %v1924, %v2079
        %v2081 = vpop.f32.mrb[0].mxu0
        %v2082 = vadd.f32 %v1928, %v2081
        %2083 = vmatprep.mubr.bf16.mxu0 0
        %2084 = vmatmul.mubr.bf16.gmra.mrb[0].mxu0 %v1886
        %v2085 = vpop.f32.mrb[0].mxu0
        %v2086 = vadd.f32 %v1924, %v2085
        %v2087 = vpop.f32.mrb[0].mxu0
        %v2088 = vadd.f32 %v1928, %v2087
        %v2089 = vpop.f32.mrb[0].mxu0
        %v2090 = vadd.f32 %v1924, %v2089
        %v2091 = vpop.f32.mrb[0].mxu0
        %v2092 = vadd.f32 %v1928, %v2091
        %2093 = vmatprep.mubr.bf16.mxu0 0
        %2094 = vmatmul.mubr.bf16.gmra.mrb[0].mxu0 %v1887
        %v2095 = vpop.f32.mrb[0].mxu0
        %v2096 = vadd.f32 %v1924, %v2095
        %v2097 = vpop.f32.mrb[0].mxu0
        %v2098 = vadd.f32 %v1928, %v2097
        %v2099 = vpop.f32.mrb[0].mxu0
        %v2100 = vadd.f32 %v1924, %v2099
        %v2101 = vpop.f32.mrb[0].mxu0
        %v2102 = vadd.f32 %v1928, %v2101
        %2103 = vmatprep.mubr.bf16.mxu0 0
        %2104 = vmatmul.mubr.bf16.gmra.mrb[0].mxu0 %v1888
        %v2105 = vpop.f32.mrb[0].mxu0
        %v2106 = vadd.f32 %v1924, %v2105
        %v2107 = vpop.f32.mrb[0].mxu0
        %v2108 = vadd.f32 %v1928, %v2107
        %v2109 = vpop.f32.mrb[0].mxu0
        %v2110 = vadd.f32 %v1924, %v2109
        %v2111 = vpop.f32.mrb[0].mxu0
        %v2112 = vadd.f32 %v1928, %v2111
        %2113 = vmatprep.mubr.bf16.mxu0 0
        %2114 = vmatmul.mubr.bf16.gmra.mrb[0].mxu0 %v1889
        %v2115 = vpop.f32.mrb[0].mxu0
        %v2116 = vadd.f32 %v1924, %v2115
        %v2117 = vpop.f32.mrb[0].mxu0
        %v2118 = vadd.f32 %v1928, %v2117
        %v2119 = vpop.f32.mrb[0].mxu0
        %v2120 = vadd.f32 %v1924, %v2119
        %v2121 = vpop.f32.mrb[0].mxu0
        %v2122 = vadd.f32 %v1928, %v2121
        %2123 = vmatprep.mubr.bf16.mxu0 0
        %2124 = vmatmul.mubr.bf16.gmra.mrb[0].mxu0 %v1890
        %v2125 = vpop.f32.mrb[0].mxu0
        %v2126 = vadd.f32 %v1924, %v2125
        %v2127 = vpop.f32.mrb[0].mxu0
        %v2128 = vadd.f32 %v1928, %v2127
        %v2129 = vpop.f32.mrb[0].mxu0
        %v2130 = vadd.f32 %v1924, %v2129
        %v2131 = vpop.f32.mrb[0].mxu0
        %v2132 = vadd.f32 %v1928, %v2131
        %2133 = vmatprep.mubr.bf16.mxu0 0
        %2134 = vmatmul.mubr.bf16.gmra.mrb[0].mxu0 %v1891
        %v2135 = vpop.f32.mrb[0].mxu0
        %v2136 = vadd.f32 %v1924, %v2135
        %v2137 = vpop.f32.mrb[0].mxu0
        %v2138 = vadd.f32 %v1928, %v2137
        %v2139 = vpop.f32.mrb[0].mxu0
        %v2140 = vadd.f32 %v1924, %v2139
        %v2141 = vpop.f32.mrb[0].mxu0
        %v2142 = vadd.f32 %v1928, %v2141
        %2143 = vmatprep.mubr.bf16.mxu0 0
        %2144 = vmatmul.mubr.bf16.gmra.mrb[0].mxu0 %v1892
        %v2145 = vpop.f32.mrb[0].mxu0
        %v2146 = vadd.f32 %v1924, %v2145
        %v2147 = vpop.f32.mrb[0].mxu0
        %v2148 = vadd.f32 %v1928, %v2147
        %v2149 = vpop.f32.mrb[0].mxu0
        %v2150 = vadd.f32 %v1924, %v2149
        %v2151 = vpop.f32.mrb[0].mxu0
        %v2152 = vadd.f32 %v1928, %v2151
        %2153 = vmatprep.mubr.bf16.mxu0 0
        %2154 = vmatmul.mubr.bf16.gmra.mrb[0].mxu0 %v1893
        %v2155 = vpop.f32.mrb[0].mxu0
        %v2156 = vadd.f32 %v1924, %v2155
        %v2157 = vpop.f32.mrb[0].mxu0
        %v2158 = vadd.f32 %v1928, %v2157
        %v2159 = vpop.f32.mrb[0].mxu0
        %v2160 = vadd.f32 %v1924, %v2159
        %v2161 = vpop.f32.mrb[0].mxu0
        %v2162 = vadd.f32 %v1928, %v2161
        %2163 = vmatprep.mubr.bf16.mxu0 0
        %2164 = vmatmul.mubr.bf16.gmra.mrb[0].mxu0 %v1894
        %v2165 = vpop.f32.mrb[0].mxu0
        %v2166 = vadd.f32 %v1924, %v2165
        %v2167 = vpop.f32.mrb[0].mxu0
        %v2168 = vadd.f32 %v1928, %v2167
        %v2169 = vpop.f32.mrb[0].mxu0
        %v2170 = vadd.f32 %v1924, %v2169
        %v2171 = vpop.f32.mrb[0].mxu0
        %v2172 = vadd.f32 %v1928, %v2171
        %2173 = vmatprep.mubr.bf16.mxu0 0
        %2174 = vmatmul.mubr.bf16.gmra.mrb[0].mxu0 %v1895
        %v2175 = vpop.f32.mrb[0].mxu0
        %v2176 = vadd.f32 %v1924, %v2175
        %v2177 = vpop.f32.mrb[0].mxu0
        %v2178 = vadd.f32 %v1928, %v2177
        %v2179 = vpop.f32.mrb[0].mxu0
        %v2180 = vadd.f32 %v1924, %v2179
        %v2181 = vpop.f32.mrb[0].mxu0
        %v2182 = vadd.f32 %v1928, %v2181
        %2183 = vmatprep.mubr.bf16.mxu0 0
        %2184 = vmatmul.mubr.bf16.gmra.mrb[0].mxu0 %v1896
        %v2185 = vpop.f32.mrb[0].mxu0
        %v2186 = vadd.f32 %v1924, %v2185
        %v2187 = vpop.f32.mrb[0].mxu0
        %v2188 = vadd.f32 %v1928, %v2187
        %v2189 = vpop.f32.mrb[0].mxu0
        %v2190 = vadd.f32 %v1924, %v2189
        %v2191 = vpop.f32.mrb[0].mxu0
        %v2192 = vadd.f32 %v1928, %v2191
        %2193 = vmatprep.mubr.bf16.mxu0 0
        %2194 = vmatmul.mubr.bf16.gmra.mrb[0].mxu0 %v1897
        %v2195 = vpop.f32.mrb[0].mxu0
        %v2196 = vadd.f32 %v1924, %v2195
        %v2197 = vpop.f32.mrb[0].mxu0
        %v2198 = vadd.f32 %v1928, %v2197
        %v2199 = vpop.f32.mrb[0].mxu0
        %v2200 = vadd.f32 %v1924, %v2199
        %v2201 = vpop.f32.mrb[0].mxu0
        %v2202 = vadd.f32 %v1928, %v2201
        %2203 = vdwg.mxu0
        %v2204 = vmul.f32 %v2048, 0.5
        %v2205 = vmul.f32 %v2052, 0.5
        %v2206 = vmul.f32 %v2058, 0.5
        %v2207 = vmul.f32 %v2062, 0.5
        %v2208 = vmul.f32 %v2068, 0.5
        %v2209 = vmul.f32 %v2072, 0.5
        %v2210 = vmul.f32 %v2078, 0.5
        %v2211 = vmul.f32 %v2082, 0.5
        %v2212 = vmul.f32 %v2088, 0.5
        %v2213 = vmul.f32 %v2092, 0.5
        %v2214 = vmul.f32 %v2098, 0.5
        %v2215 = vmul.f32 %v2102, 0.5
        %v2216 = vmul.f32 %v2108, 0.5
        %v2217 = vmul.f32 %v2112, 0.5
        %v2218 = vmul.f32 %v2118, 0.5
        %v2219 = vmul.f32 %v2122, 0.5
        %v2220 = vmul.f32 %v2128, 0.5
        %v2221 = vmul.f32 %v2132, 0.5
        %v2222 = vmul.f32 %v2138, 0.5
        %v2223 = vmul.f32 %v2142, 0.5
        %v2224 = vmul.f32 %v2148, 0.5
        %v2225 = vmul.f32 %v2152, 0.5
        %v2226 = vmul.f32 %v2158, 0.5
        %v2227 = vmul.f32 %v2162, 0.5
        %v2228 = vmul.f32 %v2168, 0.5
        %v2229 = vmul.f32 %v2172, 0.5
        %v2230 = vmul.f32 %v2178, 0.5
        %v2231 = vmul.f32 %v2182, 0.5
        %v2232 = vmul.f32 %v2188, 0.5
        %v2233 = vmul.f32 %v2192, 0.5
        %v2234 = vmul.f32 %v2198, 0.5
        %v2235 = vmul.f32 %v2202, 0.5
        %v2236 = vmul.f32 %v2048, 0.044715
        %v2237 = vmul.f32 %v2052, 0.044715
        %v2238 = vmul.f32 %v2058, 0.044715
        %v2239 = vmul.f32 %v2062, 0.044715
        %v2240 = vmul.f32 %v2068, 0.044715
        %v2241 = vmul.f32 %v2072, 0.044715
        %v2242 = vmul.f32 %v2078, 0.044715
        %v2243 = vmul.f32 %v2082, 0.044715
        %v2244 = vmul.f32 %v2088, 0.044715
        %v2245 = vmul.f32 %v2092, 0.044715
        %v2246 = vmul.f32 %v2098, 0.044715
        %v2247 = vmul.f32 %v2102, 0.044715
        %v2248 = vmul.f32 %v2108, 0.044715
        %v2249 = vmul.f32 %v2112, 0.044715
        %v2250 = vmul.f32 %v2118, 0.044715
        %v2251 = vmul.f32 %v2122, 0.044715
        %v2252 = vmul.f32 %v2128, 0.044715
        %v2253 = vmul.f32 %v2132, 0.044715
        %v2254 = vmul.f32 %v2138, 0.044715
        %v2255 = vmul.f32 %v2142, 0.044715
        %v2256 = vmul.f32 %v2148, 0.044715
        %v2257 = vmul.f32 %v2152, 0.044715
        %v2258 = vmul.f32 %v2158, 0.044715
        %v2259 = vmul.f32 %v2162, 0.044715
        %v2260 = vmul.f32 %v2168, 0.044715
        %v2261 = vmul.f32 %v2172, 0.044715
        %v2262 = vmul.f32 %v2178, 0.044715
        %v2263 = vmul.f32 %v2182, 0.044715
        %v2264 = vmul.f32 %v2188, 0.044715
        %v2265 = vmul.f32 %v2192, 0.044715
        %v2266 = vmul.f32 %v2198, 0.044715
        %v2267 = vmul.f32 %v2202, 0.044715
        %v2268 = vmul.f32 %v2236, %v2048
        %v2269 = vmul.f32 %v2237, %v2052
        %v2270 = vmul.f32 %v2238, %v2058
        %v2271 = vmul.f32 %v2239, %v2062
        %v2272 = vmul.f32 %v2240, %v2068
        %v2273 = vmul.f32 %v2241, %v2072
        %v2274 = vmul.f32 %v2242, %v2078
        %v2275 = vmul.f32 %v2243, %v2082
        %v2276 = vmul.f32 %v2244, %v2088
        %v2277 = vmul.f32 %v2245, %v2092
        %v2278 = vmul.f32 %v2246, %v2098
        %v2279 = vmul.f32 %v2247, %v2102
        %v2280 = vmul.f32 %v2248, %v2108
        %v2281 = vmul.f32 %v2249, %v2112
        %v2282 = vmul.f32 %v2250, %v2118
        %v2283 = vmul.f32 %v2251, %v2122
        %v2284 = vmul.f32 %v2252, %v2128
        %v2285 = vmul.f32 %v2253, %v2132
        %v2286 = vmul.f32 %v2254, %v2138
        %v2287 = vmul.f32 %v2255, %v2142
        %v2288 = vmul.f32 %v2256, %v2148
        %v2289 = vmul.f32 %v2257, %v2152
        %v2290 = vmul.f32 %v2258, %v2158
        %v2291 = vmul.f32 %v2259, %v2162
        %v2292 = vmul.f32 %v2260, %v2168
        %v2293 = vmul.f32 %v2261, %v2172
        %v2294 = vmul.f32 %v2262, %v2178
        %v2295 = vmul.f32 %v2263, %v2182
        %v2296 = vmul.f32 %v2264, %v2188
        %v2297 = vmul.f32 %v2265, %v2192
        %v2298 = vmul.f32 %v2266, %v2198
        %v2299 = vmul.f32 %v2267, %v2202
        %v2300 = vmul.f32 %v2268, %v2048
        %v2301 = vmul.f32 %v2269, %v2052
        %v2302 = vmul.f32 %v2270, %v2058
        %v2303 = vmul.f32 %v2271, %v2062
        %v2304 = vmul.f32 %v2272, %v2068
        %v2305 = vmul.f32 %v2273, %v2072
        %v2306 = vmul.f32 %v2274, %v2078
        %v2307 = vmul.f32 %v2275, %v2082
        %v2308 = vmul.f32 %v2276, %v2088
        %v2309 = vmul.f32 %v2277, %v2092
        %v2310 = vmul.f32 %v2278, %v2098
        %v2311 = vmul.f32 %v2279, %v2102
        %v2312 = vmul.f32 %v2280, %v2108
        %v2313 = vmul.f32 %v2281, %v2112
        %v2314 = vmul.f32 %v2282, %v2118
        %v2315 = vmul.f32 %v2283, %v2122
        %v2316 = vmul.f32 %v2284, %v2128
        %v2317 = vmul.f32 %v2285, %v2132
        %v2318 = vmul.f32 %v2286, %v2138
        %v2319 = vmul.f32 %v2287, %v2142
        %v2320 = vmul.f32 %v2288, %v2148
        %v2321 = vmul.f32 %v2289, %v2152
        %v2322 = vmul.f32 %v2290, %v2158
        %v2323 = vmul.f32 %v2291, %v2162
        %v2324 = vmul.f32 %v2292, %v2168
        %v2325 = vmul.f32 %v2293, %v2172
        %v2326 = vmul.f32 %v2294, %v2178
        %v2327 = vmul.f32 %v2295, %v2182
        %v2328 = vmul.f32 %v2296, %v2188
        %v2329 = vmul.f32 %v2297, %v2192
        %v2330 = vmul.f32 %v2298, %v2198
        %v2331 = vmul.f32 %v2299, %v2202
        %v2332 = vadd.f32 %v2048, %v2300
        %v2333 = vadd.f32 %v2052, %v2301
        %v2334 = vadd.f32 %v2058, %v2302
        %v2335 = vadd.f32 %v2062, %v2303
        %v2336 = vadd.f32 %v2068, %v2304
        %v2337 = vadd.f32 %v2072, %v2305
        %v2338 = vadd.f32 %v2078, %v2306
        %v2339 = vadd.f32 %v2082, %v2307
        %v2340 = vadd.f32 %v2088, %v2308
        %v2341 = vadd.f32 %v2092, %v2309
        %v2342 = vadd.f32 %v2098, %v2310
        %v2343 = vadd.f32 %v2102, %v2311
        %v2344 = vadd.f32 %v2108, %v2312
        %v2345 = vadd.f32 %v2112, %v2313
        %v2346 = vadd.f32 %v2118, %v2314
        %v2347 = vadd.f32 %v2122, %v2315
        %v2348 = vadd.f32 %v2128, %v2316
        %v2349 = vadd.f32 %v2132, %v2317
        %v2350 = vadd.f32 %v2138, %v2318
        %v2351 = vadd.f32 %v2142, %v2319
        %v2352 = vadd.f32 %v2148, %v2320
        %v2353 = vadd.f32 %v2152, %v2321
        %v2354 = vadd.f32 %v2158, %v2322
        %v2355 = vadd.f32 %v2162, %v2323
        %v2356 = vadd.f32 %v2168, %v2324
        %v2357 = vadd.f32 %v2172, %v2325
        %v2358 = vadd.f32 %v2178, %v2326
        %v2359 = vadd.f32 %v2182, %v2327
        %v2360 = vadd.f32 %v2188, %v2328
        %v2361 = vadd.f32 %v2192, %v2329
        %v2362 = vadd.f32 %v2198, %v2330
        %v2363 = vadd.f32 %v2202, %v2331
        %v2364 = vmul.f32 %v2332, 0.7978845
        %v2365 = vmul.f32 %v2333, 0.7978845
        %v2366 = vmul.f32 %v2334, 0.7978845
        %v2367 = vmul.f32 %v2335, 0.7978845
        %v2368 = vmul.f32 %v2336, 0.7978845
        %v2369 = vmul.f32 %v2337, 0.7978845
        %v2370 = vmul.f32 %v2338, 0.7978845
        %v2371 = vmul.f32 %v2339, 0.7978845
        %v2372 = vmul.f32 %v2340, 0.7978845
        %v2373 = vmul.f32 %v2341, 0.7978845
        %v2374 = vmul.f32 %v2342, 0.7978845
        %v2375 = vmul.f32 %v2343, 0.7978845
        %v2376 = vmul.f32 %v2344, 0.7978845
        %v2377 = vmul.f32 %v2345, 0.7978845
        %v2378 = vmul.f32 %v2346, 0.7978845
        %v2379 = vmul.f32 %v2347, 0.7978845
        %v2380 = vmul.f32 %v2348, 0.7978845
        %v2381 = vmul.f32 %v2349, 0.7978845
        %v2382 = vmul.f32 %v2350, 0.7978845
        %v2383 = vmul.f32 %v2351, 0.7978845
        %v2384 = vmul.f32 %v2352, 0.7978845
        %v2385 = vmul.f32 %v2353, 0.7978845
        %v2386 = vmul.f32 %v2354, 0.7978845
        %v2387 = vmul.f32 %v2355, 0.7978845
        %v2388 = vmul.f32 %v2356, 0.7978845
        %v2389 = vmul.f32 %v2357, 0.7978845
        %v2390 = vmul.f32 %v2358, 0.7978845
        %v2391 = vmul.f32 %v2359, 0.7978845
        %v2392 = vmul.f32 %v2360, 0.7978845
        %v2393 = vmul.f32 %v2361, 0.7978845
        %v2394 = vmul.f32 %v2362, 0.7978845
        %v2395 = vmul.f32 %v2363, 0.7978845
        %v2396 = vtanh.pop %v2364
        %v2397 = vtanh.pop %v2365
        %v2398 = vtanh.pop %v2366
        %v2399 = vtanh.pop %v2367
        %v2400 = vtanh.pop %v2368
        %v2401 = vtanh.pop %v2369
        %v2402 = vtanh.pop %v2370
        %v2403 = vtanh.pop %v2371
        %v2404 = vtanh.pop %v2372
        %v2405 = vtanh.pop %v2373
        %v2406 = vtanh.pop %v2374
        %v2407 = vtanh.pop %v2375
        %v2408 = vtanh.pop %v2376
        %v2409 = vtanh.pop %v2377
        %v2410 = vtanh.pop %v2378
        %v2411 = vtanh.pop %v2379
        %v2412 = vtanh.pop %v2380
        %v2413 = vtanh.pop %v2381
        %v2414 = vtanh.pop %v2382
        %v2415 = vtanh.pop %v2383
        %v2416 = vtanh.pop %v2384
        %v2417 = vtanh.pop %v2385
        %v2418 = vtanh.pop %v2386
        %v2419 = vtanh.pop %v2387
        %v2420 = vtanh.pop %v2388
        %v2421 = vtanh.pop %v2389
        %v2422 = vtanh.pop %v2390
        %v2423 = vtanh.pop %v2391
        %v2424 = vtanh.pop %v2392
        %v2425 = vtanh.pop %v2393
        %v2426 = vtanh.pop %v2394
        %v2427 = vtanh.pop %v2395
        %v2428 = vadd.f32 %v2396, 1.0
        %v2429 = vadd.f32 %v2397, 1.0
        %v2430 = vadd.f32 %v2398, 1.0
        %v2431 = vadd.f32 %v2399, 1.0
        %v2432 = vadd.f32 %v2400, 1.0
        %v2433 = vadd.f32 %v2401, 1.0
        %v2434 = vadd.f32 %v2402, 1.0
        %v2435 = vadd.f32 %v2403, 1.0
        %v2436 = vadd.f32 %v2404, 1.0
        %v2437 = vadd.f32 %v2405, 1.0
        %v2438 = vadd.f32 %v2406, 1.0
        %v2439 = vadd.f32 %v2407, 1.0
        %v2440 = vadd.f32 %v2408, 1.0
        %v2441 = vadd.f32 %v2409, 1.0
        %v2442 = vadd.f32 %v2410, 1.0
        %v2443 = vadd.f32 %v2411, 1.0
        %v2444 = vadd.f32 %v2412, 1.0
        %v2445 = vadd.f32 %v2413, 1.0
        %v2446 = vadd.f32 %v2414, 1.0
        %v2447 = vadd.f32 %v2415, 1.0
        %v2448 = vadd.f32 %v2416, 1.0
        %v2449 = vadd.f32 %v2417, 1.0
        %v2450 = vadd.f32 %v2418, 1.0
        %v2451 = vadd.f32 %v2419, 1.0
        %v2452 = vadd.f32 %v2420, 1.0
        %v2453 = vadd.f32 %v2421, 1.0
        %v2454 = vadd.f32 %v2422, 1.0
        %v2455 = vadd.f32 %v2423, 1.0
        %v2456 = vadd.f32 %v2424, 1.0
        %v2457 = vadd.f32 %v2425, 1.0
        %v2458 = vadd.f32 %v2426, 1.0
        %v2459 = vadd.f32 %v2427, 1.0
        %v2460 = vmul.f32 %v2204, %v2428
        %v2461 = vmul.f32 %v2205, %v2429
        %v2462 = vmul.f32 %v2206, %v2430
        %v2463 = vmul.f32 %v2207, %v2431
        %v2464 = vmul.f32 %v2208, %v2432
        %v2465 = vmul.f32 %v2209, %v2433
        %v2466 = vmul.f32 %v2210, %v2434
        %v2467 = vmul.f32 %v2211, %v2435
        %v2468 = vmul.f32 %v2212, %v2436
        %v2469 = vmul.f32 %v2213, %v2437
        %v2470 = vmul.f32 %v2214, %v2438
        %v2471 = vmul.f32 %v2215, %v2439
        %v2472 = vmul.f32 %v2216, %v2440
        %v2473 = vmul.f32 %v2217, %v2441
        %v2474 = vmul.f32 %v2218, %v2442
        %v2475 = vmul.f32 %v2219, %v2443
        %v2476 = vmul.f32 %v2220, %v2444
        %v2477 = vmul.f32 %v2221, %v2445
        %v2478 = vmul.f32 %v2222, %v2446
        %v2479 = vmul.f32 %v2223, %v2447
        %v2480 = vmul.f32 %v2224, %v2448
        %v2481 = vmul.f32 %v2225, %v2449
        %v2482 = vmul.f32 %v2226, %v2450
        %v2483 = vmul.f32 %v2227, %v2451
        %v2484 = vmul.f32 %v2228, %v2452
        %v2485 = vmul.f32 %v2229, %v2453
        %v2486 = vmul.f32 %v2230, %v2454
        %v2487 = vmul.f32 %v2231, %v2455
        %v2488 = vmul.f32 %v2232, %v2456
        %v2489 = vmul.f32 %v2233, %v2457
        %v2490 = vmul.f32 %v2234, %v2458
        %v2491 = vmul.f32 %v2235, %v2459
        %s2492 = scalar_lea.vmem %s7, %s1412
        %v2493 = vld [vmem:[%s2492] sm:$0x1]
        %s2494 = scalar_lea.vmem %s8, %s1412
        %v2495 = vld [vmem:[%s2494] sm:$0x1]
        %2496 = vadd.xlane.f32.xlu0 %v2460
        %v2497 = vpop.xlane.xlu0 %2496
        %2498 = vadd.xlane.f32.xlu0 %v2461
        %v2499 = vpop.xlane.xlu0 %2498
        %2500 = vadd.xlane.f32.xlu0 %v2462
        %v2501 = vpop.xlane.xlu0 %2500
        %2502 = vadd.xlane.f32.xlu0 %v2463
        %v2503 = vpop.xlane.xlu0 %2502
        %2504 = vadd.xlane.f32.xlu0 %v2464
        %v2505 = vpop.xlane.xlu0 %2504
        %2506 = vadd.xlane.f32.xlu0 %v2465
        %v2507 = vpop.xlane.xlu0 %2506
        %2508 = vadd.xlane.f32.xlu0 %v2466
        %v2509 = vpop.xlane.xlu0 %2508
        %2510 = vadd.xlane.f32.xlu0 %v2467
        %v2511 = vpop.xlane.xlu0 %2510
        %2512 = vadd.xlane.f32.xlu0 %v2468
        %v2513 = vpop.xlane.xlu0 %2512
        %2514 = vadd.xlane.f32.xlu0 %v2469
        %v2515 = vpop.xlane.xlu0 %2514
        %2516 = vadd.xlane.f32.xlu0 %v2470
        %v2517 = vpop.xlane.xlu0 %2516
        %2518 = vadd.xlane.f32.xlu0 %v2471
        %v2519 = vpop.xlane.xlu0 %2518
        %2520 = vadd.xlane.f32.xlu0 %v2472
        %v2521 = vpop.xlane.xlu0 %2520
        %2522 = vadd.xlane.f32.xlu0 %v2473
        %v2523 = vpop.xlane.xlu0 %2522
        %2524 = vadd.xlane.f32.xlu0 %v2474
        %v2525 = vpop.xlane.xlu0 %2524
        %2526 = vadd.xlane.f32.xlu0 %v2475
        %v2527 = vpop.xlane.xlu0 %2526
        %2528 = vadd.xlane.f32.xlu0 %v2476
        %v2529 = vpop.xlane.xlu0 %2528
        %2530 = vadd.xlane.f32.xlu0 %v2477
        %v2531 = vpop.xlane.xlu0 %2530
        %2532 = vadd.xlane.f32.xlu0 %v2478
        %v2533 = vpop.xlane.xlu0 %2532
        %2534 = vadd.xlane.f32.xlu0 %v2479
        %v2535 = vpop.xlane.xlu0 %2534
        %2536 = vadd.xlane.f32.xlu0 %v2480
        %v2537 = vpop.xlane.xlu0 %2536
        %2538 = vadd.xlane.f32.xlu0 %v2481
        %v2539 = vpop.xlane.xlu0 %2538
        %2540 = vadd.xlane.f32.xlu0 %v2482
        %v2541 = vpop.xlane.xlu0 %2540
        %2542 = vadd.xlane.f32.xlu0 %v2483
        %v2543 = vpop.xlane.xlu0 %2542
        %2544 = vadd.xlane.f32.xlu0 %v2484
        %v2545 = vpop.xlane.xlu0 %2544
        %2546 = vadd.xlane.f32.xlu0 %v2485
        %v2547 = vpop.xlane.xlu0 %2546
        %2548 = vadd.xlane.f32.xlu0 %v2486
        %v2549 = vpop.xlane.xlu0 %2548
        %2550 = vadd.xlane.f32.xlu0 %v2487
        %v2551 = vpop.xlane.xlu0 %2550
        %2552 = vadd.xlane.f32.xlu0 %v2488
        %v2553 = vpop.xlane.xlu0 %2552
        %2554 = vadd.xlane.f32.xlu0 %v2489
        %v2555 = vpop.xlane.xlu0 %2554
        %2556 = vadd.xlane.f32.xlu0 %v2490
        %v2557 = vpop.xlane.xlu0 %2556
        %2558 = vadd.xlane.f32.xlu0 %v2491
        %v2559 = vpop.xlane.xlu0 %2558
        %v2560 = vmul.f32 %v2497, %v1517
        %v2561 = vmul.f32 %v2499, %v1517
        %v2562 = vmul.f32 %v2501, %v1517
        %v2563 = vmul.f32 %v2503, %v1517
        %v2564 = vmul.f32 %v2505, %v1517
        %v2565 = vmul.f32 %v2507, %v1517
        %v2566 = vmul.f32 %v2509, %v1517
        %v2567 = vmul.f32 %v2511, %v1517
        %v2568 = vmul.f32 %v2513, %v1517
        %v2569 = vmul.f32 %v2515, %v1517
        %v2570 = vmul.f32 %v2517, %v1517
        %v2571 = vmul.f32 %v2519, %v1517
        %v2572 = vmul.f32 %v2521, %v1517
        %v2573 = vmul.f32 %v2523, %v1517
        %v2574 = vmul.f32 %v2525, %v1517
        %v2575 = vmul.f32 %v2527, %v1517
        %v2576 = vmul.f32 %v2529, %v1517
        %v2577 = vmul.f32 %v2531, %v1517
        %v2578 = vmul.f32 %v2533, %v1517
        %v2579 = vmul.f32 %v2535, %v1517
        %v2580 = vmul.f32 %v2537, %v1517
        %v2581 = vmul.f32 %v2539, %v1517
        %v2582 = vmul.f32 %v2541, %v1517
        %v2583 = vmul.f32 %v2543, %v1517
        %v2584 = vmul.f32 %v2545, %v1517
        %v2585 = vmul.f32 %v2547, %v1517
        %v2586 = vmul.f32 %v2549, %v1517
        %v2587 = vmul.f32 %v2551, %v1517
        %v2588 = vmul.f32 %v2553, %v1517
        %v2589 = vmul.f32 %v2555, %v1517
        %v2590 = vmul.f32 %v2557, %v1517
        %v2591 = vmul.f32 %v2559, %v1517
        %v2592 = vsub.f32 %v2460, %v2560
        %v2593 = vsub.f32 %v2461, %v2561
        %v2594 = vsub.f32 %v2462, %v2562
        %v2595 = vsub.f32 %v2463, %v2563
        %v2596 = vsub.f32 %v2464, %v2564
        %v2597 = vsub.f32 %v2465, %v2565
        %v2598 = vsub.f32 %v2466, %v2566
        %v2599 = vsub.f32 %v2467, %v2567
        %v2600 = vsub.f32 %v2468, %v2568
        %v2601 = vsub.f32 %v2469, %v2569
        %v2602 = vsub.f32 %v2470, %v2570
        %v2603 = vsub.f32 %v2471, %v2571
        %v2604 = vsub.f32 %v2472, %v2572
        %v2605 = vsub.f32 %v2473, %v2573
        %v2606 = vsub.f32 %v2474, %v2574
        %v2607 = vsub.f32 %v2475, %v2575
        %v2608 = vsub.f32 %v2476, %v2576
        %v2609 = vsub.f32 %v2477, %v2577
        %v2610 = vsub.f32 %v2478, %v2578
        %v2611 = vsub.f32 %v2479, %v2579
        %v2612 = vsub.f32 %v2480, %v2580
        %v2613 = vsub.f32 %v2481, %v2581
        %v2614 = vsub.f32 %v2482, %v2582
        %v2615 = vsub.f32 %v2483, %v2583
        %v2616 = vsub.f32 %v2484, %v2584
        %v2617 = vsub.f32 %v2485, %v2585
        %v2618 = vsub.f32 %v2486, %v2586
        %v2619 = vsub.f32 %v2487, %v2587
        %v2620 = vsub.f32 %v2488, %v2588
        %v2621 = vsub.f32 %v2489, %v2589
        %v2622 = vsub.f32 %v2490, %v2590
        %v2623 = vsub.f32 %v2491, %v2591
        %v2624 = vmul.f32 %v2592, %v2592
        %v2625 = vmul.f32 %v2593, %v2593
        %v2626 = vmul.f32 %v2594, %v2594
        %v2627 = vmul.f32 %v2595, %v2595
        %v2628 = vmul.f32 %v2596, %v2596
        %v2629 = vmul.f32 %v2597, %v2597
        %v2630 = vmul.f32 %v2598, %v2598
        %v2631 = vmul.f32 %v2599, %v2599
        %v2632 = vmul.f32 %v2600, %v2600
        %v2633 = vmul.f32 %v2601, %v2601
        %v2634 = vmul.f32 %v2602, %v2602
        %v2635 = vmul.f32 %v2603, %v2603
        %v2636 = vmul.f32 %v2604, %v2604
        %v2637 = vmul.f32 %v2605, %v2605
        %v2638 = vmul.f32 %v2606, %v2606
        %v2639 = vmul.f32 %v2607, %v2607
        %v2640 = vmul.f32 %v2608, %v2608
        %v2641 = vmul.f32 %v2609, %v2609
        %v2642 = vmul.f32 %v2610, %v2610
        %v2643 = vmul.f32 %v2611, %v2611
        %v2644 = vmul.f32 %v2612, %v2612
        %v2645 = vmul.f32 %v2613, %v2613
        %v2646 = vmul.f32 %v2614, %v2614
        %v2647 = vmul.f32 %v2615, %v2615
        %v2648 = vmul.f32 %v2616, %v2616
        %v2649 = vmul.f32 %v2617, %v2617
        %v2650 = vmul.f32 %v2618, %v2618
        %v2651 = vmul.f32 %v2619, %v2619
        %v2652 = vmul.f32 %v2620, %v2620
        %v2653 = vmul.f32 %v2621, %v2621
        %v2654 = vmul.f32 %v2622, %v2622
        %v2655 = vmul.f32 %v2623, %v2623
        %2656 = vadd.xlane.f32.xlu0 %v2624
        %v2657 = vpop.xlane.xlu0 %2656
        %2658 = vadd.xlane.f32.xlu0 %v2625
        %v2659 = vpop.xlane.xlu0 %2658
        %2660 = vadd.xlane.f32.xlu0 %v2626
        %v2661 = vpop.xlane.xlu0 %2660
        %2662 = vadd.xlane.f32.xlu0 %v2627
        %v2663 = vpop.xlane.xlu0 %2662
        %2664 = vadd.xlane.f32.xlu0 %v2628
        %v2665 = vpop.xlane.xlu0 %2664
        %2666 = vadd.xlane.f32.xlu0 %v2629
        %v2667 = vpop.xlane.xlu0 %2666
        %2668 = vadd.xlane.f32.xlu0 %v2630
        %v2669 = vpop.xlane.xlu0 %2668
        %2670 = vadd.xlane.f32.xlu0 %v2631
        %v2671 = vpop.xlane.xlu0 %2670
        %2672 = vadd.xlane.f32.xlu0 %v2632
        %v2673 = vpop.xlane.xlu0 %2672
        %2674 = vadd.xlane.f32.xlu0 %v2633
        %v2675 = vpop.xlane.xlu0 %2674
        %2676 = vadd.xlane.f32.xlu0 %v2634
        %v2677 = vpop.xlane.xlu0 %2676
        %2678 = vadd.xlane.f32.xlu0 %v2635
        %v2679 = vpop.xlane.xlu0 %2678
        %2680 = vadd.xlane.f32.xlu0 %v2636
        %v2681 = vpop.xlane.xlu0 %2680
        %2682 = vadd.xlane.f32.xlu0 %v2637
        %v2683 = vpop.xlane.xlu0 %2682
        %2684 = vadd.xlane.f32.xlu0 %v2638
        %v2685 = vpop.xlane.xlu0 %2684
        %2686 = vadd.xlane.f32.xlu0 %v2639
        %v2687 = vpop.xlane.xlu0 %2686
        %2688 = vadd.xlane.f32.xlu0 %v2640
        %v2689 = vpop.xlane.xlu0 %2688
        %2690 = vadd.xlane.f32.xlu0 %v2641
        %v2691 = vpop.xlane.xlu0 %2690
        %2692 = vadd.xlane.f32.xlu0 %v2642
        %v2693 = vpop.xlane.xlu0 %2692
        %2694 = vadd.xlane.f32.xlu0 %v2643
        %v2695 = vpop.xlane.xlu0 %2694
        %2696 = vadd.xlane.f32.xlu0 %v2644
        %v2697 = vpop.xlane.xlu0 %2696
        %2698 = vadd.xlane.f32.xlu0 %v2645
        %v2699 = vpop.xlane.xlu0 %2698
        %2700 = vadd.xlane.f32.xlu0 %v2646
        %v2701 = vpop.xlane.xlu0 %2700
        %2702 = vadd.xlane.f32.xlu0 %v2647
        %v2703 = vpop.xlane.xlu0 %2702
        %2704 = vadd.xlane.f32.xlu0 %v2648
        %v2705 = vpop.xlane.xlu0 %2704
        %2706 = vadd.xlane.f32.xlu0 %v2649
        %v2707 = vpop.xlane.xlu0 %2706
        %2708 = vadd.xlane.f32.xlu0 %v2650
        %v2709 = vpop.xlane.xlu0 %2708
        %2710 = vadd.xlane.f32.xlu0 %v2651
        %v2711 = vpop.xlane.xlu0 %2710
        %2712 = vadd.xlane.f32.xlu0 %v2652
        %v2713 = vpop.xlane.xlu0 %2712
        %2714 = vadd.xlane.f32.xlu0 %v2653
        %v2715 = vpop.xlane.xlu0 %2714
        %2716 = vadd.xlane.f32.xlu0 %v2654
        %v2717 = vpop.xlane.xlu0 %2716
        %2718 = vadd.xlane.f32.xlu0 %v2655
        %v2719 = vpop.xlane.xlu0 %2718
        %v2720 = vmul.f32 %v2657, %v1517
        %v2721 = vmul.f32 %v2659, %v1517
        %v2722 = vmul.f32 %v2661, %v1517
        %v2723 = vmul.f32 %v2663, %v1517
        %v2724 = vmul.f32 %v2665, %v1517
        %v2725 = vmul.f32 %v2667, %v1517
        %v2726 = vmul.f32 %v2669, %v1517
        %v2727 = vmul.f32 %v2671, %v1517
        %v2728 = vmul.f32 %v2673, %v1517
        %v2729 = vmul.f32 %v2675, %v1517
        %v2730 = vmul.f32 %v2677, %v1517
        %v2731 = vmul.f32 %v2679, %v1517
        %v2732 = vmul.f32 %v2681, %v1517
        %v2733 = vmul.f32 %v2683, %v1517
        %v2734 = vmul.f32 %v2685, %v1517
        %v2735 = vmul.f32 %v2687, %v1517
        %v2736 = vmul.f32 %v2689, %v1517
        %v2737 = vmul.f32 %v2691, %v1517
        %v2738 = vmul.f32 %v2693, %v1517
        %v2739 = vmul.f32 %v2695, %v1517
        %v2740 = vmul.f32 %v2697, %v1517
        %v2741 = vmul.f32 %v2699, %v1517
        %v2742 = vmul.f32 %v2701, %v1517
        %v2743 = vmul.f32 %v2703, %v1517
        %v2744 = vmul.f32 %v2705, %v1517
        %v2745 = vmul.f32 %v2707, %v1517
        %v2746 = vmul.f32 %v2709, %v1517
        %v2747 = vmul.f32 %v2711, %v1517
        %v2748 = vmul.f32 %v2713, %v1517
        %v2749 = vmul.f32 %v2715, %v1517
        %v2750 = vmul.f32 %v2717, %v1517
        %v2751 = vmul.f32 %v2719, %v1517
        %v2752 = vadd.f32 %v2720, 1e-05
        %v2753 = vadd.f32 %v2721, 1e-05
        %v2754 = vadd.f32 %v2722, 1e-05
        %v2755 = vadd.f32 %v2723, 1e-05
        %v2756 = vadd.f32 %v2724, 1e-05
        %v2757 = vadd.f32 %v2725, 1e-05
        %v2758 = vadd.f32 %v2726, 1e-05
        %v2759 = vadd.f32 %v2727, 1e-05
        %v2760 = vadd.f32 %v2728, 1e-05
        %v2761 = vadd.f32 %v2729, 1e-05
        %v2762 = vadd.f32 %v2730, 1e-05
        %v2763 = vadd.f32 %v2731, 1e-05
        %v2764 = vadd.f32 %v2732, 1e-05
        %v2765 = vadd.f32 %v2733, 1e-05
        %v2766 = vadd.f32 %v2734, 1e-05
        %v2767 = vadd.f32 %v2735, 1e-05
        %v2768 = vadd.f32 %v2736, 1e-05
        %v2769 = vadd.f32 %v2737, 1e-05
        %v2770 = vadd.f32 %v2738, 1e-05
        %v2771 = vadd.f32 %v2739, 1e-05
        %v2772 = vadd.f32 %v2740, 1e-05
        %v2773 = vadd.f32 %v2741, 1e-05
        %v2774 = vadd.f32 %v2742, 1e-05
        %v2775 = vadd.f32 %v2743, 1e-05
        %v2776 = vadd.f32 %v2744, 1e-05
        %v2777 = vadd.f32 %v2745, 1e-05
        %v2778 = vadd.f32 %v2746, 1e-05
        %v2779 = vadd.f32 %v2747, 1e-05
        %v2780 = vadd.f32 %v2748, 1e-05
        %v2781 = vadd.f32 %v2749, 1e-05
        %v2782 = vadd.f32 %v2750, 1e-05
        %v2783 = vadd.f32 %v2751, 1e-05
        %v2784 = vrsqrt.pop %v2752
        %v2785 = vrsqrt.pop %v2753
        %v2786 = vrsqrt.pop %v2754
        %v2787 = vrsqrt.pop %v2755
        %v2788 = vrsqrt.pop %v2756
        %v2789 = vrsqrt.pop %v2757
        %v2790 = vrsqrt.pop %v2758
        %v2791 = vrsqrt.pop %v2759
        %v2792 = vrsqrt.pop %v2760
        %v2793 = vrsqrt.pop %v2761
        %v2794 = vrsqrt.pop %v2762
        %v2795 = vrsqrt.pop %v2763
        %v2796 = vrsqrt.pop %v2764
        %v2797 = vrsqrt.pop %v2765
        %v2798 = vrsqrt.pop %v2766
        %v2799 = vrsqrt.pop %v2767
        %v2800 = vrsqrt.pop %v2768
        %v2801 = vrsqrt.pop %v2769
        %v2802 = vrsqrt.pop %v2770
        %v2803 = vrsqrt.pop %v2771
        %v2804 = vrsqrt.pop %v2772
        %v2805 = vrsqrt.pop %v2773
        %v2806 = vrsqrt.pop %v2774
        %v2807 = vrsqrt.pop %v2775
        %v2808 = vrsqrt.pop %v2776
        %v2809 = vrsqrt.pop %v2777
        %v2810 = vrsqrt.pop %v2778
        %v2811 = vrsqrt.pop %v2779
        %v2812 = vrsqrt.pop %v2780
        %v2813 = vrsqrt.pop %v2781
        %v2814 = vrsqrt.pop %v2782
        %v2815 = vrsqrt.pop %v2783
        %v2816 = vmul.f32 %v2592, %v2784
        %v2817 = vmul.f32 %v2593, %v2785
        %v2818 = vmul.f32 %v2594, %v2786
        %v2819 = vmul.f32 %v2595, %v2787
        %v2820 = vmul.f32 %v2596, %v2788
        %v2821 = vmul.f32 %v2597, %v2789
        %v2822 = vmul.f32 %v2598, %v2790
        %v2823 = vmul.f32 %v2599, %v2791
        %v2824 = vmul.f32 %v2600, %v2792
        %v2825 = vmul.f32 %v2601, %v2793
        %v2826 = vmul.f32 %v2602, %v2794
        %v2827 = vmul.f32 %v2603, %v2795
        %v2828 = vmul.f32 %v2604, %v2796
        %v2829 = vmul.f32 %v2605, %v2797
        %v2830 = vmul.f32 %v2606, %v2798
        %v2831 = vmul.f32 %v2607, %v2799
        %v2832 = vmul.f32 %v2608, %v2800
        %v2833 = vmul.f32 %v2609, %v2801
        %v2834 = vmul.f32 %v2610, %v2802
        %v2835 = vmul.f32 %v2611, %v2803
        %v2836 = vmul.f32 %v2612, %v2804
        %v2837 = vmul.f32 %v2613, %v2805
        %v2838 = vmul.f32 %v2614, %v2806
        %v2839 = vmul.f32 %v2615, %v2807
        %v2840 = vmul.f32 %v2616, %v2808
        %v2841 = vmul.f32 %v2617, %v2809
        %v2842 = vmul.f32 %v2618, %v2810
        %v2843 = vmul.f32 %v2619, %v2811
        %v2844 = vmul.f32 %v2620, %v2812
        %v2845 = vmul.f32 %v2621, %v2813
        %v2846 = vmul.f32 %v2622, %v2814
        %v2847 = vmul.f32 %v2623, %v2815
        %v2849 = vlaneseq
        %v2850 = vshrl.u32 %v2849, 7
        %v2851 = vsub.s32 0, %v2850
        %v2852 = vrot.slane %v2493, %v2851
        %v2854 = vmul.f32 %v2816, %v2852
        %v2855 = vmul.f32 %v2817, %v2852
        %v2856 = vmul.f32 %v2818, %v2852
        %v2857 = vmul.f32 %v2819, %v2852
        %v2858 = vmul.f32 %v2820, %v2852
        %v2859 = vmul.f32 %v2821, %v2852
        %v2860 = vmul.f32 %v2822, %v2852
        %v2861 = vmul.f32 %v2823, %v2852
        %v2862 = vmul.f32 %v2824, %v2852
        %v2863 = vmul.f32 %v2825, %v2852
        %v2864 = vmul.f32 %v2826, %v2852
        %v2865 = vmul.f32 %v2827, %v2852
        %v2866 = vmul.f32 %v2828, %v2852
        %v2867 = vmul.f32 %v2829, %v2852
        %v2868 = vmul.f32 %v2830, %v2852
        %v2869 = vmul.f32 %v2831, %v2852
        %v2870 = vmul.f32 %v2832, %v2852
        %v2871 = vmul.f32 %v2833, %v2852
        %v2872 = vmul.f32 %v2834, %v2852
        %v2873 = vmul.f32 %v2835, %v2852
        %v2874 = vmul.f32 %v2836, %v2852
        %v2875 = vmul.f32 %v2837, %v2852
        %v2876 = vmul.f32 %v2838, %v2852
        %v2877 = vmul.f32 %v2839, %v2852
        %v2878 = vmul.f32 %v2840, %v2852
        %v2879 = vmul.f32 %v2841, %v2852
        %v2880 = vmul.f32 %v2842, %v2852
        %v2881 = vmul.f32 %v2843, %v2852
        %v2882 = vmul.f32 %v2844, %v2852
        %v2883 = vmul.f32 %v2845, %v2852
        %v2884 = vmul.f32 %v2846, %v2852
        %v2885 = vmul.f32 %v2847, %v2852
        %v2887 = vlaneseq
        %v2888 = vshrl.u32 %v2887, 7
        %v2889 = vsub.s32 0, %v2888
        %v2890 = vrot.slane %v2495, %v2889
        %v2892 = vadd.f32 %v2854, %v2890
        %v2893 = vadd.f32 %v2855, %v2890
        %v2894 = vadd.f32 %v2856, %v2890
        %v2895 = vadd.f32 %v2857, %v2890
        %v2896 = vadd.f32 %v2858, %v2890
        %v2897 = vadd.f32 %v2859, %v2890
        %v2898 = vadd.f32 %v2860, %v2890
        %v2899 = vadd.f32 %v2861, %v2890
        %v2900 = vadd.f32 %v2862, %v2890
        %v2901 = vadd.f32 %v2863, %v2890
        %v2902 = vadd.f32 %v2864, %v2890
        %v2903 = vadd.f32 %v2865, %v2890
        %v2904 = vadd.f32 %v2866, %v2890
        %v2905 = vadd.f32 %v2867, %v2890
        %v2906 = vadd.f32 %v2868, %v2890
        %v2907 = vadd.f32 %v2869, %v2890
        %v2908 = vadd.f32 %v2870, %v2890
        %v2909 = vadd.f32 %v2871, %v2890
        %v2910 = vadd.f32 %v2872, %v2890
        %v2911 = vadd.f32 %v2873, %v2890
        %v2912 = vadd.f32 %v2874, %v2890
        %v2913 = vadd.f32 %v2875, %v2890
        %v2914 = vadd.f32 %v2876, %v2890
        %v2915 = vadd.f32 %v2877, %v2890
        %v2916 = vadd.f32 %v2878, %v2890
        %v2917 = vadd.f32 %v2879, %v2890
        %v2918 = vadd.f32 %v2880, %v2890
        %v2919 = vadd.f32 %v2881, %v2890
        %v2920 = vadd.f32 %v2882, %v2890
        %v2921 = vadd.f32 %v2883, %v2890
        %v2922 = vadd.f32 %v2884, %v2890
        %v2923 = vadd.f32 %v2885, %v2890
        %s2924 = smul.u32 %s1412, 64
        %s2925 = smul.addr %s2924, 4
        %s2926 = scalar_lea.vmem %s9, %s2925
        %v2927 = vld [vmem:[%s2926] sm:$0xff]
        %v2928 = vld [vmem:[%s2926 + $0x8] sm:$0xff]
        %v2929 = vld [vmem:[%s2926 + $0x10] sm:$0xff]
        %v2930 = vld [vmem:[%s2926 + $0x18] sm:$0xff]
        %v2931 = vld [vmem:[%s2926 + $0x20] sm:$0xff]
        %v2932 = vld [vmem:[%s2926 + $0x28] sm:$0xff]
        %v2933 = vld [vmem:[%s2926 + $0x30] sm:$0xff]
        %v2934 = vld [vmem:[%s2926 + $0x38] sm:$0xff]
        %v2935 = vld [vmem:[%s2926 + $0x40] sm:$0xff]
        %v2936 = vld [vmem:[%s2926 + $0x48] sm:$0xff]
        %v2937 = vld [vmem:[%s2926 + $0x50] sm:$0xff]
        %v2938 = vld [vmem:[%s2926 + $0x58] sm:$0xff]
        %v2939 = vld [vmem:[%s2926 + $0x60] sm:$0xff]
        %v2940 = vld [vmem:[%s2926 + $0x68] sm:$0xff]
        %v2941 = vld [vmem:[%s2926 + $0x70] sm:$0xff]
        %v2942 = vld [vmem:[%s2926 + $0x78] sm:$0xff]
        %v2943 = vld [vmem:[%s2926 + $0x80] sm:$0xff]
        %v2944 = vld [vmem:[%s2926 + $0x88] sm:$0xff]
        %v2945 = vld [vmem:[%s2926 + $0x90] sm:$0xff]
        %v2946 = vld [vmem:[%s2926 + $0x98] sm:$0xff]
        %v2947 = vld [vmem:[%s2926 + $0xa0] sm:$0xff]
        %v2948 = vld [vmem:[%s2926 + $0xa8] sm:$0xff]
        %v2949 = vld [vmem:[%s2926 + $0xb0] sm:$0xff]
        %v2950 = vld [vmem:[%s2926 + $0xb8] sm:$0xff]
        %v2951 = vld [vmem:[%s2926 + $0xc0] sm:$0xff]
        %v2952 = vld [vmem:[%s2926 + $0xc8] sm:$0xff]
        %v2953 = vld [vmem:[%s2926 + $0xd0] sm:$0xff]
        %v2954 = vld [vmem:[%s2926 + $0xd8] sm:$0xff]
        %v2955 = vld [vmem:[%s2926 + $0xe0] sm:$0xff]
        %v2956 = vld [vmem:[%s2926 + $0xe8] sm:$0xff]
        %v2957 = vld [vmem:[%s2926 + $0xf0] sm:$0xff]
        %v2958 = vld [vmem:[%s2926 + $0xf8] sm:$0xff]
        %v2959 = vpack.c.bf16 %v2893, %v2892
        %v2960 = vpack.c.bf16 %v2895, %v2894
        %v2961 = vpack.c.bf16 %v2897, %v2896
        %v2962 = vpack.c.bf16 %v2899, %v2898
        %v2963 = vpack.c.bf16 %v2901, %v2900
        %v2964 = vpack.c.bf16 %v2903, %v2902
        %v2965 = vpack.c.bf16 %v2905, %v2904
        %v2966 = vpack.c.bf16 %v2907, %v2906
        %v2967 = vpack.c.bf16 %v2909, %v2908
        %v2968 = vpack.c.bf16 %v2911, %v2910
        %v2969 = vpack.c.bf16 %v2913, %v2912
        %v2970 = vpack.c.bf16 %v2915, %v2914
        %v2971 = vpack.c.bf16 %v2917, %v2916
        %v2972 = vpack.c.bf16 %v2919, %v2918
        %v2973 = vpack.c.bf16 %v2921, %v2920
        %v2974 = vpack.c.bf16 %v2923, %v2922
        %s2975 = smul.u32 %s1412, 256
        %s2976 = scalar_lea.vmem %s10, %s2975
        %v2977 = vld [vmem:[%s2976] sm:$0xff]
        %v2978 = vld [vmem:[%s2976 + $0x8] sm:$0xff]
        %v2979 = vld [vmem:[%s2976 + $0x10] sm:$0xff]
        %v2980 = vld [vmem:[%s2976 + $0x18] sm:$0xff]
        %v2981 = vld [vmem:[%s2976 + $0x20] sm:$0xff]
        %v2982 = vld [vmem:[%s2976 + $0x28] sm:$0xff]
        %v2983 = vld [vmem:[%s2976 + $0x30] sm:$0xff]
        %v2984 = vld [vmem:[%s2976 + $0x38] sm:$0xff]
        %v2985 = vld [vmem:[%s2976 + $0x40] sm:$0xff]
        %v2986 = vld [vmem:[%s2976 + $0x48] sm:$0xff]
        %v2987 = vld [vmem:[%s2976 + $0x50] sm:$0xff]
        %v2988 = vld [vmem:[%s2976 + $0x58] sm:$0xff]
        %v2989 = vld [vmem:[%s2976 + $0x60] sm:$0xff]
        %v2990 = vld [vmem:[%s2976 + $0x68] sm:$0xff]
        %v2991 = vld [vmem:[%s2976 + $0x70] sm:$0xff]
        %v2992 = vld [vmem:[%s2976 + $0x78] sm:$0xff]
        %v2993 = vld [vmem:[%s2976 + $0x80] sm:$0xff]
        %v2994 = vld [vmem:[%s2976 + $0x88] sm:$0xff]
        %v2995 = vld [vmem:[%s2976 + $0x90] sm:$0xff]
        %v2996 = vld [vmem:[%s2976 + $0x98] sm:$0xff]
        %v2997 = vld [vmem:[%s2976 + $0xa0] sm:$0xff]
        %v2998 = vld [vmem:[%s2976 + $0xa8] sm:$0xff]
        %v2999 = vld [vmem:[%s2976 + $0xb0] sm:$0xff]
        %v3000 = vld [vmem:[%s2976 + $0xb8] sm:$0xff]
        %v3001 = vld [vmem:[%s2976 + $0xc0] sm:$0xff]
        %v3002 = vld [vmem:[%s2976 + $0xc8] sm:$0xff]
        %v3003 = vld [vmem:[%s2976 + $0xd0] sm:$0xff]
        %v3004 = vld [vmem:[%s2976 + $0xd8] sm:$0xff]
        %v3005 = vld [vmem:[%s2976 + $0xe0] sm:$0xff]
        %v3006 = vld [vmem:[%s2976 + $0xe8] sm:$0xff]
        %v3007 = vld [vmem:[%s2976 + $0xf0] sm:$0xff]
        %v3008 = vld [vmem:[%s2976 + $0xf8] sm:$0xff]
        %3010 = vset.pattern.permute.xlu0 0
        %3011 = vperm.xlu0 %3010, %v2977
        %v3012 = vpop.permute.xlu0 %3011
        %3015 = vset.pattern.permute.xlu0 0
        %3016 = vperm.xlu0 %3015, %v2978
        %v3017 = vpop.permute.xlu0 %3016
        %3020 = vset.pattern.permute.xlu0 0
        %3021 = vperm.xlu0 %3020, %v2979
        %v3022 = vpop.permute.xlu0 %3021
        %3025 = vset.pattern.permute.xlu0 0
        %3026 = vperm.xlu0 %3025, %v2980
        %v3027 = vpop.permute.xlu0 %3026
        %3030 = vset.pattern.permute.xlu0 0
        %3031 = vperm.xlu0 %3030, %v2981
        %v3032 = vpop.permute.xlu0 %3031
        %3035 = vset.pattern.permute.xlu0 0
        %3036 = vperm.xlu0 %3035, %v2982
        %v3037 = vpop.permute.xlu0 %3036
        %3040 = vset.pattern.permute.xlu0 0
        %3041 = vperm.xlu0 %3040, %v2983
        %v3042 = vpop.permute.xlu0 %3041
        %3045 = vset.pattern.permute.xlu0 0
        %3046 = vperm.xlu0 %3045, %v2984
        %v3047 = vpop.permute.xlu0 %3046
        %3050 = vset.pattern.permute.xlu0 0
        %3051 = vperm.xlu0 %3050, %v2985
        %v3052 = vpop.permute.xlu0 %3051
        %3055 = vset.pattern.permute.xlu0 0
        %3056 = vperm.xlu0 %3055, %v2986
        %v3057 = vpop.permute.xlu0 %3056
        %3060 = vset.pattern.permute.xlu0 0
        %3061 = vperm.xlu0 %3060, %v2987
        %v3062 = vpop.permute.xlu0 %3061
        %3065 = vset.pattern.permute.xlu0 0
        %3066 = vperm.xlu0 %3065, %v2988
        %v3067 = vpop.permute.xlu0 %3066
        %3070 = vset.pattern.permute.xlu0 0
        %3071 = vperm.xlu0 %3070, %v2989
        %v3072 = vpop.permute.xlu0 %3071
        %3075 = vset.pattern.permute.xlu0 0
        %3076 = vperm.xlu0 %3075, %v2990
        %v3077 = vpop.permute.xlu0 %3076
        %3080 = vset.pattern.permute.xlu0 0
        %3081 = vperm.xlu0 %3080, %v2991
        %v3082 = vpop.permute.xlu0 %3081
        %3085 = vset.pattern.permute.xlu0 0
        %3086 = vperm.xlu0 %3085, %v2992
        %v3087 = vpop.permute.xlu0 %3086
        %3090 = vset.pattern.permute.xlu0 0
        %3091 = vperm.xlu0 %3090, %v2993
        %v3092 = vpop.permute.xlu0 %3091
        %3095 = vset.pattern.permute.xlu0 0
        %3096 = vperm.xlu0 %3095, %v2994
        %v3097 = vpop.permute.xlu0 %3096
        %3100 = vset.pattern.permute.xlu0 0
        %3101 = vperm.xlu0 %3100, %v2995
        %v3102 = vpop.permute.xlu0 %3101
        %3105 = vset.pattern.permute.xlu0 0
        %3106 = vperm.xlu0 %3105, %v2996
        %v3107 = vpop.permute.xlu0 %3106
        %3110 = vset.pattern.permute.xlu0 0
        %3111 = vperm.xlu0 %3110, %v2997
        %v3112 = vpop.permute.xlu0 %3111
        %3115 = vset.pattern.permute.xlu0 0
        %3116 = vperm.xlu0 %3115, %v2998
        %v3117 = vpop.permute.xlu0 %3116
        %3120 = vset.pattern.permute.xlu0 0
        %3121 = vperm.xlu0 %3120, %v2999
        %v3122 = vpop.permute.xlu0 %3121
        %3125 = vset.pattern.permute.xlu0 0
        %3126 = vperm.xlu0 %3125, %v3000
        %v3127 = vpop.permute.xlu0 %3126
        %3130 = vset.pattern.permute.xlu0 0
        %3131 = vperm.xlu0 %3130, %v3001
        %v3132 = vpop.permute.xlu0 %3131
        %3135 = vset.pattern.permute.xlu0 0
        %3136 = vperm.xlu0 %3135, %v3002
        %v3137 = vpop.permute.xlu0 %3136
        %3140 = vset.pattern.permute.xlu0 0
        %3141 = vperm.xlu0 %3140, %v3003
        %v3142 = vpop.permute.xlu0 %3141
        %3145 = vset.pattern.permute.xlu0 0
        %3146 = vperm.xlu0 %3145, %v3004
        %v3147 = vpop.permute.xlu0 %3146
        %3150 = vset.pattern.permute.xlu0 0
        %3151 = vperm.xlu0 %3150, %v3005
        %v3152 = vpop.permute.xlu0 %3151
        %3155 = vset.pattern.permute.xlu0 0
        %3156 = vperm.xlu0 %3155, %v3006
        %v3157 = vpop.permute.xlu0 %3156
        %3160 = vset.pattern.permute.xlu0 0
        %3161 = vperm.xlu0 %3160, %v3007
        %v3162 = vpop.permute.xlu0 %3161
        %3165 = vset.pattern.permute.xlu0 0
        %3166 = vperm.xlu0 %3165, %v3008
        %v3167 = vpop.permute.xlu0 %3166
        %v3201 = vunpack.c.l.b16 %v2927
        %v3202 = vunpack.c.h.b16 %v2927
        %v3203 = vunpack.c.l.b16 %v2928
        %v3204 = vunpack.c.h.b16 %v2928
        %v3205 = vunpack.c.l.b16 %v2929
        %v3206 = vunpack.c.h.b16 %v2929
        %v3207 = vunpack.c.l.b16 %v2930
        %v3208 = vunpack.c.h.b16 %v2930
        %v3209 = vunpack.c.l.b16 %v2931
        %v3210 = vunpack.c.h.b16 %v2931
        %v3211 = vunpack.c.l.b16 %v2932
        %v3212 = vunpack.c.h.b16 %v2932
        %v3213 = vunpack.c.l.b16 %v2933
        %v3214 = vunpack.c.h.b16 %v2933
        %v3215 = vunpack.c.l.b16 %v2934
        %v3216 = vunpack.c.h.b16 %v2934
        %v3217 = vunpack.c.l.b16 %v2935
        %v3218 = vunpack.c.h.b16 %v2935
        %v3219 = vunpack.c.l.b16 %v2936
        %v3220 = vunpack.c.h.b16 %v2936
        %v3221 = vunpack.c.l.b16 %v2937
        %v3222 = vunpack.c.h.b16 %v2937
        %v3223 = vunpack.c.l.b16 %v2938
        %v3224 = vunpack.c.h.b16 %v2938
        %v3225 = vunpack.c.l.b16 %v2939
        %v3226 = vunpack.c.h.b16 %v2939
        %v3227 = vunpack.c.l.b16 %v2940
        %v3228 = vunpack.c.h.b16 %v2940
        %v3229 = vunpack.c.l.b16 %v2941
        %v3230 = vunpack.c.h.b16 %v2941
        %v3231 = vunpack.c.l.b16 %v2942
        %v3232 = vunpack.c.h.b16 %v2942
        %v3233 = vunpack.c.l.b16 %v2943
        %v3234 = vunpack.c.h.b16 %v2943
        %v3235 = vunpack.c.l.b16 %v2944
        %v3236 = vunpack.c.h.b16 %v2944
        %v3237 = vunpack.c.l.b16 %v2945
        %v3238 = vunpack.c.h.b16 %v2945
        %v3239 = vunpack.c.l.b16 %v2946
        %v3240 = vunpack.c.h.b16 %v2946
        %v3241 = vunpack.c.l.b16 %v2947
        %v3242 = vunpack.c.h.b16 %v2947
        %v3243 = vunpack.c.l.b16 %v2948
        %v3244 = vunpack.c.h.b16 %v2948
        %v3245 = vunpack.c.l.b16 %v2949
        %v3246 = vunpack.c.h.b16 %v2949
        %v3247 = vunpack.c.l.b16 %v2950
        %v3248 = vunpack.c.h.b16 %v2950
        %v3249 = vunpack.c.l.b16 %v2951
        %v3250 = vunpack.c.h.b16 %v2951
        %v3251 = vunpack.c.l.b16 %v2952
        %v3252 = vunpack.c.h.b16 %v2952
        %v3253 = vunpack.c.l.b16 %v2953
        %v3254 = vunpack.c.h.b16 %v2953
        %v3255 = vunpack.c.l.b16 %v2954
        %v3256 = vunpack.c.h.b16 %v2954
        %v3257 = vunpack.c.l.b16 %v2955
        %v3258 = vunpack.c.h.b16 %v2955
        %v3259 = vunpack.c.l.b16 %v2956
        %v3260 = vunpack.c.h.b16 %v2956
        %v3261 = vunpack.c.l.b16 %v2957
        %v3262 = vunpack.c.h.b16 %v2957
        %v3263 = vunpack.c.l.b16 %v2958
        %v3264 = vunpack.c.h.b16 %v2958
        %v3265 = vpack.c.b16 %v3203, %v3201
        %v3266 = vpack.c.b16 %v3204, %v3202
        %v3267 = vpack.c.b16 %v3207, %v3205
        %v3268 = vpack.c.b16 %v3208, %v3206
        %v3269 = vpack.c.b16 %v3211, %v3209
        %v3270 = vpack.c.b16 %v3212, %v3210
        %v3271 = vpack.c.b16 %v3215, %v3213
        %v3272 = vpack.c.b16 %v3216, %v3214
        %v3273 = vpack.c.b16 %v3219, %v3217
        %v3274 = vpack.c.b16 %v3220, %v3218
        %v3275 = vpack.c.b16 %v3223, %v3221
        %v3276 = vpack.c.b16 %v3224, %v3222
        %v3277 = vpack.c.b16 %v3227, %v3225
        %v3278 = vpack.c.b16 %v3228, %v3226
        %v3279 = vpack.c.b16 %v3231, %v3229
        %v3280 = vpack.c.b16 %v3232, %v3230
        %v3281 = vpack.c.b16 %v3235, %v3233
        %v3282 = vpack.c.b16 %v3236, %v3234
        %v3283 = vpack.c.b16 %v3239, %v3237
        %v3284 = vpack.c.b16 %v3240, %v3238
        %v3285 = vpack.c.b16 %v3243, %v3241
        %v3286 = vpack.c.b16 %v3244, %v3242
        %v3287 = vpack.c.b16 %v3247, %v3245
        %v3288 = vpack.c.b16 %v3248, %v3246
        %v3289 = vpack.c.b16 %v3251, %v3249
        %v3290 = vpack.c.b16 %v3252, %v3250
        %v3291 = vpack.c.b16 %v3255, %v3253
        %v3292 = vpack.c.b16 %v3256, %v3254
        %v3293 = vpack.c.b16 %v3259, %v3257
        %v3294 = vpack.c.b16 %v3260, %v3258
        %v3295 = vpack.c.b16 %v3263, %v3261
        %v3296 = vpack.c.b16 %v3264, %v3262
        %3329 = vmatprep.subr.bf16.mxu0 0
        %3330 = vmatpush1.bf16.msra.mxu0 %v2959
        %3331 = vmatprep.subr.bf16.mxu0 0
        %3332 = vmatpush1.bf16.msra.mxu0 %v2960
        %3333 = vmatprep.subr.bf16.mxu0 0
        %3334 = vmatpush1.bf16.msra.mxu0 %v2961
        %3335 = vmatprep.subr.bf16.mxu0 0
        %3336 = vmatpush1.bf16.msra.mxu0 %v2962
        %3337 = vmatprep.subr.bf16.mxu0 0
        %3338 = vmatpush1.bf16.msra.mxu0 %v2963
        %3339 = vmatprep.subr.bf16.mxu0 0
        %3340 = vmatpush1.bf16.msra.mxu0 %v2964
        %3341 = vmatprep.subr.bf16.mxu0 0
        %3342 = vmatpush1.bf16.msra.mxu0 %v2965
        %3343 = vmatprep.subr.bf16.mxu0 0
        %3344 = vmatpush1.bf16.msra.mxu0 %v2966
        %3345 = vmatprep.subr.bf16.mxu0 0
        %3346 = vmatpush1.bf16.msra.mxu0 %v2967
        %3347 = vmatprep.subr.bf16.mxu0 0
        %3348 = vmatpush1.bf16.msra.mxu0 %v2968
        %3349 = vmatprep.subr.bf16.mxu0 0
        %3350 = vmatpush1.bf16.msra.mxu0 %v2969
        %3351 = vmatprep.subr.bf16.mxu0 0
        %3352 = vmatpush1.bf16.msra.mxu0 %v2970
        %3353 = vmatprep.subr.bf16.mxu0 0
        %3354 = vmatpush1.bf16.msra.mxu0 %v2971
        %3355 = vmatprep.subr.bf16.mxu0 0
        %3356 = vmatpush1.bf16.msra.mxu0 %v2972
        %3357 = vmatprep.subr.bf16.mxu0 0
        %3358 = vmatpush1.bf16.msra.mxu0 %v2973
        %3359 = vmatprep.subr.bf16.mxu0 0
        %3360 = vmatpush1.bf16.msra.mxu0 %v2974
        %3361 = vmatprep.mubr.bf16.mxu0 %v3266
        %3362 = vmatmul.mubr.bf16.gmra.mrb[0].mxu0 %v3265
        %v3363 = vpop.f32.mrb[0].mxu0
        %v3364 = vadd.f32 %v3012, %v3363
        %v3365 = vpop.f32.mrb[0].mxu0
        %v3366 = vpop.f32.mrb[0].mxu0
        %v3367 = vadd.f32 %v3017, %v3366
        %v3368 = vpop.f32.mrb[0].mxu0
        %3369 = vmatprep.mubr.bf16.mxu0 %v3268
        %3370 = vmatmul.mubr.bf16.gmra.mrb[0].mxu0 %v3267
        %v3371 = vpop.f32.mrb[0].mxu0
        %v3372 = vadd.f32 %v3022, %v3371
        %v3373 = vpop.f32.mrb[0].mxu0
        %v3374 = vpop.f32.mrb[0].mxu0
        %v3375 = vadd.f32 %v3027, %v3374
        %v3376 = vpop.f32.mrb[0].mxu0
        %3377 = vmatprep.mubr.bf16.mxu0 %v3270
        %3378 = vmatmul.mubr.bf16.gmra.mrb[0].mxu0 %v3269
        %v3379 = vpop.f32.mrb[0].mxu0
        %v3380 = vadd.f32 %v3032, %v3379
        %v3381 = vpop.f32.mrb[0].mxu0
        %v3382 = vpop.f32.mrb[0].mxu0
        %v3383 = vadd.f32 %v3037, %v3382
        %v3384 = vpop.f32.mrb[0].mxu0
        %3385 = vmatprep.mubr.bf16.mxu0 %v3272
        %3386 = vmatmul.mubr.bf16.gmra.mrb[0].mxu0 %v3271
        %v3387 = vpop.f32.mrb[0].mxu0
        %v3388 = vadd.f32 %v3042, %v3387
        %v3389 = vpop.f32.mrb[0].mxu0
        %v3390 = vpop.f32.mrb[0].mxu0
        %v3391 = vadd.f32 %v3047, %v3390
        %v3392 = vpop.f32.mrb[0].mxu0
        %3393 = vmatprep.mubr.bf16.mxu0 %v3274
        %3394 = vmatmul.mubr.bf16.gmra.mrb[0].mxu0 %v3273
        %v3395 = vpop.f32.mrb[0].mxu0
        %v3396 = vadd.f32 %v3052, %v3395
        %v3397 = vpop.f32.mrb[0].mxu0
        %v3398 = vpop.f32.mrb[0].mxu0
        %v3399 = vadd.f32 %v3057, %v3398
        %v3400 = vpop.f32.mrb[0].mxu0
        %3401 = vmatprep.mubr.bf16.mxu0 %v3276
        %3402 = vmatmul.mubr.bf16.gmra.mrb[0].mxu0 %v3275
        %v3403 = vpop.f32.mrb[0].mxu0
        %v3404 = vadd.f32 %v3062, %v3403
        %v3405 = vpop.f32.mrb[0].mxu0
        %v3406 = vpop.f32.mrb[0].mxu0
        %v3407 = vadd.f32 %v3067, %v3406
        %v3408 = vpop.f32.mrb[0].mxu0
        %3409 = vmatprep.mubr.bf16.mxu0 %v3278
        %3410 = vmatmul.mubr.bf16.gmra.mrb[0].mxu0 %v3277
        %v3411 = vpop.f32.mrb[0].mxu0
        %v3412 = vadd.f32 %v3072, %v3411
        %v3413 = vpop.f32.mrb[0].mxu0
        %v3414 = vpop.f32.mrb[0].mxu0
        %v3415 = vadd.f32 %v3077, %v3414
        %v3416 = vpop.f32.mrb[0].mxu0
        %3417 = vmatprep.mubr.bf16.mxu0 %v3280
        %3418 = vmatmul.mubr.bf16.gmra.mrb[0].mxu0 %v3279
        %v3419 = vpop.f32.mrb[0].mxu0
        %v3420 = vadd.f32 %v3082, %v3419
        %v3421 = vpop.f32.mrb[0].mxu0
        %v3422 = vpop.f32.mrb[0].mxu0
        %v3423 = vadd.f32 %v3087, %v3422
        %v3424 = vpop.f32.mrb[0].mxu0
        %3425 = vmatprep.mubr.bf16.mxu0 %v3282
        %3426 = vmatmul.mubr.bf16.gmra.mrb[0].mxu0 %v3281
        %v3427 = vpop.f32.mrb[0].mxu0
        %v3428 = vadd.f32 %v3092, %v3427
        %v3429 = vpop.f32.mrb[0].mxu0
        %v3430 = vpop.f32.mrb[0].mxu0
        %v3431 = vadd.f32 %v3097, %v3430
        %v3432 = vpop.f32.mrb[0].mxu0
        %3433 = vmatprep.mubr.bf16.mxu0 %v3284
        %3434 = vmatmul.mubr.bf16.gmra.mrb[0].mxu0 %v3283
        %v3435 = vpop.f32.mrb[0].mxu0
        %v3436 = vadd.f32 %v3102, %v3435
        %v3437 = vpop.f32.mrb[0].mxu0
        %v3438 = vpop.f32.mrb[0].mxu0
        %v3439 = vadd.f32 %v3107, %v3438
        %v3440 = vpop.f32.mrb[0].mxu0
        %3441 = vmatprep.mubr.bf16.mxu0 %v3286
        %3442 = vmatmul.mubr.bf16.gmra.mrb[0].mxu0 %v3285
        %v3443 = vpop.f32.mrb[0].mxu0
        %v3444 = vadd.f32 %v3112, %v3443
        %v3445 = vpop.f32.mrb[0].mxu0
        %v3446 = vpop.f32.mrb[0].mxu0
        %v3447 = vadd.f32 %v3117, %v3446
        %v3448 = vpop.f32.mrb[0].mxu0
        %3449 = vmatprep.mubr.bf16.mxu0 %v3288
        %3450 = vmatmul.mubr.bf16.gmra.mrb[0].mxu0 %v3287
        %v3451 = vpop.f32.mrb[0].mxu0
        %v3452 = vadd.f32 %v3122, %v3451
        %v3453 = vpop.f32.mrb[0].mxu0
        %v3454 = vpop.f32.mrb[0].mxu0
        %v3455 = vadd.f32 %v3127, %v3454
        %v3456 = vpop.f32.mrb[0].mxu0
        %3457 = vmatprep.mubr.bf16.mxu0 %v3290
        %3458 = vmatmul.mubr.bf16.gmra.mrb[0].mxu0 %v3289
        %v3459 = vpop.f32.mrb[0].mxu0
        %v3460 = vadd.f32 %v3132, %v3459
        %v3461 = vpop.f32.mrb[0].mxu0
        %v3462 = vpop.f32.mrb[0].mxu0
        %v3463 = vadd.f32 %v3137, %v3462
        %v3464 = vpop.f32.mrb[0].mxu0
        %3465 = vmatprep.mubr.bf16.mxu0 %v3292
        %3466 = vmatmul.mubr.bf16.gmra.mrb[0].mxu0 %v3291
        %v3467 = vpop.f32.mrb[0].mxu0
        %v3468 = vadd.f32 %v3142, %v3467
        %v3469 = vpop.f32.mrb[0].mxu0
        %v3470 = vpop.f32.mrb[0].mxu0
        %v3471 = vadd.f32 %v3147, %v3470
        %v3472 = vpop.f32.mrb[0].mxu0
        %3473 = vmatprep.mubr.bf16.mxu0 %v3294
        %3474 = vmatmul.mubr.bf16.gmra.mrb[0].mxu0 %v3293
        %v3475 = vpop.f32.mrb[0].mxu0
        %v3476 = vadd.f32 %v3152, %v3475
        %v3477 = vpop.f32.mrb[0].mxu0
        %v3478 = vpop.f32.mrb[0].mxu0
        %v3479 = vadd.f32 %v3157, %v3478
        %v3480 = vpop.f32.mrb[0].mxu0
        %3481 = vmatprep.mubr.bf16.mxu0 %v3296
        %3482 = vmatmul.mubr.bf16.gmra.mrb[0].mxu0 %v3295
        %v3483 = vpop.f32.mrb[0].mxu0
        %v3484 = vadd.f32 %v3162, %v3483
        %v3485 = vpop.f32.mrb[0].mxu0
        %v3486 = vpop.f32.mrb[0].mxu0
        %v3487 = vadd.f32 %v3167, %v3486
        %v3488 = vpop.f32.mrb[0].mxu0
        %3489 = vdwg.mxu0
        %v3490 = vmul.f32 %v2046, 0.5
        %v3491 = vmul.f32 %v2050, 0.5
        %v3492 = vmul.f32 %v2056, 0.5
        %v3493 = vmul.f32 %v2060, 0.5
        %v3494 = vmul.f32 %v2066, 0.5
        %v3495 = vmul.f32 %v2070, 0.5
        %v3496 = vmul.f32 %v2076, 0.5
        %v3497 = vmul.f32 %v2080, 0.5
        %v3498 = vmul.f32 %v2086, 0.5
        %v3499 = vmul.f32 %v2090, 0.5
        %v3500 = vmul.f32 %v2096, 0.5
        %v3501 = vmul.f32 %v2100, 0.5
        %v3502 = vmul.f32 %v2106, 0.5
        %v3503 = vmul.f32 %v2110, 0.5
        %v3504 = vmul.f32 %v2116, 0.5
        %v3505 = vmul.f32 %v2120, 0.5
        %v3506 = vmul.f32 %v2126, 0.5
        %v3507 = vmul.f32 %v2130, 0.5
        %v3508 = vmul.f32 %v2136, 0.5
        %v3509 = vmul.f32 %v2140, 0.5
        %v3510 = vmul.f32 %v2146, 0.5
        %v3511 = vmul.f32 %v2150, 0.5
        %v3512 = vmul.f32 %v2156, 0.5
        %v3513 = vmul.f32 %v2160, 0.5
        %v3514 = vmul.f32 %v2166, 0.5
        %v3515 = vmul.f32 %v2170, 0.5
        %v3516 = vmul.f32 %v2176, 0.5
        %v3517 = vmul.f32 %v2180, 0.5
        %v3518 = vmul.f32 %v2186, 0.5
        %v3519 = vmul.f32 %v2190, 0.5
        %v3520 = vmul.f32 %v2196, 0.5
        %v3521 = vmul.f32 %v2200, 0.5
        %v3522 = vmul.f32 %v2046, 0.044715
        %v3523 = vmul.f32 %v2050, 0.044715
        %v3524 = vmul.f32 %v2056, 0.044715
        %v3525 = vmul.f32 %v2060, 0.044715
        %v3526 = vmul.f32 %v2066, 0.044715
        %v3527 = vmul.f32 %v2070, 0.044715
        %v3528 = vmul.f32 %v2076, 0.044715
        %v3529 = vmul.f32 %v2080, 0.044715
        %v3530 = vmul.f32 %v2086, 0.044715
        %v3531 = vmul.f32 %v2090, 0.044715
        %v3532 = vmul.f32 %v2096, 0.044715
        %v3533 = vmul.f32 %v2100, 0.044715
        %v3534 = vmul.f32 %v2106, 0.044715
        %v3535 = vmul.f32 %v2110, 0.044715
        %v3536 = vmul.f32 %v2116, 0.044715
        %v3537 = vmul.f32 %v2120, 0.044715
        %v3538 = vmul.f32 %v2126, 0.044715
        %v3539 = vmul.f32 %v2130, 0.044715
        %v3540 = vmul.f32 %v2136, 0.044715
        %v3541 = vmul.f32 %v2140, 0.044715
        %v3542 = vmul.f32 %v2146, 0.044715
        %v3543 = vmul.f32 %v2150, 0.044715
        %v3544 = vmul.f32 %v2156, 0.044715
        %v3545 = vmul.f32 %v2160, 0.044715
        %v3546 = vmul.f32 %v2166, 0.044715
        %v3547 = vmul.f32 %v2170, 0.044715
        %v3548 = vmul.f32 %v2176, 0.044715
        %v3549 = vmul.f32 %v2180, 0.044715
        %v3550 = vmul.f32 %v2186, 0.044715
        %v3551 = vmul.f32 %v2190, 0.044715
        %v3552 = vmul.f32 %v2196, 0.044715
        %v3553 = vmul.f32 %v2200, 0.044715
        %v3554 = vmul.f32 %v3522, %v2046
        %v3555 = vmul.f32 %v3523, %v2050
        %v3556 = vmul.f32 %v3524, %v2056
        %v3557 = vmul.f32 %v3525, %v2060
        %v3558 = vmul.f32 %v3526, %v2066
        %v3559 = vmul.f32 %v3527, %v2070
        %v3560 = vmul.f32 %v3528, %v2076
        %v3561 = vmul.f32 %v3529, %v2080
        %v3562 = vmul.f32 %v3530, %v2086
        %v3563 = vmul.f32 %v3531, %v2090
        %v3564 = vmul.f32 %v3532, %v2096
        %v3565 = vmul.f32 %v3533, %v2100
        %v3566 = vmul.f32 %v3534, %v2106
        %v3567 = vmul.f32 %v3535, %v2110
        %v3568 = vmul.f32 %v3536, %v2116
        %v3569 = vmul.f32 %v3537, %v2120
        %v3570 = vmul.f32 %v3538, %v2126
        %v3571 = vmul.f32 %v3539, %v2130
        %v3572 = vmul.f32 %v3540, %v2136
        %v3573 = vmul.f32 %v3541, %v2140
        %v3574 = vmul.f32 %v3542, %v2146
        %v3575 = vmul.f32 %v3543, %v2150
        %v3576 = vmul.f32 %v3544, %v2156
        %v3577 = vmul.f32 %v3545, %v2160
        %v3578 = vmul.f32 %v3546, %v2166
        %v3579 = vmul.f32 %v3547, %v2170
        %v3580 = vmul.f32 %v3548, %v2176
        %v3581 = vmul.f32 %v3549, %v2180
        %v3582 = vmul.f32 %v3550, %v2186
        %v3583 = vmul.f32 %v3551, %v2190
        %v3584 = vmul.f32 %v3552, %v2196
        %v3585 = vmul.f32 %v3553, %v2200
        %v3586 = vmul.f32 %v3554, %v2046
        %v3587 = vmul.f32 %v3555, %v2050
        %v3588 = vmul.f32 %v3556, %v2056
        %v3589 = vmul.f32 %v3557, %v2060
        %v3590 = vmul.f32 %v3558, %v2066
        %v3591 = vmul.f32 %v3559, %v2070
        %v3592 = vmul.f32 %v3560, %v2076
        %v3593 = vmul.f32 %v3561, %v2080
        %v3594 = vmul.f32 %v3562, %v2086
        %v3595 = vmul.f32 %v3563, %v2090
        %v3596 = vmul.f32 %v3564, %v2096
        %v3597 = vmul.f32 %v3565, %v2100
        %v3598 = vmul.f32 %v3566, %v2106
        %v3599 = vmul.f32 %v3567, %v2110
        %v3600 = vmul.f32 %v3568, %v2116
        %v3601 = vmul.f32 %v3569, %v2120
        %v3602 = vmul.f32 %v3570, %v2126
        %v3603 = vmul.f32 %v3571, %v2130
        %v3604 = vmul.f32 %v3572, %v2136
        %v3605 = vmul.f32 %v3573, %v2140
        %v3606 = vmul.f32 %v3574, %v2146
        %v3607 = vmul.f32 %v3575, %v2150
        %v3608 = vmul.f32 %v3576, %v2156
        %v3609 = vmul.f32 %v3577, %v2160
        %v3610 = vmul.f32 %v3578, %v2166
        %v3611 = vmul.f32 %v3579, %v2170
        %v3612 = vmul.f32 %v3580, %v2176
        %v3613 = vmul.f32 %v3581, %v2180
        %v3614 = vmul.f32 %v3582, %v2186
        %v3615 = vmul.f32 %v3583, %v2190
        %v3616 = vmul.f32 %v3584, %v2196
        %v3617 = vmul.f32 %v3585, %v2200
        %v3618 = vadd.f32 %v2046, %v3586
        %v3619 = vadd.f32 %v2050, %v3587
        %v3620 = vadd.f32 %v2056, %v3588
        %v3621 = vadd.f32 %v2060, %v3589
        %v3622 = vadd.f32 %v2066, %v3590
        %v3623 = vadd.f32 %v2070, %v3591
        %v3624 = vadd.f32 %v2076, %v3592
        %v3625 = vadd.f32 %v2080, %v3593
        %v3626 = vadd.f32 %v2086, %v3594
        %v3627 = vadd.f32 %v2090, %v3595
        %v3628 = vadd.f32 %v2096, %v3596
        %v3629 = vadd.f32 %v2100, %v3597
        %v3630 = vadd.f32 %v2106, %v3598
        %v3631 = vadd.f32 %v2110, %v3599
        %v3632 = vadd.f32 %v2116, %v3600
        %v3633 = vadd.f32 %v2120, %v3601
        %v3634 = vadd.f32 %v2126, %v3602
        %v3635 = vadd.f32 %v2130, %v3603
        %v3636 = vadd.f32 %v2136, %v3604
        %v3637 = vadd.f32 %v2140, %v3605
        %v3638 = vadd.f32 %v2146, %v3606
        %v3639 = vadd.f32 %v2150, %v3607
        %v3640 = vadd.f32 %v2156, %v3608
        %v3641 = vadd.f32 %v2160, %v3609
        %v3642 = vadd.f32 %v2166, %v3610
        %v3643 = vadd.f32 %v2170, %v3611
        %v3644 = vadd.f32 %v2176, %v3612
        %v3645 = vadd.f32 %v2180, %v3613
        %v3646 = vadd.f32 %v2186, %v3614
        %v3647 = vadd.f32 %v2190, %v3615
        %v3648 = vadd.f32 %v2196, %v3616
        %v3649 = vadd.f32 %v2200, %v3617
        %v3650 = vmul.f32 %v3618, 0.7978845
        %v3651 = vmul.f32 %v3619, 0.7978845
        %v3652 = vmul.f32 %v3620, 0.7978845
        %v3653 = vmul.f32 %v3621, 0.7978845
        %v3654 = vmul.f32 %v3622, 0.7978845
        %v3655 = vmul.f32 %v3623, 0.7978845
        %v3656 = vmul.f32 %v3624, 0.7978845
        %v3657 = vmul.f32 %v3625, 0.7978845
        %v3658 = vmul.f32 %v3626, 0.7978845
        %v3659 = vmul.f32 %v3627, 0.7978845
        %v3660 = vmul.f32 %v3628, 0.7978845
        %v3661 = vmul.f32 %v3629, 0.7978845
        %v3662 = vmul.f32 %v3630, 0.7978845
        %v3663 = vmul.f32 %v3631, 0.7978845
        %v3664 = vmul.f32 %v3632, 0.7978845
        %v3665 = vmul.f32 %v3633, 0.7978845
        %v3666 = vmul.f32 %v3634, 0.7978845
        %v3667 = vmul.f32 %v3635, 0.7978845
        %v3668 = vmul.f32 %v3636, 0.7978845
        %v3669 = vmul.f32 %v3637, 0.7978845
        %v3670 = vmul.f32 %v3638, 0.7978845
        %v3671 = vmul.f32 %v3639, 0.7978845
        %v3672 = vmul.f32 %v3640, 0.7978845
        %v3673 = vmul.f32 %v3641, 0.7978845
        %v3674 = vmul.f32 %v3642, 0.7978845
        %v3675 = vmul.f32 %v3643, 0.7978845
        %v3676 = vmul.f32 %v3644, 0.7978845
        %v3677 = vmul.f32 %v3645, 0.7978845
        %v3678 = vmul.f32 %v3646, 0.7978845
        %v3679 = vmul.f32 %v3647, 0.7978845
        %v3680 = vmul.f32 %v3648, 0.7978845
        %v3681 = vmul.f32 %v3649, 0.7978845
        %v3682 = vtanh.pop %v3650
        %v3683 = vtanh.pop %v3651
        %v3684 = vtanh.pop %v3652
        %v3685 = vtanh.pop %v3653
        %v3686 = vtanh.pop %v3654
        %v3687 = vtanh.pop %v3655
        %v3688 = vtanh.pop %v3656
        %v3689 = vtanh.pop %v3657
        %v3690 = vtanh.pop %v3658
        %v3691 = vtanh.pop %v3659
        %v3692 = vtanh.pop %v3660
        %v3693 = vtanh.pop %v3661
        %v3694 = vtanh.pop %v3662
        %v3695 = vtanh.pop %v3663
        %v3696 = vtanh.pop %v3664
        %v3697 = vtanh.pop %v3665
        %v3698 = vtanh.pop %v3666
        %v3699 = vtanh.pop %v3667
        %v3700 = vtanh.pop %v3668
        %v3701 = vtanh.pop %v3669
        %v3702 = vtanh.pop %v3670
        %v3703 = vtanh.pop %v3671
        %v3704 = vtanh.pop %v3672
        %v3705 = vtanh.pop %v3673
        %v3706 = vtanh.pop %v3674
        %v3707 = vtanh.pop %v3675
        %v3708 = vtanh.pop %v3676
        %v3709 = vtanh.pop %v3677
        %v3710 = vtanh.pop %v3678
        %v3711 = vtanh.pop %v3679
        %v3712 = vtanh.pop %v3680
        %v3713 = vtanh.pop %v3681
        %v3714 = vadd.f32 %v3682, 1.0
        %v3715 = vadd.f32 %v3683, 1.0
        %v3716 = vadd.f32 %v3684, 1.0
        %v3717 = vadd.f32 %v3685, 1.0
        %v3718 = vadd.f32 %v3686, 1.0
        %v3719 = vadd.f32 %v3687, 1.0
        %v3720 = vadd.f32 %v3688, 1.0
        %v3721 = vadd.f32 %v3689, 1.0
        %v3722 = vadd.f32 %v3690, 1.0
        %v3723 = vadd.f32 %v3691, 1.0
        %v3724 = vadd.f32 %v3692, 1.0
        %v3725 = vadd.f32 %v3693, 1.0
        %v3726 = vadd.f32 %v3694, 1.0
        %v3727 = vadd.f32 %v3695, 1.0
        %v3728 = vadd.f32 %v3696, 1.0
        %v3729 = vadd.f32 %v3697, 1.0
        %v3730 = vadd.f32 %v3698, 1.0
        %v3731 = vadd.f32 %v3699, 1.0
        %v3732 = vadd.f32 %v3700, 1.0
        %v3733 = vadd.f32 %v3701, 1.0
        %v3734 = vadd.f32 %v3702, 1.0
        %v3735 = vadd.f32 %v3703, 1.0
        %v3736 = vadd.f32 %v3704, 1.0
        %v3737 = vadd.f32 %v3705, 1.0
        %v3738 = vadd.f32 %v3706, 1.0
        %v3739 = vadd.f32 %v3707, 1.0
        %v3740 = vadd.f32 %v3708, 1.0
        %v3741 = vadd.f32 %v3709, 1.0
        %v3742 = vadd.f32 %v3710, 1.0
        %v3743 = vadd.f32 %v3711, 1.0
        %v3744 = vadd.f32 %v3712, 1.0
        %v3745 = vadd.f32 %v3713, 1.0
        %v3746 = vmul.f32 %v3490, %v3714
        %v3747 = vmul.f32 %v3491, %v3715
        %v3748 = vmul.f32 %v3492, %v3716
        %v3749 = vmul.f32 %v3493, %v3717
        %v3750 = vmul.f32 %v3494, %v3718
        %v3751 = vmul.f32 %v3495, %v3719
        %v3752 = vmul.f32 %v3496, %v3720
        %v3753 = vmul.f32 %v3497, %v3721
        %v3754 = vmul.f32 %v3498, %v3722
        %v3755 = vmul.f32 %v3499, %v3723
        %v3756 = vmul.f32 %v3500, %v3724
        %v3757 = vmul.f32 %v3501, %v3725
        %v3758 = vmul.f32 %v3502, %v3726
        %v3759 = vmul.f32 %v3503, %v3727
        %v3760 = vmul.f32 %v3504, %v3728
        %v3761 = vmul.f32 %v3505, %v3729
        %v3762 = vmul.f32 %v3506, %v3730
        %v3763 = vmul.f32 %v3507, %v3731
        %v3764 = vmul.f32 %v3508, %v3732
        %v3765 = vmul.f32 %v3509, %v3733
        %v3766 = vmul.f32 %v3510, %v3734
        %v3767 = vmul.f32 %v3511, %v3735
        %v3768 = vmul.f32 %v3512, %v3736
        %v3769 = vmul.f32 %v3513, %v3737
        %v3770 = vmul.f32 %v3514, %v3738
        %v3771 = vmul.f32 %v3515, %v3739
        %v3772 = vmul.f32 %v3516, %v3740
        %v3773 = vmul.f32 %v3517, %v3741
        %v3774 = vmul.f32 %v3518, %v3742
        %v3775 = vmul.f32 %v3519, %v3743
        %v3776 = vmul.f32 %v3520, %v3744
        %v3777 = vmul.f32 %v3521, %v3745
        %v3778 = vmul.f32 %v3746, %v3364
        %v3779 = vmul.f32 %v3747, %v3367
        %v3780 = vmul.f32 %v3748, %v3372
        %v3781 = vmul.f32 %v3749, %v3375
        %v3782 = vmul.f32 %v3750, %v3380
        %v3783 = vmul.f32 %v3751, %v3383
        %v3784 = vmul.f32 %v3752, %v3388
        %v3785 = vmul.f32 %v3753, %v3391
        %v3786 = vmul.f32 %v3754, %v3396
        %v3787 = vmul.f32 %v3755, %v3399
        %v3788 = vmul.f32 %v3756, %v3404
        %v3789 = vmul.f32 %v3757, %v3407
        %v3790 = vmul.f32 %v3758, %v3412
        %v3791 = vmul.f32 %v3759, %v3415
        %v3792 = vmul.f32 %v3760, %v3420
        %v3793 = vmul.f32 %v3761, %v3423
        %v3794 = vmul.f32 %v3762, %v3428
        %v3795 = vmul.f32 %v3763, %v3431
        %v3796 = vmul.f32 %v3764, %v3436
        %v3797 = vmul.f32 %v3765, %v3439
        %v3798 = vmul.f32 %v3766, %v3444
        %v3799 = vmul.f32 %v3767, %v3447
        %v3800 = vmul.f32 %v3768, %v3452
        %v3801 = vmul.f32 %v3769, %v3455
        %v3802 = vmul.f32 %v3770, %v3460
        %v3803 = vmul.f32 %v3771, %v3463
        %v3804 = vmul.f32 %v3772, %v3468
        %v3805 = vmul.f32 %v3773, %v3471
        %v3806 = vmul.f32 %v3774, %v3476
        %v3807 = vmul.f32 %v3775, %v3479
        %v3808 = vmul.f32 %v3776, %v3484
        %v3809 = vmul.f32 %v3777, %v3487
        %v3810 = vpack.c.bf16 %v3779, %v3778
        %v3811 = vpack.c.bf16 %v3781, %v3780
        %v3812 = vpack.c.bf16 %v3783, %v3782
        %v3813 = vpack.c.bf16 %v3785, %v3784
        %v3814 = vpack.c.bf16 %v3787, %v3786
        %v3815 = vpack.c.bf16 %v3789, %v3788
        %v3816 = vpack.c.bf16 %v3791, %v3790
        %v3817 = vpack.c.bf16 %v3793, %v3792
        %v3818 = vpack.c.bf16 %v3795, %v3794
        %v3819 = vpack.c.bf16 %v3797, %v3796
        %v3820 = vpack.c.bf16 %v3799, %v3798
        %v3821 = vpack.c.bf16 %v3801, %v3800
        %v3822 = vpack.c.bf16 %v3803, %v3802
        %v3823 = vpack.c.bf16 %v3805, %v3804
        %v3824 = vpack.c.bf16 %v3807, %v3806
        %v3825 = vpack.c.bf16 %v3809, %v3808
        %s3826 = smul.u32 %s1412, 16
        %s3827 = smul.addr %s3826, 4
        %s3828 = scalar_lea.vmem %s11, %s3827
        %v3829 = vld [vmem:[%s3828] sm:$0xf]
        %v3830 = vld [vmem:[%s3828 + $0x4] sm:$0xf]
        %v3831 = vld [vmem:[%s3828 + $0x8] sm:$0xf]
        %v3832 = vld [vmem:[%s3828 + $0xc] sm:$0xf]
        %v3833 = vld [vmem:[%s3828 + $0x10] sm:$0xf]
        %v3834 = vld [vmem:[%s3828 + $0x14] sm:$0xf]
        %v3835 = vld [vmem:[%s3828 + $0x18] sm:$0xf]
        %v3836 = vld [vmem:[%s3828 + $0x1c] sm:$0xf]
        %v3837 = vld [vmem:[%s3828 + $0x20] sm:$0xf]
        %v3838 = vld [vmem:[%s3828 + $0x24] sm:$0xf]
        %v3839 = vld [vmem:[%s3828 + $0x28] sm:$0xf]
        %v3840 = vld [vmem:[%s3828 + $0x2c] sm:$0xf]
        %v3841 = vld [vmem:[%s3828 + $0x30] sm:$0xf]
        %v3842 = vld [vmem:[%s3828 + $0x34] sm:$0xf]
        %v3843 = vld [vmem:[%s3828 + $0x38] sm:$0xf]
        %v3844 = vld [vmem:[%s3828 + $0x3c] sm:$0xf]
        %s3845 = scalar_lea.vmem %s12, %s1412
        %v3846 = vld [vmem:[%s3845] sm:$0x1]
        %v3848 = vlaneseq
        %v3849 = vshrl.u32 %v3848, 7
        %v3850 = vsub.s32 0, %v3849
        %v3851 = vrot.slane %v3846, %v3850
        %v3869 = vunpack.c.l.b16 %v3829
        %v3870 = vunpack.c.l.b16 %v3830
        %v3871 = vunpack.c.l.b16 %v3831
        %v3872 = vunpack.c.l.b16 %v3832
        %v3873 = vunpack.c.l.b16 %v3833
        %v3874 = vunpack.c.l.b16 %v3834
        %v3875 = vunpack.c.l.b16 %v3835
        %v3876 = vunpack.c.l.b16 %v3836
        %v3877 = vunpack.c.l.b16 %v3837
        %v3878 = vunpack.c.l.b16 %v3838
        %v3879 = vunpack.c.l.b16 %v3839
        %v3880 = vunpack.c.l.b16 %v3840
        %v3881 = vunpack.c.l.b16 %v3841
        %v3882 = vunpack.c.l.b16 %v3842
        %v3883 = vunpack.c.l.b16 %v3843
        %v3884 = vunpack.c.l.b16 %v3844
        %v3885 = vpack.c.b16 %v3870, %v3869
        %v3886 = vpack.c.b16 %v3872, %v3871
        %v3887 = vpack.c.b16 %v3874, %v3873
        %v3888 = vpack.c.b16 %v3876, %v3875
        %v3889 = vpack.c.b16 %v3878, %v3877
        %v3890 = vpack.c.b16 %v3880, %v3879
        %v3891 = vpack.c.b16 %v3882, %v3881
        %v3892 = vpack.c.b16 %v3884, %v3883
        %3901 = vmatprep.subr.bf16.mxu0 0
        %3902 = vmatpush1.bf16.msra.mxu0 %v3885
        %3903 = vmatprep.subr.bf16.mxu0 0
        %3904 = vmatpush1.bf16.msra.mxu0 %v3886
        %3905 = vmatprep.subr.bf16.mxu0 0
        %3906 = vmatpush1.bf16.msra.mxu0 %v3887
        %3907 = vmatprep.subr.bf16.mxu0 0
        %3908 = vmatpush1.bf16.msra.mxu0 %v3888
        %3909 = vmatprep.subr.bf16.mxu0 0
        %3910 = vmatpush1.bf16.msra.mxu0 %v3889
        %3911 = vmatprep.subr.bf16.mxu0 0
        %3912 = vmatpush1.bf16.msra.mxu0 %v3890
        %3913 = vmatprep.subr.bf16.mxu0 0
        %3914 = vmatpush1.bf16.msra.mxu0 %v3891
        %3915 = vmatprep.subr.bf16.mxu0 0
        %3916 = vmatpush1.bf16.msra.mxu0 %v3892
        %3917 = vmatprep.subr.bf16.mxu0 0
        %3918 = vmatpush1.bf16.msra.mxu0 0
        %3919 = vmatprep.subr.bf16.mxu0 0
        %3920 = vmatpush1.bf16.msra.mxu0 0
        %3921 = vmatprep.subr.bf16.mxu0 0
        %3922 = vmatpush1.bf16.msra.mxu0 0
        %3923 = vmatprep.subr.bf16.mxu0 0
        %3924 = vmatpush1.bf16.msra.mxu0 0
        %3925 = vmatprep.subr.bf16.mxu0 0
        %3926 = vmatpush1.bf16.msra.mxu0 0
        %3927 = vmatprep.subr.bf16.mxu0 0
        %3928 = vmatpush1.bf16.msra.mxu0 0
        %3929 = vmatprep.subr.bf16.mxu0 0
        %3930 = vmatpush1.bf16.msra.mxu0 0
        %3931 = vmatprep.subr.bf16.mxu0 0
        %3932 = vmatpush1.bf16.msra.mxu0 0
        %3933 = vmatprep.mubr.bf16.mxu0 0
        %3934 = vmatmul.mubr.bf16.gmra.mrb[0].mxu0 %v3810
        %v3935 = vpop.f32.mrb[0].mxu0
        %v3936 = vadd.f32 %v3851, %v3935
        %v3937 = vpop.f32.mrb[0].mxu0
        %v3938 = vpop.f32.mrb[0].mxu0
        %v3939 = vadd.f32 %v3851, %v3938
        %v3940 = vpop.f32.mrb[0].mxu0
        %3941 = vmatprep.mubr.bf16.mxu0 0
        %3942 = vmatmul.mubr.bf16.gmra.mrb[0].mxu0 %v3811
        %v3943 = vpop.f32.mrb[0].mxu0
        %v3944 = vadd.f32 %v3851, %v3943
        %v3945 = vpop.f32.mrb[0].mxu0
        %v3946 = vpop.f32.mrb[0].mxu0
        %v3947 = vadd.f32 %v3851, %v3946
        %v3948 = vpop.f32.mrb[0].mxu0
        %3949 = vmatprep.mubr.bf16.mxu0 0
        %3950 = vmatmul.mubr.bf16.gmra.mrb[0].mxu0 %v3812
        %v3951 = vpop.f32.mrb[0].mxu0
        %v3952 = vadd.f32 %v3851, %v3951
        %v3953 = vpop.f32.mrb[0].mxu0
        %v3954 = vpop.f32.mrb[0].mxu0
        %v3955 = vadd.f32 %v3851, %v3954
        %v3956 = vpop.f32.mrb[0].mxu0
        %3957 = vmatprep.mubr.bf16.mxu0 0
        %3958 = vmatmul.mubr.bf16.gmra.mrb[0].mxu0 %v3813
        %v3959 = vpop.f32.mrb[0].mxu0
        %v3960 = vadd.f32 %v3851, %v3959
        %v3961 = vpop.f32.mrb[0].mxu0
        %v3962 = vpop.f32.mrb[0].mxu0
        %v3963 = vadd.f32 %v3851, %v3962
        %v3964 = vpop.f32.mrb[0].mxu0
        %3965 = vmatprep.mubr.bf16.mxu0 0
        %3966 = vmatmul.mubr.bf16.gmra.mrb[0].mxu0 %v3814
        %v3967 = vpop.f32.mrb[0].mxu0
        %v3968 = vadd.f32 %v3851, %v3967
        %v3969 = vpop.f32.mrb[0].mxu0
        %v3970 = vpop.f32.mrb[0].mxu0
        %v3971 = vadd.f32 %v3851, %v3970
        %v3972 = vpop.f32.mrb[0].mxu0
        %3973 = vmatprep.mubr.bf16.mxu0 0
        %3974 = vmatmul.mubr.bf16.gmra.mrb[0].mxu0 %v3815
        %v3975 = vpop.f32.mrb[0].mxu0
        %v3976 = vadd.f32 %v3851, %v3975
        %v3977 = vpop.f32.mrb[0].mxu0
        %v3978 = vpop.f32.mrb[0].mxu0
        %v3979 = vadd.f32 %v3851, %v3978
        %v3980 = vpop.f32.mrb[0].mxu0
        %3981 = vmatprep.mubr.bf16.mxu0 0
        %3982 = vmatmul.mubr.bf16.gmra.mrb[0].mxu0 %v3816
        %v3983 = vpop.f32.mrb[0].mxu0
        %v3984 = vadd.f32 %v3851, %v3983
        %v3985 = vpop.f32.mrb[0].mxu0
        %v3986 = vpop.f32.mrb[0].mxu0
        %v3987 = vadd.f32 %v3851, %v3986
        %v3988 = vpop.f32.mrb[0].mxu0
        %3989 = vmatprep.mubr.bf16.mxu0 0
        %3990 = vmatmul.mubr.bf16.gmra.mrb[0].mxu0 %v3817
        %v3991 = vpop.f32.mrb[0].mxu0
        %v3992 = vadd.f32 %v3851, %v3991
        %v3993 = vpop.f32.mrb[0].mxu0
        %v3994 = vpop.f32.mrb[0].mxu0
        %v3995 = vadd.f32 %v3851, %v3994
        %v3996 = vpop.f32.mrb[0].mxu0
        %3997 = vmatprep.mubr.bf16.mxu0 0
        %3998 = vmatmul.mubr.bf16.gmra.mrb[0].mxu0 %v3818
        %v3999 = vpop.f32.mrb[0].mxu0
        %v4000 = vadd.f32 %v3851, %v3999
        %v4001 = vpop.f32.mrb[0].mxu0
        %v4002 = vpop.f32.mrb[0].mxu0
        %v4003 = vadd.f32 %v3851, %v4002
        %v4004 = vpop.f32.mrb[0].mxu0
        %4005 = vmatprep.mubr.bf16.mxu0 0
        %4006 = vmatmul.mubr.bf16.gmra.mrb[0].mxu0 %v3819
        %v4007 = vpop.f32.mrb[0].mxu0
        %v4008 = vadd.f32 %v3851, %v4007
        %v4009 = vpop.f32.mrb[0].mxu0
        %v4010 = vpop.f32.mrb[0].mxu0
        %v4011 = vadd.f32 %v3851, %v4010
        %v4012 = vpop.f32.mrb[0].mxu0
        %4013 = vmatprep.mubr.bf16.mxu0 0
        %4014 = vmatmul.mubr.bf16.gmra.mrb[0].mxu0 %v3820
        %v4015 = vpop.f32.mrb[0].mxu0
        %v4016 = vadd.f32 %v3851, %v4015
        %v4017 = vpop.f32.mrb[0].mxu0
        %v4018 = vpop.f32.mrb[0].mxu0
        %v4019 = vadd.f32 %v3851, %v4018
        %v4020 = vpop.f32.mrb[0].mxu0
        %4021 = vmatprep.mubr.bf16.mxu0 0
        %4022 = vmatmul.mubr.bf16.gmra.mrb[0].mxu0 %v3821
        %v4023 = vpop.f32.mrb[0].mxu0
        %v4024 = vadd.f32 %v3851, %v4023
        %v4025 = vpop.f32.mrb[0].mxu0
        %v4026 = vpop.f32.mrb[0].mxu0
        %v4027 = vadd.f32 %v3851, %v4026
        %v4028 = vpop.f32.mrb[0].mxu0
        %4029 = vmatprep.mubr.bf16.mxu0 0
        %4030 = vmatmul.mubr.bf16.gmra.mrb[0].mxu0 %v3822
        %v4031 = vpop.f32.mrb[0].mxu0
        %v4032 = vadd.f32 %v3851, %v4031
        %v4033 = vpop.f32.mrb[0].mxu0
        %v4034 = vpop.f32.mrb[0].mxu0
        %v4035 = vadd.f32 %v3851, %v4034
        %v4036 = vpop.f32.mrb[0].mxu0
        %4037 = vmatprep.mubr.bf16.mxu0 0
        %4038 = vmatmul.mubr.bf16.gmra.mrb[0].mxu0 %v3823
        %v4039 = vpop.f32.mrb[0].mxu0
        %v4040 = vadd.f32 %v3851, %v4039
        %v4041 = vpop.f32.mrb[0].mxu0
        %v4042 = vpop.f32.mrb[0].mxu0
        %v4043 = vadd.f32 %v3851, %v4042
        %v4044 = vpop.f32.mrb[0].mxu0
        %4045 = vmatprep.mubr.bf16.mxu0 0
        %4046 = vmatmul.mubr.bf16.gmra.mrb[0].mxu0 %v3824
        %v4047 = vpop.f32.mrb[0].mxu0
        %v4048 = vadd.f32 %v3851, %v4047
        %v4049 = vpop.f32.mrb[0].mxu0
        %v4050 = vpop.f32.mrb[0].mxu0
        %v4051 = vadd.f32 %v3851, %v4050
        %v4052 = vpop.f32.mrb[0].mxu0
        %4053 = vmatprep.mubr.bf16.mxu0 0
        %4054 = vmatmul.mubr.bf16.gmra.mrb[0].mxu0 %v3825
        %v4055 = vpop.f32.mrb[0].mxu0
        %v4056 = vadd.f32 %v3851, %v4055
        %v4057 = vpop.f32.mrb[0].mxu0
        %v4058 = vpop.f32.mrb[0].mxu0
        %v4059 = vadd.f32 %v3851, %v4058
        %v4060 = vpop.f32.mrb[0].mxu0
        %4061 = vdwg.mxu0
        %v4062 = vadd.f32 %v1417, %v3936
        %v4063 = vadd.f32 %v1418, %v3939
        %v4064 = vadd.f32 %v1419, %v3944
        %v4065 = vadd.f32 %v1420, %v3947
        %v4066 = vadd.f32 %v1421, %v3952
        %v4067 = vadd.f32 %v1422, %v3955
        %v4068 = vadd.f32 %v1423, %v3960
        %v4069 = vadd.f32 %v1424, %v3963
        %v4070 = vadd.f32 %v1425, %v3968
        %v4071 = vadd.f32 %v1426, %v3971
        %v4072 = vadd.f32 %v1427, %v3976
        %v4073 = vadd.f32 %v1428, %v3979
        %v4074 = vadd.f32 %v1429, %v3984
        %v4075 = vadd.f32 %v1430, %v3987
        %v4076 = vadd.f32 %v1431, %v3992
        %v4077 = vadd.f32 %v1432, %v3995
        %v4078 = vadd.f32 %v1433, %v4000
        %v4079 = vadd.f32 %v1434, %v4003
        %v4080 = vadd.f32 %v1435, %v4008
        %v4081 = vadd.f32 %v1436, %v4011
        %v4082 = vadd.f32 %v1437, %v4016
        %v4083 = vadd.f32 %v1438, %v4019
        %v4084 = vadd.f32 %v1439, %v4024
        %v4085 = vadd.f32 %v1440, %v4027
        %v4086 = vadd.f32 %v1441, %v4032
        %v4087 = vadd.f32 %v1442, %v4035
        %v4088 = vadd.f32 %v1443, %v4040
        %v4089 = vadd.f32 %v1444, %v4043
        %v4090 = vadd.f32 %v1445, %v4048
        %v4091 = vadd.f32 %v1446, %v4051
        %v4092 = vadd.f32 %v1447, %v4056
        %v4093 = vadd.f32 %v1448, %v4059
      $region93: #{tpu_custom_call.1} parent=87 // loop_footer
        %s1416 = sadd.s32 1, %s1412
      $region94: #{tpu_custom_call.1} parent=87 // loop_footer_branch
        %1411 = sbr.rel target = $region90
      $region95: #{tpu_custom_call.1} parent=87 // loop_exit
        _
      %v4094 = vld [vmem:[%s13] sm:$0x1]
      %v4095 = vld [vmem:[%s14] sm:$0x1]
      %4096 = vadd.xlane.f32.xlu0 %v1417
      %v4097 = vpop.xlane.xlu0 %4096
      %4098 = vadd.xlane.f32.xlu0 %v1418
      %v4099 = vpop.xlane.xlu0 %4098
      %4100 = vadd.xlane.f32.xlu0 %v1419
      %v4101 = vpop.xlane.xlu0 %4100
      %4102 = vadd.xlane.f32.xlu0 %v1420
      %v4103 = vpop.xlane.xlu0 %4102
      %4104 = vadd.xlane.f32.xlu0 %v1421
      %v4105 = vpop.xlane.xlu0 %4104
      %4106 = vadd.xlane.f32.xlu0 %v1422
      %v4107 = vpop.xlane.xlu0 %4106
      %4108 = vadd.xlane.f32.xlu0 %v1423
      %v4109 = vpop.xlane.xlu0 %4108
      %4110 = vadd.xlane.f32.xlu0 %v1424
      %v4111 = vpop.xlane.xlu0 %4110
      %4112 = vadd.xlane.f32.xlu0 %v1425
      %v4113 = vpop.xlane.xlu0 %4112
      %4114 = vadd.xlane.f32.xlu0 %v1426
      %v4115 = vpop.xlane.xlu0 %4114
      %4116 = vadd.xlane.f32.xlu0 %v1427
      %v4117 = vpop.xlane.xlu0 %4116
      %4118 = vadd.xlane.f32.xlu0 %v1428
      %v4119 = vpop.xlane.xlu0 %4118
      %4120 = vadd.xlane.f32.xlu0 %v1429
      %v4121 = vpop.xlane.xlu0 %4120
      %4122 = vadd.xlane.f32.xlu0 %v1430
      %v4123 = vpop.xlane.xlu0 %4122
      %4124 = vadd.xlane.f32.xlu0 %v1431
      %v4125 = vpop.xlane.xlu0 %4124
      %4126 = vadd.xlane.f32.xlu0 %v1432
      %v4127 = vpop.xlane.xlu0 %4126
      %4128 = vadd.xlane.f32.xlu0 %v1433
      %v4129 = vpop.xlane.xlu0 %4128
      %4130 = vadd.xlane.f32.xlu0 %v1434
      %v4131 = vpop.xlane.xlu0 %4130
      %4132 = vadd.xlane.f32.xlu0 %v1435
      %v4133 = vpop.xlane.xlu0 %4132
      %4134 = vadd.xlane.f32.xlu0 %v1436
      %v4135 = vpop.xlane.xlu0 %4134
      %4136 = vadd.xlane.f32.xlu0 %v1437
      %v4137 = vpop.xlane.xlu0 %4136
      %4138 = vadd.xlane.f32.xlu0 %v1438
      %v4139 = vpop.xlane.xlu0 %4138
      %4140 = vadd.xlane.f32.xlu0 %v1439
      %v4141 = vpop.xlane.xlu0 %4140
      %4142 = vadd.xlane.f32.xlu0 %v1440
      %v4143 = vpop.xlane.xlu0 %4142
      %4144 = vadd.xlane.f32.xlu0 %v1441
      %v4145 = vpop.xlane.xlu0 %4144
      %4146 = vadd.xlane.f32.xlu0 %v1442
      %v4147 = vpop.xlane.xlu0 %4146
      %4148 = vadd.xlane.f32.xlu0 %v1443
      %v4149 = vpop.xlane.xlu0 %4148
      %4150 = vadd.xlane.f32.xlu0 %v1444
      %v4151 = vpop.xlane.xlu0 %4150
      %4152 = vadd.xlane.f32.xlu0 %v1445
      %v4153 = vpop.xlane.xlu0 %4152
      %4154 = vadd.xlane.f32.xlu0 %v1446
      %v4155 = vpop.xlane.xlu0 %4154
      %4156 = vadd.xlane.f32.xlu0 %v1447
      %v4157 = vpop.xlane.xlu0 %4156
      %4158 = vadd.xlane.f32.xlu0 %v1448
      %v4159 = vpop.xlane.xlu0 %4158
      %v4160 = vrcp.pop 128.0
      %v4161 = vmul.f32 %v4097, %v4160
      %v4162 = vmul.f32 %v4099, %v4160
      %v4163 = vmul.f32 %v4101, %v4160
      %v4164 = vmul.f32 %v4103, %v4160
      %v4165 = vmul.f32 %v4105, %v4160
      %v4166 = vmul.f32 %v4107, %v4160
      %v4167 = vmul.f32 %v4109, %v4160
      %v4168 = vmul.f32 %v4111, %v4160
      %v4169 = vmul.f32 %v4113, %v4160
      %v4170 = vmul.f32 %v4115, %v4160
      %v4171 = vmul.f32 %v4117, %v4160
      %v4172 = vmul.f32 %v4119, %v4160
      %v4173 = vmul.f32 %v4121, %v4160
      %v4174 = vmul.f32 %v4123, %v4160
      %v4175 = vmul.f32 %v4125, %v4160
      %v4176 = vmul.f32 %v4127, %v4160
      %v4177 = vmul.f32 %v4129, %v4160
      %v4178 = vmul.f32 %v4131, %v4160
      %v4179 = vmul.f32 %v4133, %v4160
      %v4180 = vmul.f32 %v4135, %v4160
      %v4181 = vmul.f32 %v4137, %v4160
      %v4182 = vmul.f32 %v4139, %v4160
      %v4183 = vmul.f32 %v4141, %v4160
      %v4184 = vmul.f32 %v4143, %v4160
      %v4185 = vmul.f32 %v4145, %v4160
      %v4186 = vmul.f32 %v4147, %v4160
      %v4187 = vmul.f32 %v4149, %v4160
      %v4188 = vmul.f32 %v4151, %v4160
      %v4189 = vmul.f32 %v4153, %v4160
      %v4190 = vmul.f32 %v4155, %v4160
      %v4191 = vmul.f32 %v4157, %v4160
      %v4192 = vmul.f32 %v4159, %v4160
      %v4193 = vsub.f32 %v1417, %v4161
      %v4194 = vsub.f32 %v1418, %v4162
      %v4195 = vsub.f32 %v1419, %v4163
      %v4196 = vsub.f32 %v1420, %v4164
      %v4197 = vsub.f32 %v1421, %v4165
      %v4198 = vsub.f32 %v1422, %v4166
      %v4199 = vsub.f32 %v1423, %v4167
      %v4200 = vsub.f32 %v1424, %v4168
      %v4201 = vsub.f32 %v1425, %v4169
      %v4202 = vsub.f32 %v1426, %v4170
      %v4203 = vsub.f32 %v1427, %v4171
      %v4204 = vsub.f32 %v1428, %v4172
      %v4205 = vsub.f32 %v1429, %v4173
      %v4206 = vsub.f32 %v1430, %v4174
      %v4207 = vsub.f32 %v1431, %v4175
      %v4208 = vsub.f32 %v1432, %v4176
      %v4209 = vsub.f32 %v1433, %v4177
      %v4210 = vsub.f32 %v1434, %v4178
      %v4211 = vsub.f32 %v1435, %v4179
      %v4212 = vsub.f32 %v1436, %v4180
      %v4213 = vsub.f32 %v1437, %v4181
      %v4214 = vsub.f32 %v1438, %v4182
      %v4215 = vsub.f32 %v1439, %v4183
      %v4216 = vsub.f32 %v1440, %v4184
      %v4217 = vsub.f32 %v1441, %v4185
      %v4218 = vsub.f32 %v1442, %v4186
      %v4219 = vsub.f32 %v1443, %v4187
      %v4220 = vsub.f32 %v1444, %v4188
      %v4221 = vsub.f32 %v1445, %v4189
      %v4222 = vsub.f32 %v1446, %v4190
      %v4223 = vsub.f32 %v1447, %v4191
      %v4224 = vsub.f32 %v1448, %v4192
      %v4225 = vmul.f32 %v4193, %v4193
      %v4226 = vmul.f32 %v4194, %v4194
      %v4227 = vmul.f32 %v4195, %v4195
      %v4228 = vmul.f32 %v4196, %v4196
      %v4229 = vmul.f32 %v4197, %v4197
      %v4230 = vmul.f32 %v4198, %v4198
      %v4231 = vmul.f32 %v4199, %v4199
      %v4232 = vmul.f32 %v4200, %v4200
      %v4233 = vmul.f32 %v4201, %v4201
      %v4234 = vmul.f32 %v4202, %v4202
      %v4235 = vmul.f32 %v4203, %v4203
      %v4236 = vmul.f32 %v4204, %v4204
      %v4237 = vmul.f32 %v4205, %v4205
      %v4238 = vmul.f32 %v4206, %v4206
      %v4239 = vmul.f32 %v4207, %v4207
      %v4240 = vmul.f32 %v4208, %v4208
      %v4241 = vmul.f32 %v4209, %v4209
      %v4242 = vmul.f32 %v4210, %v4210
      %v4243 = vmul.f32 %v4211, %v4211
      %v4244 = vmul.f32 %v4212, %v4212
      %v4245 = vmul.f32 %v4213, %v4213
      %v4246 = vmul.f32 %v4214, %v4214
      %v4247 = vmul.f32 %v4215, %v4215
      %v4248 = vmul.f32 %v4216, %v4216
      %v4249 = vmul.f32 %v4217, %v4217
      %v4250 = vmul.f32 %v4218, %v4218
      %v4251 = vmul.f32 %v4219, %v4219
      %v4252 = vmul.f32 %v4220, %v4220
      %v4253 = vmul.f32 %v4221, %v4221
      %v4254 = vmul.f32 %v4222, %v4222
      %v4255 = vmul.f32 %v4223, %v4223
      %v4256 = vmul.f32 %v4224, %v4224
      %4257 = vadd.xlane.f32.xlu0 %v4225
      %v4258 = vpop.xlane.xlu0 %4257
      %4259 = vadd.xlane.f32.xlu0 %v4226
      %v4260 = vpop.xlane.xlu0 %4259
      %4261 = vadd.xlane.f32.xlu0 %v4227
      %v4262 = vpop.xlane.xlu0 %4261
      %4263 = vadd.xlane.f32.xlu0 %v4228
      %v4264 = vpop.xlane.xlu0 %4263
      %4265 = vadd.xlane.f32.xlu0 %v4229
      %v4266 = vpop.xlane.xlu0 %4265
      %4267 = vadd.xlane.f32.xlu0 %v4230
      %v4268 = vpop.xlane.xlu0 %4267
      %4269 = vadd.xlane.f32.xlu0 %v4231
      %v4270 = vpop.xlane.xlu0 %4269
      %4271 = vadd.xlane.f32.xlu0 %v4232
      %v4272 = vpop.xlane.xlu0 %4271
      %4273 = vadd.xlane.f32.xlu0 %v4233
      %v4274 = vpop.xlane.xlu0 %4273
      %4275 = vadd.xlane.f32.xlu0 %v4234
      %v4276 = vpop.xlane.xlu0 %4275
      %4277 = vadd.xlane.f32.xlu0 %v4235
      %v4278 = vpop.xlane.xlu0 %4277
      %4279 = vadd.xlane.f32.xlu0 %v4236
      %v4280 = vpop.xlane.xlu0 %4279
      %4281 = vadd.xlane.f32.xlu0 %v4237
      %v4282 = vpop.xlane.xlu0 %4281
      %4283 = vadd.xlane.f32.xlu0 %v4238
      %v4284 = vpop.xlane.xlu0 %4283
      %4285 = vadd.xlane.f32.xlu0 %v4239
      %v4286 = vpop.xlane.xlu0 %4285
      %4287 = vadd.xlane.f32.xlu0 %v4240
      %v4288 = vpop.xlane.xlu0 %4287
      %4289 = vadd.xlane.f32.xlu0 %v4241
      %v4290 = vpop.xlane.xlu0 %4289
      %4291 = vadd.xlane.f32.xlu0 %v4242
      %v4292 = vpop.xlane.xlu0 %4291
      %4293 = vadd.xlane.f32.xlu0 %v4243
      %v4294 = vpop.xlane.xlu0 %4293
      %4295 = vadd.xlane.f32.xlu0 %v4244
      %v4296 = vpop.xlane.xlu0 %4295
      %4297 = vadd.xlane.f32.xlu0 %v4245
      %v4298 = vpop.xlane.xlu0 %4297
      %4299 = vadd.xlane.f32.xlu0 %v4246
      %v4300 = vpop.xlane.xlu0 %4299
      %4301 = vadd.xlane.f32.xlu0 %v4247
      %v4302 = vpop.xlane.xlu0 %4301
      %4303 = vadd.xlane.f32.xlu0 %v4248
      %v4304 = vpop.xlane.xlu0 %4303
      %4305 = vadd.xlane.f32.xlu0 %v4249
      %v4306 = vpop.xlane.xlu0 %4305
      %4307 = vadd.xlane.f32.xlu0 %v4250
      %v4308 = vpop.xlane.xlu0 %4307
      %4309 = vadd.xlane.f32.xlu0 %v4251
      %v4310 = vpop.xlane.xlu0 %4309
      %4311 = vadd.xlane.f32.xlu0 %v4252
      %v4312 = vpop.xlane.xlu0 %4311
      %4313 = vadd.xlane.f32.xlu0 %v4253
      %v4314 = vpop.xlane.xlu0 %4313
      %4315 = vadd.xlane.f32.xlu0 %v4254
      %v4316 = vpop.xlane.xlu0 %4315
      %4317 = vadd.xlane.f32.xlu0 %v4255
      %v4318 = vpop.xlane.xlu0 %4317
      %4319 = vadd.xlane.f32.xlu0 %v4256
      %v4320 = vpop.xlane.xlu0 %4319
      %v4321 = vmul.f32 %v4258, %v4160
      %v4322 = vmul.f32 %v4260, %v4160
      %v4323 = vmul.f32 %v4262, %v4160
      %v4324 = vmul.f32 %v4264, %v4160
      %v4325 = vmul.f32 %v4266, %v4160
      %v4326 = vmul.f32 %v4268, %v4160
      %v4327 = vmul.f32 %v4270, %v4160
      %v4328 = vmul.f32 %v4272, %v4160
      %v4329 = vmul.f32 %v4274, %v4160
      %v4330 = vmul.f32 %v4276, %v4160
      %v4331 = vmul.f32 %v4278, %v4160
      %v4332 = vmul.f32 %v4280, %v4160
      %v4333 = vmul.f32 %v4282, %v4160
      %v4334 = vmul.f32 %v4284, %v4160
      %v4335 = vmul.f32 %v4286, %v4160
      %v4336 = vmul.f32 %v4288, %v4160
      %v4337 = vmul.f32 %v4290, %v4160
      %v4338 = vmul.f32 %v4292, %v4160
      %v4339 = vmul.f32 %v4294, %v4160
      %v4340 = vmul.f32 %v4296, %v4160
      %v4341 = vmul.f32 %v4298, %v4160
      %v4342 = vmul.f32 %v4300, %v4160
      %v4343 = vmul.f32 %v4302, %v4160
      %v4344 = vmul.f32 %v4304, %v4160
      %v4345 = vmul.f32 %v4306, %v4160
      %v4346 = vmul.f32 %v4308, %v4160
      %v4347 = vmul.f32 %v4310, %v4160
      %v4348 = vmul.f32 %v4312, %v4160
      %v4349 = vmul.f32 %v4314, %v4160
      %v4350 = vmul.f32 %v4316, %v4160
      %v4351 = vmul.f32 %v4318, %v4160
      %v4352 = vmul.f32 %v4320, %v4160
      %v4353 = vadd.f32 %v4321, 1e-05
      %v4354 = vadd.f32 %v4322, 1e-05
      %v4355 = vadd.f32 %v4323, 1e-05
      %v4356 = vadd.f32 %v4324, 1e-05
      %v4357 = vadd.f32 %v4325, 1e-05
      %v4358 = vadd.f32 %v4326, 1e-05
      %v4359 = vadd.f32 %v4327, 1e-05
      %v4360 = vadd.f32 %v4328, 1e-05
      %v4361 = vadd.f32 %v4329, 1e-05
      %v4362 = vadd.f32 %v4330, 1e-05
      %v4363 = vadd.f32 %v4331, 1e-05
      %v4364 = vadd.f32 %v4332, 1e-05
      %v4365 = vadd.f32 %v4333, 1e-05
      %v4366 = vadd.f32 %v4334, 1e-05
      %v4367 = vadd.f32 %v4335, 1e-05
      %v4368 = vadd.f32 %v4336, 1e-05
      %v4369 = vadd.f32 %v4337, 1e-05
      %v4370 = vadd.f32 %v4338, 1e-05
      %v4371 = vadd.f32 %v4339, 1e-05
      %v4372 = vadd.f32 %v4340, 1e-05
      %v4373 = vadd.f32 %v4341, 1e-05
      %v4374 = vadd.f32 %v4342, 1e-05
      %v4375 = vadd.f32 %v4343, 1e-05
      %v4376 = vadd.f32 %v4344, 1e-05
      %v4377 = vadd.f32 %v4345, 1e-05
      %v4378 = vadd.f32 %v4346, 1e-05
      %v4379 = vadd.f32 %v4347, 1e-05
      %v4380 = vadd.f32 %v4348, 1e-05
      %v4381 = vadd.f32 %v4349, 1e-05
      %v4382 = vadd.f32 %v4350, 1e-05
      %v4383 = vadd.f32 %v4351, 1e-05
      %v4384 = vadd.f32 %v4352, 1e-05
      %v4385 = vrsqrt.pop %v4353
      %v4386 = vrsqrt.pop %v4354
      %v4387 = vrsqrt.pop %v4355
      %v4388 = vrsqrt.pop %v4356
      %v4389 = vrsqrt.pop %v4357
      %v4390 = vrsqrt.pop %v4358
      %v4391 = vrsqrt.pop %v4359
      %v4392 = vrsqrt.pop %v4360
      %v4393 = vrsqrt.pop %v4361
      %v4394 = vrsqrt.pop %v4362
      %v4395 = vrsqrt.pop %v4363
      %v4396 = vrsqrt.pop %v4364
      %v4397 = vrsqrt.pop %v4365
      %v4398 = vrsqrt.pop %v4366
      %v4399 = vrsqrt.pop %v4367
      %v4400 = vrsqrt.pop %v4368
      %v4401 = vrsqrt.pop %v4369
      %v4402 = vrsqrt.pop %v4370
      %v4403 = vrsqrt.pop %v4371
      %v4404 = vrsqrt.pop %v4372
      %v4405 = vrsqrt.pop %v4373
      %v4406 = vrsqrt.pop %v4374
      %v4407 = vrsqrt.pop %v4375
      %v4408 = vrsqrt.pop %v4376
      %v4409 = vrsqrt.pop %v4377
      %v4410 = vrsqrt.pop %v4378
      %v4411 = vrsqrt.pop %v4379
      %v4412 = vrsqrt.pop %v4380
      %v4413 = vrsqrt.pop %v4381
      %v4414 = vrsqrt.pop %v4382
      %v4415 = vrsqrt.pop %v4383
      %v4416 = vrsqrt.pop %v4384
      %v4417 = vmul.f32 %v4193, %v4385
      %v4418 = vmul.f32 %v4194, %v4386
      %v4419 = vmul.f32 %v4195, %v4387
      %v4420 = vmul.f32 %v4196, %v4388
      %v4421 = vmul.f32 %v4197, %v4389
      %v4422 = vmul.f32 %v4198, %v4390
      %v4423 = vmul.f32 %v4199, %v4391
      %v4424 = vmul.f32 %v4200, %v4392
      %v4425 = vmul.f32 %v4201, %v4393
      %v4426 = vmul.f32 %v4202, %v4394
      %v4427 = vmul.f32 %v4203, %v4395
      %v4428 = vmul.f32 %v4204, %v4396
      %v4429 = vmul.f32 %v4205, %v4397
      %v4430 = vmul.f32 %v4206, %v4398
      %v4431 = vmul.f32 %v4207, %v4399
      %v4432 = vmul.f32 %v4208, %v4400
      %v4433 = vmul.f32 %v4209, %v4401
      %v4434 = vmul.f32 %v4210, %v4402
      %v4435 = vmul.f32 %v4211, %v4403
      %v4436 = vmul.f32 %v4212, %v4404
      %v4437 = vmul.f32 %v4213, %v4405
      %v4438 = vmul.f32 %v4214, %v4406
      %v4439 = vmul.f32 %v4215, %v4407
      %v4440 = vmul.f32 %v4216, %v4408
      %v4441 = vmul.f32 %v4217, %v4409
      %v4442 = vmul.f32 %v4218, %v4410
      %v4443 = vmul.f32 %v4219, %v4411
      %v4444 = vmul.f32 %v4220, %v4412
      %v4445 = vmul.f32 %v4221, %v4413
      %v4446 = vmul.f32 %v4222, %v4414
      %v4447 = vmul.f32 %v4223, %v4415
      %v4448 = vmul.f32 %v4224, %v4416
      %v4450 = vlaneseq
      %v4451 = vshrl.u32 %v4450, 7
      %v4452 = vsub.s32 0, %v4451
      %v4453 = vrot.slane %v4094, %v4452
      %v4455 = vmul.f32 %v4417, %v4453
      %v4456 = vmul.f32 %v4418, %v4453
      %v4457 = vmul.f32 %v4419, %v4453
      %v4458 = vmul.f32 %v4420, %v4453
      %v4459 = vmul.f32 %v4421, %v4453
      %v4460 = vmul.f32 %v4422, %v4453
      %v4461 = vmul.f32 %v4423, %v4453
      %v4462 = vmul.f32 %v4424, %v4453
      %v4463 = vmul.f32 %v4425, %v4453
      %v4464 = vmul.f32 %v4426, %v4453
      %v4465 = vmul.f32 %v4427, %v4453
      %v4466 = vmul.f32 %v4428, %v4453
      %v4467 = vmul.f32 %v4429, %v4453
      %v4468 = vmul.f32 %v4430, %v4453
      %v4469 = vmul.f32 %v4431, %v4453
      %v4470 = vmul.f32 %v4432, %v4453
      %v4471 = vmul.f32 %v4433, %v4453
      %v4472 = vmul.f32 %v4434, %v4453
      %v4473 = vmul.f32 %v4435, %v4453
      %v4474 = vmul.f32 %v4436, %v4453
      %v4475 = vmul.f32 %v4437, %v4453
      %v4476 = vmul.f32 %v4438, %v4453
      %v4477 = vmul.f32 %v4439, %v4453
      %v4478 = vmul.f32 %v4440, %v4453
      %v4479 = vmul.f32 %v4441, %v4453
      %v4480 = vmul.f32 %v4442, %v4453
      %v4481 = vmul.f32 %v4443, %v4453
      %v4482 = vmul.f32 %v4444, %v4453
      %v4483 = vmul.f32 %v4445, %v4453
      %v4484 = vmul.f32 %v4446, %v4453
      %v4485 = vmul.f32 %v4447, %v4453
      %v4486 = vmul.f32 %v4448, %v4453
      %v4488 = vlaneseq
      %v4489 = vshrl.u32 %v4488, 7
      %v4490 = vsub.s32 0, %v4489
      %v4491 = vrot.slane %v4095, %v4490
      %v4493 = vadd.f32 %v4455, %v4491
      %v4494 = vadd.f32 %v4456, %v4491
      %v4495 = vadd.f32 %v4457, %v4491
      %v4496 = vadd.f32 %v4458, %v4491
      %v4497 = vadd.f32 %v4459, %v4491
      %v4498 = vadd.f32 %v4460, %v4491
      %v4499 = vadd.f32 %v4461, %v4491
      %v4500 = vadd.f32 %v4462, %v4491
      %v4501 = vadd.f32 %v4463, %v4491
      %v4502 = vadd.f32 %v4464, %v4491
      %v4503 = vadd.f32 %v4465, %v4491
      %v4504 = vadd.f32 %v4466, %v4491
      %v4505 = vadd.f32 %v4467, %v4491
      %v4506 = vadd.f32 %v4468, %v4491
      %v4507 = vadd.f32 %v4469, %v4491
      %v4508 = vadd.f32 %v4470, %v4491
      %v4509 = vadd.f32 %v4471, %v4491
      %v4510 = vadd.f32 %v4472, %v4491
      %v4511 = vadd.f32 %v4473, %v4491
      %v4512 = vadd.f32 %v4474, %v4491
      %v4513 = vadd.f32 %v4475, %v4491
      %v4514 = vadd.f32 %v4476, %v4491
      %v4515 = vadd.f32 %v4477, %v4491
      %v4516 = vadd.f32 %v4478, %v4491
      %v4517 = vadd.f32 %v4479, %v4491
      %v4518 = vadd.f32 %v4480, %v4491
      %v4519 = vadd.f32 %v4481, %v4491
      %v4520 = vadd.f32 %v4482, %v4491
      %v4521 = vadd.f32 %v4483, %v4491
      %v4522 = vadd.f32 %v4484, %v4491
      %v4523 = vadd.f32 %v4485, %v4491
      %v4524 = vadd.f32 %v4486, %v4491
      %v4525 = vld [vmem:[%s15] sm:$0x1]
      %v4527 = vlaneseq
      %v4528 = vshrl.u32 %v4527, 7
      %v4529 = vsub.s32 0, %v4528
      %v4530 = vrot.slane %v4525, %v4529
      %v4532 = vmul.f32 %v4493, %v4530
      %v4533 = vmul.f32 %v4494, %v4530
      %v4534 = vmul.f32 %v4495, %v4530
      %v4535 = vmul.f32 %v4496, %v4530
      %v4536 = vmul.f32 %v4497, %v4530
      %v4537 = vmul.f32 %v4498, %v4530
      %v4538 = vmul.f32 %v4499, %v4530
      %v4539 = vmul.f32 %v4500, %v4530
      %v4540 = vmul.f32 %v4501, %v4530
      %v4541 = vmul.f32 %v4502, %v4530
      %v4542 = vmul.f32 %v4503, %v4530
      %v4543 = vmul.f32 %v4504, %v4530
      %v4544 = vmul.f32 %v4505, %v4530
      %v4545 = vmul.f32 %v4506, %v4530
      %v4546 = vmul.f32 %v4507, %v4530
      %v4547 = vmul.f32 %v4508, %v4530
      %v4548 = vmul.f32 %v4509, %v4530
      %v4549 = vmul.f32 %v4510, %v4530
      %v4550 = vmul.f32 %v4511, %v4530
      %v4551 = vmul.f32 %v4512, %v4530
      %v4552 = vmul.f32 %v4513, %v4530
      %v4553 = vmul.f32 %v4514, %v4530
      %v4554 = vmul.f32 %v4515, %v4530
      %v4555 = vmul.f32 %v4516, %v4530
      %v4556 = vmul.f32 %v4517, %v4530
      %v4557 = vmul.f32 %v4518, %v4530
      %v4558 = vmul.f32 %v4519, %v4530
      %v4559 = vmul.f32 %v4520, %v4530
      %v4560 = vmul.f32 %v4521, %v4530
      %v4561 = vmul.f32 %v4522, %v4530
      %v4562 = vmul.f32 %v4523, %v4530
      %v4563 = vmul.f32 %v4524, %v4530
      %4564 = vadd.xlane.f32.xlu0 %v4532
      %v4565 = vpop.xlane.xlu0 %4564
      %4566 = vadd.xlane.f32.xlu0 %v4533
      %v4567 = vpop.xlane.xlu0 %4566
      %4568 = vadd.xlane.f32.xlu0 %v4534
      %v4569 = vpop.xlane.xlu0 %4568
      %4570 = vadd.xlane.f32.xlu0 %v4535
      %v4571 = vpop.xlane.xlu0 %4570
      %4572 = vadd.xlane.f32.xlu0 %v4536
      %v4573 = vpop.xlane.xlu0 %4572
      %4574 = vadd.xlane.f32.xlu0 %v4537
      %v4575 = vpop.xlane.xlu0 %4574
      %4576 = vadd.xlane.f32.xlu0 %v4538
      %v4577 = vpop.xlane.xlu0 %4576
      %4578 = vadd.xlane.f32.xlu0 %v4539
      %v4579 = vpop.xlane.xlu0 %4578
      %4580 = vadd.xlane.f32.xlu0 %v4540
      %v4581 = vpop.xlane.xlu0 %4580
      %4582 = vadd.xlane.f32.xlu0 %v4541
      %v4583 = vpop.xlane.xlu0 %4582
      %4584 = vadd.xlane.f32.xlu0 %v4542
      %v4585 = vpop.xlane.xlu0 %4584
      %4586 = vadd.xlane.f32.xlu0 %v4543
      %v4587 = vpop.xlane.xlu0 %4586
      %4588 = vadd.xlane.f32.xlu0 %v4544
      %v4589 = vpop.xlane.xlu0 %4588
      %4590 = vadd.xlane.f32.xlu0 %v4545
      %v4591 = vpop.xlane.xlu0 %4590
      %4592 = vadd.xlane.f32.xlu0 %v4546
      %v4593 = vpop.xlane.xlu0 %4592
      %4594 = vadd.xlane.f32.xlu0 %v4547
      %v4595 = vpop.xlane.xlu0 %4594
      %4596 = vadd.xlane.f32.xlu0 %v4548
      %v4597 = vpop.xlane.xlu0 %4596
      %4598 = vadd.xlane.f32.xlu0 %v4549
      %v4599 = vpop.xlane.xlu0 %4598
      %4600 = vadd.xlane.f32.xlu0 %v4550
      %v4601 = vpop.xlane.xlu0 %4600
      %4602 = vadd.xlane.f32.xlu0 %v4551
      %v4603 = vpop.xlane.xlu0 %4602
      %4604 = vadd.xlane.f32.xlu0 %v4552
      %v4605 = vpop.xlane.xlu0 %4604
      %4606 = vadd.xlane.f32.xlu0 %v4553
      %v4607 = vpop.xlane.xlu0 %4606
      %4608 = vadd.xlane.f32.xlu0 %v4554
      %v4609 = vpop.xlane.xlu0 %4608
      %4610 = vadd.xlane.f32.xlu0 %v4555
      %v4611 = vpop.xlane.xlu0 %4610
      %4612 = vadd.xlane.f32.xlu0 %v4556
      %v4613 = vpop.xlane.xlu0 %4612
      %4614 = vadd.xlane.f32.xlu0 %v4557
      %v4615 = vpop.xlane.xlu0 %4614
      %4616 = vadd.xlane.f32.xlu0 %v4558
      %v4617 = vpop.xlane.xlu0 %4616
      %4618 = vadd.xlane.f32.xlu0 %v4559
      %v4619 = vpop.xlane.xlu0 %4618
      %4620 = vadd.xlane.f32.xlu0 %v4560
      %v4621 = vpop.xlane.xlu0 %4620
      %4622 = vadd.xlane.f32.xlu0 %v4561
      %v4623 = vpop.xlane.xlu0 %4622
      %4624 = vadd.xlane.f32.xlu0 %v4562
      %v4625 = vpop.xlane.xlu0 %4624
      %4626 = vadd.xlane.f32.xlu0 %v4563
      %v4627 = vpop.xlane.xlu0 %4626
      %v4628 = vld [vmem:[#allocation2] sm:$0x1]
      %v4630 = vlaneseq
      %v4631 = vshrl.u32 %v4630, 7
      %v4632 = vsub.s32 0, %v4631
      %v4633 = vrot.slane %v4628, %v4632
      %4634 = vset.pattern.permute.xlu0 0
      %4635 = vperm.xlu0 %4634, %v4633
      %v4636 = vpop.permute.xlu0 %4635
      %v4638 = vadd.f32 %v4565, %v4636
      %v4639 = vadd.f32 %v4567, %v4636
      %v4640 = vadd.f32 %v4569, %v4636
      %v4641 = vadd.f32 %v4571, %v4636
      %v4642 = vadd.f32 %v4573, %v4636
      %v4643 = vadd.f32 %v4575, %v4636
      %v4644 = vadd.f32 %v4577, %v4636
      %v4645 = vadd.f32 %v4579, %v4636
      %v4646 = vadd.f32 %v4581, %v4636
      %v4647 = vadd.f32 %v4583, %v4636
      %v4648 = vadd.f32 %v4585, %v4636
      %v4649 = vadd.f32 %v4587, %v4636
      %v4650 = vadd.f32 %v4589, %v4636
      %v4651 = vadd.f32 %v4591, %v4636
      %v4652 = vadd.f32 %v4593, %v4636
      %v4653 = vadd.f32 %v4595, %v4636
      %v4654 = vadd.f32 %v4597, %v4636
      %v4655 = vadd.f32 %v4599, %v4636
      %v4656 = vadd.f32 %v4601, %v4636
      %v4657 = vadd.f32 %v4603, %v4636
      %v4658 = vadd.f32 %v4605, %v4636
      %v4659 = vadd.f32 %v4607, %v4636
      %v4660 = vadd.f32 %v4609, %v4636
      %v4661 = vadd.f32 %v4611, %v4636
      %v4662 = vadd.f32 %v4613, %v4636
      %v4663 = vadd.f32 %v4615, %v4636
      %v4664 = vadd.f32 %v4617, %v4636
      %v4665 = vadd.f32 %v4619, %v4636
      %v4666 = vadd.f32 %v4621, %v4636
      %v4667 = vadd.f32 %v4623, %v4636
      %v4668 = vadd.f32 %v4625, %v4636
      %v4669 = vadd.f32 %v4627, %v4636
      %v4702 = vlaneseq
      %v4703 = vand.u32 %v4702, 127
      %v4704 = vlaneseq
      %v4705 = vshrl.u32 %v4704, 7
      %v4706 = vsub.s32 %v4703, %v4705
      %v4707 = vrot.slane %v4638, %v4706
      %v4708 = vlaneseq
      %v4709 = vshrl.u32 %v4708, 7
      %v4710 = vsub.s32 %v4703, %v4709
      %v4711 = vrot.slane %v4639, %v4710
      %v4712 = vlaneseq
      %v4713 = vshrl.u32 %v4712, 7
      %v4714 = vsub.s32 %v4703, %v4713
      %v4715 = vrot.slane %v4640, %v4714
      %v4716 = vlaneseq
      %v4717 = vshrl.u32 %v4716, 7
      %v4718 = vsub.s32 %v4703, %v4717
      %v4719 = vrot.slane %v4641, %v4718
      %v4720 = vlaneseq
      %v4721 = vshrl.u32 %v4720, 7
      %v4722 = vsub.s32 %v4703, %v4721
      %v4723 = vrot.slane %v4642, %v4722
      %v4724 = vlaneseq
      %v4725 = vshrl.u32 %v4724, 7
      %v4726 = vsub.s32 %v4703, %v4725
      %v4727 = vrot.slane %v4643, %v4726
      %v4728 = vlaneseq
      %v4729 = vshrl.u32 %v4728, 7
      %v4730 = vsub.s32 %v4703, %v4729
      %v4731 = vrot.slane %v4644, %v4730
      %v4732 = vlaneseq
      %v4733 = vshrl.u32 %v4732, 7
      %v4734 = vsub.s32 %v4703, %v4733
      %v4735 = vrot.slane %v4645, %v4734
      %v4736 = vlaneseq
      %v4737 = vshrl.u32 %v4736, 7
      %v4738 = vsub.s32 %v4703, %v4737
      %v4739 = vrot.slane %v4646, %v4738
      %v4740 = vlaneseq
      %v4741 = vshrl.u32 %v4740, 7
      %v4742 = vsub.s32 %v4703, %v4741
      %v4743 = vrot.slane %v4647, %v4742
      %v4744 = vlaneseq
      %v4745 = vshrl.u32 %v4744, 7
      %v4746 = vsub.s32 %v4703, %v4745
      %v4747 = vrot.slane %v4648, %v4746
      %v4748 = vlaneseq
      %v4749 = vshrl.u32 %v4748, 7
      %v4750 = vsub.s32 %v4703, %v4749
      %v4751 = vrot.slane %v4649, %v4750
      %v4752 = vlaneseq
      %v4753 = vshrl.u32 %v4752, 7
      %v4754 = vsub.s32 %v4703, %v4753
      %v4755 = vrot.slane %v4650, %v4754
      %v4756 = vlaneseq
      %v4757 = vshrl.u32 %v4756, 7
      %v4758 = vsub.s32 %v4703, %v4757
      %v4759 = vrot.slane %v4651, %v4758
      %v4760 = vlaneseq
      %v4761 = vshrl.u32 %v4760, 7
      %v4762 = vsub.s32 %v4703, %v4761
      %v4763 = vrot.slane %v4652, %v4762
      %v4764 = vlaneseq
      %v4765 = vshrl.u32 %v4764, 7
      %v4766 = vsub.s32 %v4703, %v4765
      %v4767 = vrot.slane %v4653, %v4766
      %v4768 = vlaneseq
      %v4769 = vshrl.u32 %v4768, 7
      %v4770 = vsub.s32 %v4703, %v4769
      %v4771 = vrot.slane %v4654, %v4770
      %v4772 = vlaneseq
      %v4773 = vshrl.u32 %v4772, 7
      %v4774 = vsub.s32 %v4703, %v4773
      %v4775 = vrot.slane %v4655, %v4774
      %v4776 = vlaneseq
      %v4777 = vshrl.u32 %v4776, 7
      %v4778 = vsub.s32 %v4703, %v4777
      %v4779 = vrot.slane %v4656, %v4778
      %v4780 = vlaneseq
      %v4781 = vshrl.u32 %v4780, 7
      %v4782 = vsub.s32 %v4703, %v4781
      %v4783 = vrot.slane %v4657, %v4782
      %v4784 = vlaneseq
      %v4785 = vshrl.u32 %v4784, 7
      %v4786 = vsub.s32 %v4703, %v4785
      %v4787 = vrot.slane %v4658, %v4786
      %v4788 = vlaneseq
      %v4789 = vshrl.u32 %v4788, 7
      %v4790 = vsub.s32 %v4703, %v4789
      %v4791 = vrot.slane %v4659, %v4790
      %v4792 = vlaneseq
      %v4793 = vshrl.u32 %v4792, 7
      %v4794 = vsub.s32 %v4703, %v4793
      %v4795 = vrot.slane %v4660, %v4794
      %v4796 = vlaneseq
      %v4797 = vshrl.u32 %v4796, 7
      %v4798 = vsub.s32 %v4703, %v4797
      %v4799 = vrot.slane %v4661, %v4798
      %v4800 = vlaneseq
      %v4801 = vshrl.u32 %v4800, 7
      %v4802 = vsub.s32 %v4703, %v4801
      %v4803 = vrot.slane %v4662, %v4802
      %v4804 = vlaneseq
      %v4805 = vshrl.u32 %v4804, 7
      %v4806 = vsub.s32 %v4703, %v4805
      %v4807 = vrot.slane %v4663, %v4806
      %v4808 = vlaneseq
      %v4809 = vshrl.u32 %v4808, 7
      %v4810 = vsub.s32 %v4703, %v4809
      %v4811 = vrot.slane %v4664, %v4810
      %v4812 = vlaneseq
      %v4813 = vshrl.u32 %v4812, 7
      %v4814 = vsub.s32 %v4703, %v4813
      %v4815 = vrot.slane %v4665, %v4814
      %v4816 = vlaneseq
      %v4817 = vshrl.u32 %v4816, 7
      %v4818 = vsub.s32 %v4703, %v4817
      %v4819 = vrot.slane %v4666, %v4818
      %v4820 = vlaneseq
      %v4821 = vshrl.u32 %v4820, 7
      %v4822 = vsub.s32 %v4703, %v4821
      %v4823 = vrot.slane %v4667, %v4822
      %v4824 = vlaneseq
      %v4825 = vshrl.u32 %v4824, 7
      %v4826 = vsub.s32 %v4703, %v4825
      %v4827 = vrot.slane %v4668, %v4826
      %v4828 = vlaneseq
      %v4829 = vshrl.u32 %v4828, 7
      %v4830 = vsub.s32 %v4703, %v4829
      %v4831 = vrot.slane %v4669, %v4830
      %vm4832 = vcmask 1041409
      %v4833 = vsel %vm4832, %v4711, %v4707
      %vm4834 = vcmask 1042434
      %v4835 = vsel %vm4834, %v4715, %v4833
      %vm4836 = vcmask 1043459
      %v4837 = vsel %vm4836, %v4719, %v4835
      %vm4838 = vcmask 1044484
      %v4839 = vsel %vm4838, %v4723, %v4837
      %vm4840 = vcmask 1045509
      %v4841 = vsel %vm4840, %v4727, %v4839
      %vm4842 = vcmask 1046534
      %v4843 = vsel %vm4842, %v4731, %v4841
      %vm4844 = vcmask 1047559
      %v4845 = vsel %vm4844, %v4735, %v4843
      %v4846 = vsel %vm4832, %v4743, %v4739
      %v4847 = vsel %vm4834, %v4747, %v4846
      %v4848 = vsel %vm4836, %v4751, %v4847
      %v4849 = vsel %vm4838, %v4755, %v4848
      %v4850 = vsel %vm4840, %v4759, %v4849
      %v4851 = vsel %vm4842, %v4763, %v4850
      %v4852 = vsel %vm4844, %v4767, %v4851
      %v4853 = vsel %vm4832, %v4775, %v4771
      %v4854 = vsel %vm4834, %v4779, %v4853
      %v4855 = vsel %vm4836, %v4783, %v4854
      %v4856 = vsel %vm4838, %v4787, %v4855
      %v4857 = vsel %vm4840, %v4791, %v4856
      %v4858 = vsel %vm4842, %v4795, %v4857
      %v4859 = vsel %vm4844, %v4799, %v4858
      %v4860 = vsel %vm4832, %v4807, %v4803
      %v4861 = vsel %vm4834, %v4811, %v4860
      %v4862 = vsel %vm4836, %v4815, %v4861
      %v4863 = vsel %vm4838, %v4819, %v4862
      %v4864 = vsel %vm4840, %v4823, %v4863
      %v4865 = vsel %vm4842, %v4827, %v4864
      %v4866 = vsel %vm4844, %v4831, %v4865
      %vm4871 = vcmask 64512
      %4872 = vst.msk [vmem:[%s552] sm:$0xff] %vm4871, %v4845
      %4873 = vst.msk [vmem:[%s552 + $0x8] sm:$0xff] %vm4871, %v4852
      %4874 = vst.msk [vmem:[%s552 + $0x10] sm:$0xff] %vm4871, %v4859
      %4875 = vst.msk [vmem:[%s552 + $0x18] sm:$0xff] %vm4871, %v4866
      %s4876 = smul.u32 4, %s30
      %p4877 = scmp.lt.s32.totalorder %s4876, 7
      %s4878 = scalar_select %p4877, %s4876, 7
      %s4879 = smul.addr %s4878, 8
      %s4880 = scalar_lea.vmem %s17, %s4879
      // Predicated region
      $region96: #{tpu_custom_call.1} parent=87 // pred_check
        %p4881 = pneg %p410
      $region97: #{tpu_custom_call.1} parent=87 // pred_check_branch
        %4883 = sbr.rel (%p4881) target = $region99
      $region98: #{tpu_custom_call.1} parent=87 // pred_region
        %s4884 = smul.u32 4, %s30
      $region99: #{tpu_custom_call.1} parent=87 // pred_fallthru
        _
    $region88: #{tpu_custom_call.1} parent=5 // pred_fallthru
      _
    %p4885 = scmp.le.s32.totalorder 2, %s25
    // Predicated region
    $region100: #{tpu_custom_call.1} parent=5 // pred_check
      %p4886 = pneg %p4885
    $region101: #{tpu_custom_call.1} parent=5 // pred_check_branch
      %4888 = sbr.rel (%p4886) target = $region103
    $region102: #{tpu_custom_call.1} parent=5 // pred_region
      %s4889 = ssub.s32 %s25, 2
      // Predicated region
      $region104: #{tpu_custom_call.1} parent=102 // pred_check
        %p4890 = pneg %p416
      $region105: #{tpu_custom_call.1} parent=102 // pred_check_branch
        %4892 = sbr.rel (%p4890) target = $region107
      $region106: #{tpu_custom_call.1} parent=102 // pred_region
        %s4893 = smul.u32 4, %s31
        %p4894 = scmp.lt.s32.totalorder %s4893, 7
        %s4895 = scalar_select %p4894, %s4893, 7
        %s4896 = smul.addr %s4895, 8
        %s4897 = scalar_lea.vmem %s17, %s4896
      $region107: #{tpu_custom_call.1} parent=102 // pred_fallthru
        _
    $region103: #{tpu_custom_call.1} parent=5 // pred_fallthru
      _
  $region6: #{tpu_custom_call.1} parent=0 // loop_footer
    %s29 = sadd.s32 1, %s25
  $region7: #{tpu_custom_call.1} parent=0 // loop_footer_branch
    %24 = sbr.rel target = $region3
  $region8: #{tpu_custom_call.1} parent=0 // loop_exit
    _

</llo_original>
